<compile_context>
chip_gen: v6e
topology: v6e:2x2x1
jax: 0.10.0
libtpu: 0.0.40
codegen_flags: <defaults>
</compile_context>

<pallas_src>
import functools

import jax
import jax.numpy as jnp
from jax.experimental import pallas as pl
from jax.experimental.pallas import tpu as pltpu


def _round_up(x, m):
    return ((x + m - 1) // m) * m


def _largest_divisor_at_most(n, cap):
    cap = max(1, min(cap, n))
    for k in range(cap, 0, -1):
        if n % k == 0:
            return k
    return 1


def _decoder_kernel(z_ref, wfc_ref, bfc_ref, wih_ref, whh_ref, b_ref,
                    wout_ref, bout_ref, out_ref, h_hist,
                    *, hidden_dim, seq_len, chunk_len, unroll):
    """One grid step == one batch tile. The full time recurrence runs in-kernel."""
    H = hidden_dim
    Bt = z_ref.shape[0]
    Op = out_ref.shape[-1]
    n_chunks = seq_len // chunk_len

    # fc + ReLU (once per batch tile; tiny matmul, kept in f32 for accuracy).
    x = jnp.maximum(
        jnp.dot(z_ref[...], wfc_ref[...], preferred_element_type=jnp.float32)
        + bfc_ref[...], 0.0)                                          # (Bt, H) f32

    # Time-invariant input half of the gate pre-activation, hoisted out of the loop.
    # bf16 MXU operands, f32 accumulation.
    proj = (jnp.dot(x.astype(jnp.bfloat16), wih_ref[...],
                    preferred_element_type=jnp.float32)
            + b_ref[...])                                             # (Bt, 4H) f32

    def lstm_step(k, carry):
        h, c = carry                                                  # f32 state
        # PyTorch LSTM gate layout: [i, f, g, o] stacked along the 4H axis.
        gates = proj + jnp.dot(h.astype(jnp.bfloat16), whh_ref[...],
                               preferred_element_type=jnp.float32)
        sig_if = jax.nn.sigmoid(gates[:, :2 * H])        # fused i/f sigmoid dispatch
        i_g = sig_if[:, :H]
        f_g = sig_if[:, H:]
        g_g = jnp.tanh(gates[:, 2 * H:3 * H])
        o_g = jax.nn.sigmoid(gates[:, 3 * H:])
        c = f_g * c + i_g * g_g
        h = o_g * jnp.tanh(c)
        h_hist[k] = h                                    # stage hidden state (VMEM)
        return h, c

    def chunk_body(ci, carry):
        carry = jax.lax.fori_loop(0, chunk_len, lstm_step, carry, unroll=unroll)
        # Deferred, lane-dense output projection for this chunk of timesteps,
        # followed by a single dense slab store into the output tile.
        hs = h_hist[...].reshape(chunk_len * Bt, H).astype(jnp.bfloat16)
        y = (jnp.dot(hs, wout_ref[...], preferred_element_type=jnp.float32)
             + bout_ref[...])
        out_ref[pl.ds(ci * chunk_len, chunk_len)] = (
            y.reshape(chunk_len, Bt, Op).astype(out_ref.dtype))
        return carry

    h0 = jnp.zeros((Bt, H), jnp.float32)
    c0 = jnp.zeros((Bt, H), jnp.float32)
    jax.lax.fori_loop(0, n_chunks, chunk_body, (h0, c0))


def decoder_forward(z, params, seq_len, *, batch_block=128, time_chunk=64):
    """z: (B, latent_dim) float32 -> (B, seq_len, output_dim) float32 (batch_first)."""
    assert batch_block % 8 == 0, "batch_block must be a multiple of 8 (f32 sublane)"
    B, L = z.shape
    H = params["w_fc"].shape[0]           # fc weight: (H, L), torch convention
    O = params["w_out"].shape[0]          # out weight: (O, H)

    # ---- pad to hardware tile (exact: padded units contribute exactly zero) ----
    Hp = _round_up(H, 128)
    Op = _round_up(O, 128)
    bt = min(batch_block, _round_up(B, 8))    # clamp tile to the (padded) batch
    Bp = _round_up(B, bt)
    chunk_len = _largest_divisor_at_most(seq_len, time_chunk)
    unroll = True if chunk_len <= 8 else 4
    wdt = jnp.bfloat16                        # MXU-operand dtype; accumulation is f32

    def pad2(a, r, c):                     # zero-pad a 2D array to (r, c)
        return jnp.pad(a, ((0, r - a.shape[0]), (0, c - a.shape[1])))

    def pad1(a, n):
        return jnp.pad(a, (0, n - a.shape[0]))

    def pad_gates_w(w, in_dim, in_dim_p):  # w: (4H, in_dim), gates [i,f,g,o] on dim 0
        w4 = w.reshape(4, H, in_dim)
        w4 = jnp.pad(w4, ((0, 0), (0, Hp - H), (0, in_dim_p - in_dim)))
        return w4.reshape(4 * Hp, in_dim_p)

    def pad_gates_b(b):                    # b: (4H,)
        return jnp.pad(b.reshape(4, H), ((0, 0), (0, Hp - H))).reshape(4 * Hp)

    z_p = pad2(z, Bp, L)

    # Glue: pre-transpose weights (torch stores (out, in)); biases as (1, N) rows.
    wfc_t = pad2(params["w_fc"], Hp, L).T                           # (L, Hp)  f32
    bfc = pad1(params["b_fc"], Hp)[None, :]                         # (1, Hp)  f32
    wih_t = pad_gates_w(params["w_ih"], H, Hp).T.astype(wdt)        # (Hp, 4Hp) bf16
    whh_t = pad_gates_w(params["w_hh"], H, Hp).T.astype(wdt)        # (Hp, 4Hp) bf16
    b_fused = pad_gates_b(params["b_ih"] + params["b_hh"])[None, :]  # (1, 4Hp) f32
    wout_t = pad2(params["w_out"], Op, Hp).T.astype(wdt)            # (Hp, Op)  bf16
    bout = pad1(params["b_out"], Op)[None, :]                       # (1, Op)   f32

    # VMEM budget estimate (pipelined operands are double-buffered by default).
    f32b, bf16b = 4, 2
    weight_bytes = (L * Hp * f32b + 2 * Hp * 4 * Hp * bf16b + Hp * Op * bf16b
                    + (Hp + 4 * Hp + Op) * f32b)
    io_bytes = bt * L * f32b + seq_len * bt * Op * f32b
    scratch_bytes = chunk_len * bt * Hp * f32b
    est = 2 * (weight_bytes + io_bytes) + scratch_bytes
    vmem_limit = int(min(max(32 * 1024 * 1024, 1.5 * est + (8 << 20)),
                         100 * 1024 * 1024))

    kernel = functools.partial(_decoder_kernel, hidden_dim=Hp, seq_len=seq_len,
                               chunk_len=chunk_len, unroll=unroll)
    # Constant (grid-invariant) operands: index_map is (0, 0) every step, so the
    # pipeline never re-fetches them.  (pipeline_mode=pl.Buffered(1) would also drop
    # the redundant second buffer -- extra headroom on v7x's 64 MiB VMEM at large H.)
    const2d = lambda shape: pl.BlockSpec(shape, lambda b: (0, 0))

    out_tbo = pl.pallas_call(
        kernel,
        out_shape=jax.ShapeDtypeStruct((seq_len, Bp, Op), jnp.float32),
        grid=(Bp // bt,),                                  # batch-only grid (parallel)
        in_specs=[
            pl.BlockSpec((bt, L), lambda b: (b, 0)),       # z (per batch tile)
            const2d((L, Hp)),                              # wfc_t
            const2d((1, Hp)),                              # bfc
            const2d((Hp, 4 * Hp)),                         # wih_t (bf16)
            const2d((Hp, 4 * Hp)),                         # whh_t (bf16)
            const2d((1, 4 * Hp)),                          # fused b_ih + b_hh
            const2d((Hp, Op)),                             # wout_t (bf16)
            const2d((1, Op)),                              # bout
        ],
        out_specs=pl.BlockSpec((seq_len, bt, Op), lambda b: (0, b, 0)),
        scratch_shapes=[
            pltpu.VMEM((chunk_len, bt, Hp), jnp.float32),  # staged hidden states
        ],
        compiler_params=pltpu.CompilerParams(
            dimension_semantics=("parallel",),             # time never enters the grid
            vmem_limit_bytes=vmem_limit,
        ),
    )(z_p, wfc_t, bfc, wih_t, whh_t, b_fused, wout_t, bout)

    # (T, Bp, Op) -> (B, T, O), batch_first like torch, padding sliced away.
    return jnp.transpose(out_tbo, (1, 0, 2))[:B, :, :O]


def init_params(key, latent_dim, hidden_dim, output_dim):
    """Deterministic init mimicking torch default U(-1/sqrt(fan_in), 1/sqrt(fan_in))."""
    ks = jax.random.split(key, 8)
    u = lambda k, shape, bound: jax.random.uniform(
        k, shape, jnp.float32, minval=-bound, maxval=bound)
    b_fc = 1.0 / jnp.sqrt(latent_dim)
    b_lstm = 1.0 / jnp.sqrt(hidden_dim)
    b_out = 1.0 / jnp.sqrt(hidden_dim)
    return {
        "w_fc": u(ks[0], (hidden_dim, latent_dim), b_fc),
        "b_fc": u(ks[1], (hidden_dim,), b_fc),
        "w_ih": u(ks[2], (4 * hidden_dim, hidden_dim), b_lstm),
        "w_hh": u(ks[3], (4 * hidden_dim, hidden_dim), b_lstm),
        "b_ih": u(ks[4], (4 * hidden_dim,), b_lstm),
        "b_hh": u(ks[5], (4 * hidden_dim,), b_lstm),
        "w_out": u(ks[6], (output_dim, hidden_dim), b_out),
        "b_out": u(ks[7], (output_dim,), b_out),
    }


def decoder_reference(z, params, seq_len):
    """Pure-JAX f32 reference matching torch semantics (correctness check)."""
    H = params["w_fc"].shape[0]
    x = jnp.maximum(z @ params["w_fc"].T + params["b_fc"], 0.0)  # (B, H)
    B = z.shape[0]
    h = jnp.zeros((B, H), jnp.float32)
    c = jnp.zeros((B, H), jnp.float32)
    x_proj = x @ params["w_ih"].T + params["b_ih"]               # constant per step

    def step(carry, _):
        h, c = carry
        gates = x_proj + h @ params["w_hh"].T + params["b_hh"]
        i = jax.nn.sigmoid(gates[:, 0 * H:1 * H])
        f = jax.nn.sigmoid(gates[:, 1 * H:2 * H])
        g = jnp.tanh(gates[:, 2 * H:3 * H])
        o = jax.nn.sigmoid(gates[:, 3 * H:])
        c = f * c + i * g
        h = o * jnp.tanh(c)
        return (h, c), h

    (_, _), hs = jax.lax.scan(step, (h, c), None, length=seq_len)  # (T, B, H)
    out = hs @ params["w_out"].T + params["b_out"]                 # (T, B, O)
    return jnp.transpose(out, (1, 0, 2))


if __name__ == "__main__":
    key = jax.random.PRNGKey(0)
    k_z, k_p, k_z2 = jax.random.split(key, 3)

    # Config 1: small module-implied shapes, default tiling (single tile/chunk).
    B, latent_dim, hidden_dim, output_dim, seq_len = 2, 8, 32, 16, 8
    z = jax.random.normal(k_z, (B, latent_dim), jnp.float32)
    params = init_params(k_p, latent_dim, hidden_dim, output_dim)

    out = jax.block_until_ready(decoder_forward(z, params, seq_len))
    ref = decoder_reference(z, params, seq_len)
    assert out.shape == (B, seq_len, output_dim), out.shape
    err1 = float(jnp.max(jnp.abs(out - ref)))
    # bf16 matmul operands with f32 accumulation -> loosened vs pure-f32 tolerance.
    assert err1 < 5e-2, err1

    # Config 2: exercises the multi-tile batch grid and the multi-chunk time loop.
    B2 = 10
    z2 = jax.random.normal(k_z2, (B2, latent_dim), jnp.float32)
    out2 = jax.block_until_ready(
        decoder_forward(z2, params, seq_len, batch_block=8, time_chunk=4))
    ref2 = decoder_reference(z2, params, seq_len)
    assert out2.shape == (B2, seq_len, output_dim), out2.shape
    err2 = float(jnp.max(jnp.abs(out2 - ref2)))
    assert err2 < 5e-2, err2

    print("KERNEL_OK")
</pallas_src>

<mosaic_0001>
module attributes {stable_mosaic.version = 11 : i64} {
  func.func @_decoder_kernel(%arg0: i32, %arg1: memref<8x8xf32, #tpu.memory_space<vmem>>, %arg2: memref<8x128xf32, #tpu.memory_space<vmem>>, %arg3: memref<1x128xf32, #tpu.memory_space<vmem>>, %arg4: memref<128x512xbf16, #tpu.memory_space<vmem>>, %arg5: memref<128x512xbf16, #tpu.memory_space<vmem>>, %arg6: memref<1x512xf32, #tpu.memory_space<vmem>>, %arg7: memref<128x128xbf16, #tpu.memory_space<vmem>>, %arg8: memref<1x128xf32, #tpu.memory_space<vmem>>, %arg9: memref<8x8x128xf32, #tpu.memory_space<vmem>>, %arg10: memref<8x8x128xf32, #tpu.memory_space<vmem>>) attributes {dimension_semantics = [#tpu.dimension_semantics<parallel>], iteration_bounds = array<i64: 1>, scalar_prefetch = 0 : i64, scratch_operands = 1 : i64, tpu.core_type = #tpu.core_type<tc>, window_params = [{transform_indices = @transform_0, window_bounds = array<i64: 8, 8>}, {pipeline_mode = #tpu.pipeline_mode<synchronous>, transform_indices = @transform_1, window_bounds = array<i64: 8, 128>}, {pipeline_mode = #tpu.pipeline_mode<synchronous>, transform_indices = @transform_2, window_bounds = array<i64: 1, 128>}, {pipeline_mode = #tpu.pipeline_mode<synchronous>, transform_indices = @transform_3, window_bounds = array<i64: 128, 512>}, {pipeline_mode = #tpu.pipeline_mode<synchronous>, transform_indices = @transform_4, window_bounds = array<i64: 128, 512>}, {pipeline_mode = #tpu.pipeline_mode<synchronous>, transform_indices = @transform_5, window_bounds = array<i64: 1, 512>}, {pipeline_mode = #tpu.pipeline_mode<synchronous>, transform_indices = @transform_6, window_bounds = array<i64: 128, 128>}, {pipeline_mode = #tpu.pipeline_mode<synchronous>, transform_indices = @transform_7, window_bounds = array<i64: 1, 128>}, {transform_indices = @transform_8, window_bounds = array<i64: 8, 8, 128>}]} {
    %c0 = arith.constant 0 : index
    %c0_0 = arith.constant 0 : index
    %0 = vector.load %arg1[%c0, %c0_0] : memref<8x8xf32, #tpu.memory_space<vmem>>, vector<8x8xf32>
    %c0_1 = arith.constant 0 : index
    %c0_2 = arith.constant 0 : index
    %1 = vector.load %arg2[%c0_1, %c0_2] : memref<8x128xf32, #tpu.memory_space<vmem>>, vector<8x128xf32>
    %cst = arith.constant dense<0.000000e+00> : vector<8x128xf32>
    %2 = tpu.matmul %0, %1, %cst {dimension_numbers = #tpu.dot_dimension_numbers<[1], [0], [0], [1], [0, 0, 1, 1], [], []>} : vector<8x8xf32>, vector<8x128xf32>, vector<8x128xf32> -> vector<8x128xf32>
    %c0_3 = arith.constant 0 : index
    %c0_4 = arith.constant 0 : index
    %3 = vector.load %arg3[%c0_3, %c0_4] : memref<1x128xf32, #tpu.memory_space<vmem>>, vector<1x128xf32>
    %4 = vector.broadcast %3 : vector<1x128xf32> to vector<8x128xf32>
    %5 = arith.addf %2, %4 : vector<8x128xf32>
    %cst_5 = arith.constant 0.000000e+00 : f32
    %6 = vector.broadcast %cst_5 : f32 to vector<8x128xf32>
    %7 = arith.maximumf %5, %6 : vector<8x128xf32>
    %8 = arith.truncf %7 : vector<8x128xf32> to vector<8x128xbf16>
    %c0_6 = arith.constant 0 : index
    %c0_7 = arith.constant 0 : index
    %9 = vector.load %arg4[%c0_6, %c0_7] : memref<128x512xbf16, #tpu.memory_space<vmem>>, vector<128x512xbf16>
    %cst_8 = arith.constant dense<0.000000e+00> : vector<8x512xf32>
    %10 = tpu.matmul %8, %9, %cst_8 {dimension_numbers = #tpu.dot_dimension_numbers<[1], [0], [0], [1], [0, 0, 1, 1], [], []>} : vector<8x128xbf16>, vector<128x512xbf16>, vector<8x512xf32> -> vector<8x512xf32>
    %c0_9 = arith.constant 0 : index
    %c0_10 = arith.constant 0 : index
    %11 = vector.load %arg6[%c0_9, %c0_10] : memref<1x512xf32, #tpu.memory_space<vmem>>, vector<1x512xf32>
    %12 = vector.broadcast %11 : vector<1x512xf32> to vector<8x512xf32>
    %13 = arith.addf %10, %12 : vector<8x512xf32>
    %cst_11 = arith.constant 0.000000e+00 : f32
    %14 = vector.broadcast %cst_11 : f32 to vector<8x128xf32>
    %cst_12 = arith.constant 0.000000e+00 : f32
    %15 = vector.broadcast %cst_12 : f32 to vector<8x128xf32>
    %c0_i32 = arith.constant 0 : i32
    %c0_i32_13 = arith.constant 0 : i32
    %16 = arith.truncf %14 : vector<8x128xf32> to vector<8x128xbf16>
    %c0_14 = arith.constant 0 : index
    %c0_15 = arith.constant 0 : index
    %17 = vector.load %arg5[%c0_14, %c0_15] : memref<128x512xbf16, #tpu.memory_space<vmem>>, vector<128x512xbf16>
    %cst_16 = arith.constant dense<0.000000e+00> : vector<8x512xf32>
    %18 = tpu.matmul %16, %17, %cst_16 {dimension_numbers = #tpu.dot_dimension_numbers<[1], [0], [0], [1], [0, 0, 1, 1], [], []>} : vector<8x128xbf16>, vector<128x512xbf16>, vector<8x512xf32> -> vector<8x512xf32>
    %19 = arith.addf %13, %18 : vector<8x512xf32>
    %20 = vector.extract_strided_slice %19 {offsets = [0, 0], sizes = [8, 256], strides = [1, 1]} : vector<8x512xf32> to vector<8x256xf32>
    %21 = arith.negf %20 : vector<8x256xf32>
    %22 = math.exp %21 : vector<8x256xf32>
    %cst_17 = arith.constant 1.000000e+00 : f32
    %23 = vector.broadcast %cst_17 : f32 to vector<8x256xf32>
    %24 = arith.addf %23, %22 : vector<8x256xf32>
    %25 = arith.divf %23, %24 : vector<8x256xf32>
    %26 = vector.extract_strided_slice %25 {offsets = [0, 0], sizes = [8, 128], strides = [1, 1]} : vector<8x256xf32> to vector<8x128xf32>
    %27 = vector.extract_strided_slice %25 {offsets = [0, 128], sizes = [8, 128], strides = [1, 1]} : vector<8x256xf32> to vector<8x128xf32>
    %28 = vector.extract_strided_slice %19 {offsets = [0, 256], sizes = [8, 128], strides = [1, 1]} : vector<8x512xf32> to vector<8x128xf32>
    %29 = math.tanh %28 : vector<8x128xf32>
    %30 = vector.extract_strided_slice %19 {offsets = [0, 384], sizes = [8, 128], strides = [1, 1]} : vector<8x512xf32> to vector<8x128xf32>
    %31 = arith.negf %30 : vector<8x128xf32>
    %32 = math.exp %31 : vector<8x128xf32>
    %cst_18 = arith.constant 1.000000e+00 : f32
    %33 = vector.broadcast %cst_18 : f32 to vector<8x128xf32>
    %34 = arith.addf %33, %32 : vector<8x128xf32>
    %35 = arith.divf %33, %34 : vector<8x128xf32>
    %36 = arith.mulf %27, %15 : vector<8x128xf32>
    %37 = arith.mulf %26, %29 : vector<8x128xf32>
    %38 = arith.addf %36, %37 : vector<8x128xf32>
    %39 = math.tanh %38 : vector<8x128xf32>
    %40 = arith.mulf %35, %39 : vector<8x128xf32>
    %41 = arith.index_cast %c0_i32_13 : i32 to index
    %c0_19 = arith.constant 0 : index
    %c0_20 = arith.constant 0 : index
    %42 = vector.load %arg10[%41, %c0_19, %c0_20] : memref<8x8x128xf32, #tpu.memory_space<vmem>>, vector<1x8x128xf32>
    %43 = vector.shape_cast %42 : vector<1x8x128xf32> to vector<8x128xf32>
    %44 = vector.shape_cast %40 : vector<8x128xf32> to vector<1x8x128xf32>
    tpu.vector_store %arg10[%41, %c0_19, %c0_20], %44 {strides = array<i32>} : memref<8x8x128xf32, #tpu.memory_space<vmem>>, vector<1x8x128xf32>,
    %c1_i32 = arith.constant 1 : i32
    %45 = arith.truncf %40 : vector<8x128xf32> to vector<8x128xbf16>
    %c0_21 = arith.constant 0 : index
    %c0_22 = arith.constant 0 : index
    %46 = vector.load %arg5[%c0_21, %c0_22] : memref<128x512xbf16, #tpu.memory_space<vmem>>, vector<128x512xbf16>
    %cst_23 = arith.constant dense<0.000000e+00> : vector<8x512xf32>
    %47 = tpu.matmul %45, %46, %cst_23 {dimension_numbers = #tpu.dot_dimension_numbers<[1], [0], [0], [1], [0, 0, 1, 1], [], []>} : vector<8x128xbf16>, vector<128x512xbf16>, vector<8x512xf32> -> vector<8x512xf32>
    %48 = arith.addf %13, %47 : vector<8x512xf32>
    %49 = vector.extract_strided_slice %48 {offsets = [0, 0], sizes = [8, 256], strides = [1, 1]} : vector<8x512xf32> to vector<8x256xf32>
    %50 = arith.negf %49 : vector<8x256xf32>
    %51 = math.exp %50 : vector<8x256xf32>
    %cst_24 = arith.constant 1.000000e+00 : f32
    %52 = vector.broadcast %cst_24 : f32 to vector<8x256xf32>
    %53 = arith.addf %52, %51 : vector<8x256xf32>
    %54 = arith.divf %52, %53 : vector<8x256xf32>
    %55 = vector.extract_strided_slice %54 {offsets = [0, 0], sizes = [8, 128], strides = [1, 1]} : vector<8x256xf32> to vector<8x128xf32>
    %56 = vector.extract_strided_slice %54 {offsets = [0, 128], sizes = [8, 128], strides = [1, 1]} : vector<8x256xf32> to vector<8x128xf32>
    %57 = vector.extract_strided_slice %48 {offsets = [0, 256], sizes = [8, 128], strides = [1, 1]} : vector<8x512xf32> to vector<8x128xf32>
    %58 = math.tanh %57 : vector<8x128xf32>
    %59 = vector.extract_strided_slice %48 {offsets = [0, 384], sizes = [8, 128], strides = [1, 1]} : vector<8x512xf32> to vector<8x128xf32>
    %60 = arith.negf %59 : vector<8x128xf32>
    %61 = math.exp %60 : vector<8x128xf32>
    %cst_25 = arith.constant 1.000000e+00 : f32
    %62 = vector.broadcast %cst_25 : f32 to vector<8x128xf32>
    %63 = arith.addf %62, %61 : vector<8x128xf32>
    %64 = arith.divf %62, %63 : vector<8x128xf32>
    %65 = arith.mulf %56, %38 : vector<8x128xf32>
    %66 = arith.mulf %55, %58 : vector<8x128xf32>
    %67 = arith.addf %65, %66 : vector<8x128xf32>
    %68 = math.tanh %67 : vector<8x128xf32>
    %69 = arith.mulf %64, %68 : vector<8x128xf32>
    %70 = arith.index_cast %c1_i32 : i32 to index
    %c0_26 = arith.constant 0 : index
    %c0_27 = arith.constant 0 : index
    %71 = vector.load %arg10[%70, %c0_26, %c0_27] : memref<8x8x128xf32, #tpu.memory_space<vmem>>, vector<1x8x128xf32>
    %72 = vector.shape_cast %71 : vector<1x8x128xf32> to vector<8x128xf32>
    %73 = vector.shape_cast %69 : vector<8x128xf32> to vector<1x8x128xf32>
    tpu.vector_store %arg10[%70, %c0_26, %c0_27], %73 {strides = array<i32>} : memref<8x8x128xf32, #tpu.memory_space<vmem>>, vector<1x8x128xf32>,
    %c2_i32 = arith.constant 2 : i32
    %74 = arith.truncf %69 : vector<8x128xf32> to vector<8x128xbf16>
    %c0_28 = arith.constant 0 : index
    %c0_29 = arith.constant 0 : index
    %75 = vector.load %arg5[%c0_28, %c0_29] : memref<128x512xbf16, #tpu.memory_space<vmem>>, vector<128x512xbf16>
    %cst_30 = arith.constant dense<0.000000e+00> : vector<8x512xf32>
    %76 = tpu.matmul %74, %75, %cst_30 {dimension_numbers = #tpu.dot_dimension_numbers<[1], [0], [0], [1], [0, 0, 1, 1], [], []>} : vector<8x128xbf16>, vector<128x512xbf16>, vector<8x512xf32> -> vector<8x512xf32>
    %77 = arith.addf %13, %76 : vector<8x512xf32>
    %78 = vector.extract_strided_slice %77 {offsets = [0, 0], sizes = [8, 256], strides = [1, 1]} : vector<8x512xf32> to vector<8x256xf32>
    %79 = arith.negf %78 : vector<8x256xf32>
    %80 = math.exp %79 : vector<8x256xf32>
    %cst_31 = arith.constant 1.000000e+00 : f32
    %81 = vector.broadcast %cst_31 : f32 to vector<8x256xf32>
    %82 = arith.addf %81, %80 : vector<8x256xf32>
    %83 = arith.divf %81, %82 : vector<8x256xf32>
    %84 = vector.extract_strided_slice %83 {offsets = [0, 0], sizes = [8, 128], strides = [1, 1]} : vector<8x256xf32> to vector<8x128xf32>
    %85 = vector.extract_strided_slice %83 {offsets = [0, 128], sizes = [8, 128], strides = [1, 1]} : vector<8x256xf32> to vector<8x128xf32>
    %86 = vector.extract_strided_slice %77 {offsets = [0, 256], sizes = [8, 128], strides = [1, 1]} : vector<8x512xf32> to vector<8x128xf32>
    %87 = math.tanh %86 : vector<8x128xf32>
    %88 = vector.extract_strided_slice %77 {offsets = [0, 384], sizes = [8, 128], strides = [1, 1]} : vector<8x512xf32> to vector<8x128xf32>
    %89 = arith.negf %88 : vector<8x128xf32>
    %90 = math.exp %89 : vector<8x128xf32>
    %cst_32 = arith.constant 1.000000e+00 : f32
    %91 = vector.broadcast %cst_32 : f32 to vector<8x128xf32>
    %92 = arith.addf %91, %90 : vector<8x128xf32>
    %93 = arith.divf %91, %92 : vector<8x128xf32>
    %94 = arith.mulf %85, %67 : vector<8x128xf32>
    %95 = arith.mulf %84, %87 : vector<8x128xf32>
    %96 = arith.addf %94, %95 : vector<8x128xf32>
    %97 = math.tanh %96 : vector<8x128xf32>
    %98 = arith.mulf %93, %97 : vector<8x128xf32>
    %99 = arith.index_cast %c2_i32 : i32 to index
    %c0_33 = arith.constant 0 : index
    %c0_34 = arith.constant 0 : index
    %100 = vector.load %arg10[%99, %c0_33, %c0_34] : memref<8x8x128xf32, #tpu.memory_space<vmem>>, vector<1x8x128xf32>
    %101 = vector.shape_cast %100 : vector<1x8x128xf32> to vector<8x128xf32>
    %102 = vector.shape_cast %98 : vector<8x128xf32> to vector<1x8x128xf32>
    tpu.vector_store %arg10[%99, %c0_33, %c0_34], %102 {strides = array<i32>} : memref<8x8x128xf32, #tpu.memory_space<vmem>>, vector<1x8x128xf32>,
    %c3_i32 = arith.constant 3 : i32
    %103 = arith.truncf %98 : vector<8x128xf32> to vector<8x128xbf16>
    %c0_35 = arith.constant 0 : index
    %c0_36 = arith.constant 0 : index
    %104 = vector.load %arg5[%c0_35, %c0_36] : memref<128x512xbf16, #tpu.memory_space<vmem>>, vector<128x512xbf16>
    %cst_37 = arith.constant dense<0.000000e+00> : vector<8x512xf32>
    %105 = tpu.matmul %103, %104, %cst_37 {dimension_numbers = #tpu.dot_dimension_numbers<[1], [0], [0], [1], [0, 0, 1, 1], [], []>} : vector<8x128xbf16>, vector<128x512xbf16>, vector<8x512xf32> -> vector<8x512xf32>
    %106 = arith.addf %13, %105 : vector<8x512xf32>
    %107 = vector.extract_strided_slice %106 {offsets = [0, 0], sizes = [8, 256], strides = [1, 1]} : vector<8x512xf32> to vector<8x256xf32>
    %108 = arith.negf %107 : vector<8x256xf32>
    %109 = math.exp %108 : vector<8x256xf32>
    %cst_38 = arith.constant 1.000000e+00 : f32
    %110 = vector.broadcast %cst_38 : f32 to vector<8x256xf32>
    %111 = arith.addf %110, %109 : vector<8x256xf32>
    %112 = arith.divf %110, %111 : vector<8x256xf32>
    %113 = vector.extract_strided_slice %112 {offsets = [0, 0], sizes = [8, 128], strides = [1, 1]} : vector<8x256xf32> to vector<8x128xf32>
    %114 = vector.extract_strided_slice %112 {offsets = [0, 128], sizes = [8, 128], strides = [1, 1]} : vector<8x256xf32> to vector<8x128xf32>
    %115 = vector.extract_strided_slice %106 {offsets = [0, 256], sizes = [8, 128], strides = [1, 1]} : vector<8x512xf32> to vector<8x128xf32>
    %116 = math.tanh %115 : vector<8x128xf32>
    %117 = vector.extract_strided_slice %106 {offsets = [0, 384], sizes = [8, 128], strides = [1, 1]} : vector<8x512xf32> to vector<8x128xf32>
    %118 = arith.negf %117 : vector<8x128xf32>
    %119 = math.exp %118 : vector<8x128xf32>
    %cst_39 = arith.constant 1.000000e+00 : f32
    %120 = vector.broadcast %cst_39 : f32 to vector<8x128xf32>
    %121 = arith.addf %120, %119 : vector<8x128xf32>
    %122 = arith.divf %120, %121 : vector<8x128xf32>
    %123 = arith.mulf %114, %96 : vector<8x128xf32>
    %124 = arith.mulf %113, %116 : vector<8x128xf32>
    %125 = arith.addf %123, %124 : vector<8x128xf32>
    %126 = math.tanh %125 : vector<8x128xf32>
    %127 = arith.mulf %122, %126 : vector<8x128xf32>
    %128 = arith.index_cast %c3_i32 : i32 to index
    %c0_40 = arith.constant 0 : index
    %c0_41 = arith.constant 0 : index
    %129 = vector.load %arg10[%128, %c0_40, %c0_41] : memref<8x8x128xf32, #tpu.memory_space<vmem>>, vector<1x8x128xf32>
    %130 = vector.shape_cast %129 : vector<1x8x128xf32> to vector<8x128xf32>
    %131 = vector.shape_cast %127 : vector<8x128xf32> to vector<1x8x128xf32>
    tpu.vector_store %arg10[%128, %c0_40, %c0_41], %131 {strides = array<i32>} : memref<8x8x128xf32, #tpu.memory_space<vmem>>, vector<1x8x128xf32>,
    %c4_i32 = arith.constant 4 : i32
    %132 = arith.truncf %127 : vector<8x128xf32> to vector<8x128xbf16>
    %c0_42 = arith.constant 0 : index
    %c0_43 = arith.constant 0 : index
    %133 = vector.load %arg5[%c0_42, %c0_43] : memref<128x512xbf16, #tpu.memory_space<vmem>>, vector<128x512xbf16>
    %cst_44 = arith.constant dense<0.000000e+00> : vector<8x512xf32>
    %134 = tpu.matmul %132, %133, %cst_44 {dimension_numbers = #tpu.dot_dimension_numbers<[1], [0], [0], [1], [0, 0, 1, 1], [], []>} : vector<8x128xbf16>, vector<128x512xbf16>, vector<8x512xf32> -> vector<8x512xf32>
    %135 = arith.addf %13, %134 : vector<8x512xf32>
    %136 = vector.extract_strided_slice %135 {offsets = [0, 0], sizes = [8, 256], strides = [1, 1]} : vector<8x512xf32> to vector<8x256xf32>
    %137 = arith.negf %136 : vector<8x256xf32>
    %138 = math.exp %137 : vector<8x256xf32>
    %cst_45 = arith.constant 1.000000e+00 : f32
    %139 = vector.broadcast %cst_45 : f32 to vector<8x256xf32>
    %140 = arith.addf %139, %138 : vector<8x256xf32>
    %141 = arith.divf %139, %140 : vector<8x256xf32>
    %142 = vector.extract_strided_slice %141 {offsets = [0, 0], sizes = [8, 128], strides = [1, 1]} : vector<8x256xf32> to vector<8x128xf32>
    %143 = vector.extract_strided_slice %141 {offsets = [0, 128], sizes = [8, 128], strides = [1, 1]} : vector<8x256xf32> to vector<8x128xf32>
    %144 = vector.extract_strided_slice %135 {offsets = [0, 256], sizes = [8, 128], strides = [1, 1]} : vector<8x512xf32> to vector<8x128xf32>
    %145 = math.tanh %144 : vector<8x128xf32>
    %146 = vector.extract_strided_slice %135 {offsets = [0, 384], sizes = [8, 128], strides = [1, 1]} : vector<8x512xf32> to vector<8x128xf32>
    %147 = arith.negf %146 : vector<8x128xf32>
    %148 = math.exp %147 : vector<8x128xf32>
    %cst_46 = arith.constant 1.000000e+00 : f32
    %149 = vector.broadcast %cst_46 : f32 to vector<8x128xf32>
    %150 = arith.addf %149, %148 : vector<8x128xf32>
    %151 = arith.divf %149, %150 : vector<8x128xf32>
    %152 = arith.mulf %143, %125 : vector<8x128xf32>
    %153 = arith.mulf %142, %145 : vector<8x128xf32>
    %154 = arith.addf %152, %153 : vector<8x128xf32>
    %155 = math.tanh %154 : vector<8x128xf32>
    %156 = arith.mulf %151, %155 : vector<8x128xf32>
    %157 = arith.index_cast %c4_i32 : i32 to index
    %c0_47 = arith.constant 0 : index
    %c0_48 = arith.constant 0 : index
    %158 = vector.load %arg10[%157, %c0_47, %c0_48] : memref<8x8x128xf32, #tpu.memory_space<vmem>>, vector<1x8x128xf32>
    %159 = vector.shape_cast %158 : vector<1x8x128xf32> to vector<8x128xf32>
    %160 = vector.shape_cast %156 : vector<8x128xf32> to vector<1x8x128xf32>
    tpu.vector_store %arg10[%157, %c0_47, %c0_48], %160 {strides = array<i32>} : memref<8x8x128xf32, #tpu.memory_space<vmem>>, vector<1x8x128xf32>,
    %c5_i32 = arith.constant 5 : i32
    %161 = arith.truncf %156 : vector<8x128xf32> to vector<8x128xbf16>
    %c0_49 = arith.constant 0 : index
    %c0_50 = arith.constant 0 : index
    %162 = vector.load %arg5[%c0_49, %c0_50] : memref<128x512xbf16, #tpu.memory_space<vmem>>, vector<128x512xbf16>
    %cst_51 = arith.constant dense<0.000000e+00> : vector<8x512xf32>
    %163 = tpu.matmul %161, %162, %cst_51 {dimension_numbers = #tpu.dot_dimension_numbers<[1], [0], [0], [1], [0, 0, 1, 1], [], []>} : vector<8x128xbf16>, vector<128x512xbf16>, vector<8x512xf32> -> vector<8x512xf32>
    %164 = arith.addf %13, %163 : vector<8x512xf32>
    %165 = vector.extract_strided_slice %164 {offsets = [0, 0], sizes = [8, 256], strides = [1, 1]} : vector<8x512xf32> to vector<8x256xf32>
    %166 = arith.negf %165 : vector<8x256xf32>
    %167 = math.exp %166 : vector<8x256xf32>
    %cst_52 = arith.constant 1.000000e+00 : f32
    %168 = vector.broadcast %cst_52 : f32 to vector<8x256xf32>
    %169 = arith.addf %168, %167 : vector<8x256xf32>
    %170 = arith.divf %168, %169 : vector<8x256xf32>
    %171 = vector.extract_strided_slice %170 {offsets = [0, 0], sizes = [8, 128], strides = [1, 1]} : vector<8x256xf32> to vector<8x128xf32>
    %172 = vector.extract_strided_slice %170 {offsets = [0, 128], sizes = [8, 128], strides = [1, 1]} : vector<8x256xf32> to vector<8x128xf32>
    %173 = vector.extract_strided_slice %164 {offsets = [0, 256], sizes = [8, 128], strides = [1, 1]} : vector<8x512xf32> to vector<8x128xf32>
    %174 = math.tanh %173 : vector<8x128xf32>
    %175 = vector.extract_strided_slice %164 {offsets = [0, 384], sizes = [8, 128], strides = [1, 1]} : vector<8x512xf32> to vector<8x128xf32>
    %176 = arith.negf %175 : vector<8x128xf32>
    %177 = math.exp %176 : vector<8x128xf32>
    %cst_53 = arith.constant 1.000000e+00 : f32
    %178 = vector.broadcast %cst_53 : f32 to vector<8x128xf32>
    %179 = arith.addf %178, %177 : vector<8x128xf32>
    %180 = arith.divf %178, %179 : vector<8x128xf32>
    %181 = arith.mulf %172, %154 : vector<8x128xf32>
    %182 = arith.mulf %171, %174 : vector<8x128xf32>
    %183 = arith.addf %181, %182 : vector<8x128xf32>
    %184 = math.tanh %183 : vector<8x128xf32>
    %185 = arith.mulf %180, %184 : vector<8x128xf32>
    %186 = arith.index_cast %c5_i32 : i32 to index
    %c0_54 = arith.constant 0 : index
    %c0_55 = arith.constant 0 : index
    %187 = vector.load %arg10[%186, %c0_54, %c0_55] : memref<8x8x128xf32, #tpu.memory_space<vmem>>, vector<1x8x128xf32>
    %188 = vector.shape_cast %187 : vector<1x8x128xf32> to vector<8x128xf32>
    %189 = vector.shape_cast %185 : vector<8x128xf32> to vector<1x8x128xf32>
    tpu.vector_store %arg10[%186, %c0_54, %c0_55], %189 {strides = array<i32>} : memref<8x8x128xf32, #tpu.memory_space<vmem>>, vector<1x8x128xf32>,
    %c6_i32 = arith.constant 6 : i32
    %190 = arith.truncf %185 : vector<8x128xf32> to vector<8x128xbf16>
    %c0_56 = arith.constant 0 : index
    %c0_57 = arith.constant 0 : index
    %191 = vector.load %arg5[%c0_56, %c0_57] : memref<128x512xbf16, #tpu.memory_space<vmem>>, vector<128x512xbf16>
    %cst_58 = arith.constant dense<0.000000e+00> : vector<8x512xf32>
    %192 = tpu.matmul %190, %191, %cst_58 {dimension_numbers = #tpu.dot_dimension_numbers<[1], [0], [0], [1], [0, 0, 1, 1], [], []>} : vector<8x128xbf16>, vector<128x512xbf16>, vector<8x512xf32> -> vector<8x512xf32>
    %193 = arith.addf %13, %192 : vector<8x512xf32>
    %194 = vector.extract_strided_slice %193 {offsets = [0, 0], sizes = [8, 256], strides = [1, 1]} : vector<8x512xf32> to vector<8x256xf32>
    %195 = arith.negf %194 : vector<8x256xf32>
    %196 = math.exp %195 : vector<8x256xf32>
    %cst_59 = arith.constant 1.000000e+00 : f32
    %197 = vector.broadcast %cst_59 : f32 to vector<8x256xf32>
    %198 = arith.addf %197, %196 : vector<8x256xf32>
    %199 = arith.divf %197, %198 : vector<8x256xf32>
    %200 = vector.extract_strided_slice %199 {offsets = [0, 0], sizes = [8, 128], strides = [1, 1]} : vector<8x256xf32> to vector<8x128xf32>
    %201 = vector.extract_strided_slice %199 {offsets = [0, 128], sizes = [8, 128], strides = [1, 1]} : vector<8x256xf32> to vector<8x128xf32>
    %202 = vector.extract_strided_slice %193 {offsets = [0, 256], sizes = [8, 128], strides = [1, 1]} : vector<8x512xf32> to vector<8x128xf32>
    %203 = math.tanh %202 : vector<8x128xf32>
    %204 = vector.extract_strided_slice %193 {offsets = [0, 384], sizes = [8, 128], strides = [1, 1]} : vector<8x512xf32> to vector<8x128xf32>
    %205 = arith.negf %204 : vector<8x128xf32>
    %206 = math.exp %205 : vector<8x128xf32>
    %cst_60 = arith.constant 1.000000e+00 : f32
    %207 = vector.broadcast %cst_60 : f32 to vector<8x128xf32>
    %208 = arith.addf %207, %206 : vector<8x128xf32>
    %209 = arith.divf %207, %208 : vector<8x128xf32>
    %210 = arith.mulf %201, %183 : vector<8x128xf32>
    %211 = arith.mulf %200, %203 : vector<8x128xf32>
    %212 = arith.addf %210, %211 : vector<8x128xf32>
    %213 = math.tanh %212 : vector<8x128xf32>
    %214 = arith.mulf %209, %213 : vector<8x128xf32>
    %215 = arith.index_cast %c6_i32 : i32 to index
    %c0_61 = arith.constant 0 : index
    %c0_62 = arith.constant 0 : index
    %216 = vector.load %arg10[%215, %c0_61, %c0_62] : memref<8x8x128xf32, #tpu.memory_space<vmem>>, vector<1x8x128xf32>
    %217 = vector.shape_cast %216 : vector<1x8x128xf32> to vector<8x128xf32>
    %218 = vector.shape_cast %214 : vector<8x128xf32> to vector<1x8x128xf32>
    tpu.vector_store %arg10[%215, %c0_61, %c0_62], %218 {strides = array<i32>} : memref<8x8x128xf32, #tpu.memory_space<vmem>>, vector<1x8x128xf32>,
    %c7_i32 = arith.constant 7 : i32
    %219 = arith.truncf %214 : vector<8x128xf32> to vector<8x128xbf16>
    %c0_63 = arith.constant 0 : index
    %c0_64 = arith.constant 0 : index
    %220 = vector.load %arg5[%c0_63, %c0_64] : memref<128x512xbf16, #tpu.memory_space<vmem>>, vector<128x512xbf16>
    %cst_65 = arith.constant dense<0.000000e+00> : vector<8x512xf32>
    %221 = tpu.matmul %219, %220, %cst_65 {dimension_numbers = #tpu.dot_dimension_numbers<[1], [0], [0], [1], [0, 0, 1, 1], [], []>} : vector<8x128xbf16>, vector<128x512xbf16>, vector<8x512xf32> -> vector<8x512xf32>
    %222 = arith.addf %13, %221 : vector<8x512xf32>
    %223 = vector.extract_strided_slice %222 {offsets = [0, 0], sizes = [8, 256], strides = [1, 1]} : vector<8x512xf32> to vector<8x256xf32>
    %224 = arith.negf %223 : vector<8x256xf32>
    %225 = math.exp %224 : vector<8x256xf32>
    %cst_66 = arith.constant 1.000000e+00 : f32
    %226 = vector.broadcast %cst_66 : f32 to vector<8x256xf32>
    %227 = arith.addf %226, %225 : vector<8x256xf32>
    %228 = arith.divf %226, %227 : vector<8x256xf32>
    %229 = vector.extract_strided_slice %228 {offsets = [0, 0], sizes = [8, 128], strides = [1, 1]} : vector<8x256xf32> to vector<8x128xf32>
    %230 = vector.extract_strided_slice %228 {offsets = [0, 128], sizes = [8, 128], strides = [1, 1]} : vector<8x256xf32> to vector<8x128xf32>
    %231 = vector.extract_strided_slice %222 {offsets = [0, 256], sizes = [8, 128], strides = [1, 1]} : vector<8x512xf32> to vector<8x128xf32>
    %232 = math.tanh %231 : vector<8x128xf32>
    %233 = vector.extract_strided_slice %222 {offsets = [0, 384], sizes = [8, 128], strides = [1, 1]} : vector<8x512xf32> to vector<8x128xf32>
    %234 = arith.negf %233 : vector<8x128xf32>
    %235 = math.exp %234 : vector<8x128xf32>
    %cst_67 = arith.constant 1.000000e+00 : f32
    %236 = vector.broadcast %cst_67 : f32 to vector<8x128xf32>
    %237 = arith.addf %236, %235 : vector<8x128xf32>
    %238 = arith.divf %236, %237 : vector<8x128xf32>
    %239 = arith.mulf %230, %212 : vector<8x128xf32>
    %240 = arith.mulf %229, %232 : vector<8x128xf32>
    %241 = arith.addf %239, %240 : vector<8x128xf32>
    %242 = math.tanh %241 : vector<8x128xf32>
    %243 = arith.mulf %238, %242 : vector<8x128xf32>
    %244 = arith.index_cast %c7_i32 : i32 to index
    %c0_68 = arith.constant 0 : index
    %c0_69 = arith.constant 0 : index
    %245 = vector.load %arg10[%244, %c0_68, %c0_69] : memref<8x8x128xf32, #tpu.memory_space<vmem>>, vector<1x8x128xf32>
    %246 = vector.shape_cast %245 : vector<1x8x128xf32> to vector<8x128xf32>
    %247 = vector.shape_cast %243 : vector<8x128xf32> to vector<1x8x128xf32>
    tpu.vector_store %arg10[%244, %c0_68, %c0_69], %247 {strides = array<i32>} : memref<8x8x128xf32, #tpu.memory_space<vmem>>, vector<1x8x128xf32>,
    %c8_i32 = arith.constant 8 : i32
    %c0_70 = arith.constant 0 : index
    %c0_71 = arith.constant 0 : index
    %c0_72 = arith.constant 0 : index
    %248 = vector.load %arg10[%c0_70, %c0_71, %c0_72] : memref<8x8x128xf32, #tpu.memory_space<vmem>>, vector<8x8x128xf32>
    %249 = vector.shape_cast %248 : vector<8x8x128xf32> to vector<64x128xf32>
    %250 = arith.truncf %249 : vector<64x128xf32> to vector<64x128xbf16>
    %c0_73 = arith.constant 0 : index
    %c0_74 = arith.constant 0 : index
    %251 = vector.load %arg7[%c0_73, %c0_74] : memref<128x128xbf16, #tpu.memory_space<vmem>>, vector<128x128xbf16>
    %cst_75 = arith.constant dense<0.000000e+00> : vector<64x128xf32>
    %252 = tpu.matmul %250, %251, %cst_75 {dimension_numbers = #tpu.dot_dimension_numbers<[1], [0], [0], [1], [0, 0, 1, 1], [], []>} : vector<64x128xbf16>, vector<128x128xbf16>, vector<64x128xf32> -> vector<64x128xf32>
    %c0_76 = arith.constant 0 : index
    %c0_77 = arith.constant 0 : index
    %253 = vector.load %arg8[%c0_76, %c0_77] : memref<1x128xf32, #tpu.memory_space<vmem>>, vector<1x128xf32>
    %254 = vector.broadcast %253 : vector<1x128xf32> to vector<64x128xf32>
    %255 = arith.addf %252, %254 : vector<64x128xf32>
    %256 = vector.shape_cast %255 : vector<64x128xf32> to vector<8x8x128xf32>
    %c8_i32_78 = arith.constant 8 : i32
    %257 = arith.muli %c0_i32, %c8_i32_78 : i32
    %258 = arith.index_cast %257 : i32 to index
    %c0_79 = arith.constant 0 : index
    %c0_80 = arith.constant 0 : index
    %259 = vector.load %arg9[%258, %c0_79, %c0_80] : memref<8x8x128xf32, #tpu.memory_space<vmem>>, vector<8x8x128xf32>
    tpu.vector_store %arg9[%258, %c0_79, %c0_80], %256 {strides = array<i32>} : memref<8x8x128xf32, #tpu.memory_space<vmem>>, vector<8x8x128xf32>,
    %c1_i32_81 = arith.constant 1 : i32
    return
  }
  func.func @transform_0(%arg0: i32) -> (i32, i32) {
    %c0_i32 = arith.constant 0 : i32
    %c0_i32_0 = arith.constant 0 : i32
    return %arg0, %c0_i32 : i32, i32
  }
  func.func @transform_1(%arg0: i32) -> (i32, i32) {
    %c0_i32 = arith.constant 0 : i32
    %c0_i32_0 = arith.constant 0 : i32
    %c0_i32_1 = arith.constant 0 : i32
    return %c0_i32, %c0_i32_0 : i32, i32
  }
  func.func @transform_2(%arg0: i32) -> (i32, i32) {
    %c0_i32 = arith.constant 0 : i32
    %c0_i32_0 = arith.constant 0 : i32
    %c0_i32_1 = arith.constant 0 : i32
    return %c0_i32, %c0_i32_0 : i32, i32
  }
  func.func @transform_3(%arg0: i32) -> (i32, i32) {
    %c0_i32 = arith.constant 0 : i32
    %c0_i32_0 = arith.constant 0 : i32
    %c0_i32_1 = arith.constant 0 : i32
    return %c0_i32, %c0_i32_0 : i32, i32
  }
  func.func @transform_4(%arg0: i32) -> (i32, i32) {
    %c0_i32 = arith.constant 0 : i32
    %c0_i32_0 = arith.constant 0 : i32
    %c0_i32_1 = arith.constant 0 : i32
    return %c0_i32, %c0_i32_0 : i32, i32
  }
  func.func @transform_5(%arg0: i32) -> (i32, i32) {
    %c0_i32 = arith.constant 0 : i32
    %c0_i32_0 = arith.constant 0 : i32
    %c0_i32_1 = arith.constant 0 : i32
    return %c0_i32, %c0_i32_0 : i32, i32
  }
  func.func @transform_6(%arg0: i32) -> (i32, i32) {
    %c0_i32 = arith.constant 0 : i32
    %c0_i32_0 = arith.constant 0 : i32
    %c0_i32_1 = arith.constant 0 : i32
    return %c0_i32, %c0_i32_0 : i32, i32
  }
  func.func @transform_7(%arg0: i32) -> (i32, i32) {
    %c0_i32 = arith.constant 0 : i32
    %c0_i32_0 = arith.constant 0 : i32
    %c0_i32_1 = arith.constant 0 : i32
    return %c0_i32, %c0_i32_0 : i32, i32
  }
  func.func @transform_8(%arg0: i32) -> (i32, i32, i32) {
    %c0_i32 = arith.constant 0 : i32
    %c0_i32_0 = arith.constant 0 : i32
    %c0_i32_1 = arith.constant 0 : i32
    return %c0_i32, %arg0, %c0_i32_0 : i32, i32, i32
  }
}

</mosaic_0001>

<llo_original>
// kernel: tpu_custom_call.1
$region0: #{tpu_custom_call.1}
  #allocation0 [shape = 'u32[]', space=smem, size = 0x4, offset = 0x4, fixed_abs, tag = 'smem constant byte address 0x4 - core index']
  #allocation1 [shape = 'u32[144,128]{1,0:T(1,128)}', space=vmem, size = 0x12000, scoped, tag = 'internal scratch']
  #allocation2 [shape = 'f32[8,8,128]{2,1,0:T(8,128)}', space=vmem, size = 0x8000, scoped, tag = 'scratch operand']
  %s0 = inlined_call_operand.hbm [shape: f32[8,8], index: 0, kind: input, shape index: {}]
  %s1 = inlined_call_operand.hbm [shape: f32[8,128], index: 1, kind: input, shape index: {}]
  %s2 = inlined_call_operand.vmem [shape: f32[1,128], index: 2, kind: input, shape index: {}]
  %s3 = inlined_call_operand.hbm [shape: bf16[128,512], index: 3, kind: input, shape index: {}]
  %s4 = inlined_call_operand.hbm [shape: bf16[128,512], index: 4, kind: input, shape index: {}]
  %s5 = inlined_call_operand.vmem [shape: f32[1,512], index: 5, kind: input, shape index: {}]
  %s6 = inlined_call_operand.hbm [shape: bf16[128,128], index: 6, kind: input, shape index: {}]
  %s7 = inlined_call_operand.vmem [shape: f32[1,128], index: 7, kind: input, shape index: {}]
  %s8 = inlined_call_operand.hbm [shape: f32[8,8,128], index: 8, kind: output, shape index: {}]
  %s9 = sld [smem:[#allocation0]]
  $region62: #{tpu_custom_call.1} parent=0
    _
  %s11 = ssub.s32 1, %s9
  %s12 = scalar_select 0, %s11, %s9
  $region1: #{tpu_custom_call.1} parent=0
    #allocation3 [shape = 'u8[4096]{0}', space=vmem, size = 0x1000, scoped, tag = 'input window, operand 0, single buffered']
    #allocation4 [shape = 's32[1]{0}', space=sflag, size = 0x4, scoped, tag = 'scoped memory for tpu_custom_call.1']
    #allocation5 [shape = 's32[1]{0}', space=sflag, size = 0x4, scoped, tag = 'scoped memory for tpu_custom_call.1']
    #allocation6 [shape = 'u8[4096]{0}', space=vmem, size = 0x1000, scoped, tag = 'input window, operand 1, single buffered']
    #allocation7 [shape = 's32[1]{0}', space=sflag, size = 0x4, scoped, tag = 'scoped memory for tpu_custom_call.1']
    #allocation8 [shape = 'u8[131072]{0}', space=vmem, size = 0x20000, scoped, tag = 'input window, operand 3, single buffered']
    #allocation9 [shape = 'u8[131072]{0}', space=vmem, size = 0x20000, scoped, tag = 'input window, operand 4, single buffered']
    #allocation10 [shape = 's32[1]{0}', space=sflag, size = 0x4, scoped, tag = 'scoped memory for tpu_custom_call.1']
    #allocation11 [shape = 'u8[32768]{0}', space=vmem, size = 0x8000, scoped, tag = 'input window, operand 6, single buffered']
    #allocation12 [shape = 'u8[32768]{0}', space=vmem, size = 0x8000, scoped, tag = 'output window, operand 0, single buffered']
    %13 = vsyncpa [#allocation4], 0
    %14 = vsyncpa [#allocation7], 0
    %15 = vsyncpa [#allocation10], 0
    %16 = vsyncpa [#allocation5], 0
    // Predicated region
    $region2: #{tpu_custom_call.1} parent=1 // pred_check
      _
    $region3: #{tpu_custom_call.1} parent=1 // pred_check_branch
      %18 = sbr.rel (0) target = $region5
    $region4: #{tpu_custom_call.1} parent=1 // pred_region
      %s20 = ssub.s32 128, 128
      %21 = vsyncadd [#allocation4], %s20
      %s23 = sshll.u32 [#allocation3], 4
      %s24 = int_to_ptr.vmem [resolvable:$true] %s23
      %26 = dma.hbm_to_vmem [thread:$0]  %s0, 128, %s24, [#allocation4]
    $region5: #{tpu_custom_call.1} parent=1 // pred_fallthru
      _
    // Predicated region
    $region6: #{tpu_custom_call.1} parent=1 // pred_check
      _
    $region7: #{tpu_custom_call.1} parent=1 // pred_check_branch
      %28 = sbr.rel (0) target = $region9
    $region8: #{tpu_custom_call.1} parent=1 // pred_region
      %s30 = ssub.s32 128, 128
      %31 = vsyncadd [#allocation7], %s30
      %s33 = sshll.u32 [#allocation6], 4
      %s34 = int_to_ptr.vmem [resolvable:$true] %s33
      %36 = dma.hbm_to_vmem [thread:$0]  %s1, 128, %s34, [#allocation7]
    $region9: #{tpu_custom_call.1} parent=1 // pred_fallthru
      _
    // Predicated region
    $region10: #{tpu_custom_call.1} parent=1 // pred_check
      _
    $region11: #{tpu_custom_call.1} parent=1 // pred_check_branch
      %38 = sbr.rel (0) target = $region13
    $region12: #{tpu_custom_call.1} parent=1 // pred_region
      _
    $region13: #{tpu_custom_call.1} parent=1 // pred_fallthru
      _
    // Predicated region
    $region14: #{tpu_custom_call.1} parent=1 // pred_check
      _
    $region15: #{tpu_custom_call.1} parent=1 // pred_check_branch
      %40 = sbr.rel (0) target = $region17
    $region16: #{tpu_custom_call.1} parent=1 // pred_region
      %s42 = ssub.s32 4096, 4096
      %43 = vsyncadd [#allocation7], %s42
      %s44 = sshll.u32 [#allocation8], 4
      %s45 = int_to_ptr.vmem [resolvable:$true] %s44
      %50 = dma.hbm_to_vmem [thread:$0]  %s3, 4096, %s45, [#allocation7], 256, 256, 16
    $region17: #{tpu_custom_call.1} parent=1 // pred_fallthru
      _
    // Predicated region
    $region18: #{tpu_custom_call.1} parent=1 // pred_check
      _
    $region19: #{tpu_custom_call.1} parent=1 // pred_check_branch
      %52 = sbr.rel (0) target = $region21
    $region20: #{tpu_custom_call.1} parent=1 // pred_region
      %s54 = ssub.s32 4096, 4096
      %55 = vsyncadd [#allocation10], %s54
      %s56 = sshll.u32 [#allocation9], 4
      %s57 = int_to_ptr.vmem [resolvable:$true] %s56
      %62 = dma.hbm_to_vmem [thread:$0]  %s4, 4096, %s57, [#allocation10], 256, 256, 16
    $region21: #{tpu_custom_call.1} parent=1 // pred_fallthru
      _
    // Predicated region
    $region22: #{tpu_custom_call.1} parent=1 // pred_check
      _
    $region23: #{tpu_custom_call.1} parent=1 // pred_check_branch
      %64 = sbr.rel (0) target = $region25
    $region24: #{tpu_custom_call.1} parent=1 // pred_region
      _
    $region25: #{tpu_custom_call.1} parent=1 // pred_fallthru
      _
    // Predicated region
    $region26: #{tpu_custom_call.1} parent=1 // pred_check
      _
    $region27: #{tpu_custom_call.1} parent=1 // pred_check_branch
      %66 = sbr.rel (0) target = $region29
    $region28: #{tpu_custom_call.1} parent=1 // pred_region
      %s68 = ssub.s32 1024, 1024
      %69 = vsyncadd [#allocation10], %s68
      %s70 = sshll.u32 [#allocation11], 4
      %s71 = int_to_ptr.vmem [resolvable:$true] %s70
      %76 = dma.hbm_to_vmem [thread:$0]  %s6, 1024, %s71, [#allocation10], 64, 64, 4
    $region29: #{tpu_custom_call.1} parent=1 // pred_fallthru
      _
    // Predicated region
    $region30: #{tpu_custom_call.1} parent=1 // pred_check
      _
    $region31: #{tpu_custom_call.1} parent=1 // pred_check_branch
      %78 = sbr.rel (0) target = $region33
    $region32: #{tpu_custom_call.1} parent=1 // pred_region
      _
    $region33: #{tpu_custom_call.1} parent=1 // pred_fallthru
      _
    // Predicated region
    $region34: #{tpu_custom_call.1} parent=1 // pred_check
      _
    $region35: #{tpu_custom_call.1} parent=1 // pred_check_branch
      %80 = sbr.rel (0) target = $region37
    $region36: #{tpu_custom_call.1} parent=1 // pred_region
      %81 = dma.done [#allocation4], 128
    $region37: #{tpu_custom_call.1} parent=1 // pred_fallthru
      _
    // Predicated region
    $region38: #{tpu_custom_call.1} parent=1 // pred_check
      _
    $region39: #{tpu_custom_call.1} parent=1 // pred_check_branch
      %83 = sbr.rel (0) target = $region41
    $region40: #{tpu_custom_call.1} parent=1 // pred_region
      %84 = dma.done [#allocation7], 128
    $region41: #{tpu_custom_call.1} parent=1 // pred_fallthru
      _
    // Predicated region
    $region42: #{tpu_custom_call.1} parent=1 // pred_check
      _
    $region43: #{tpu_custom_call.1} parent=1 // pred_check_branch
      %86 = sbr.rel (0) target = $region45
    $region44: #{tpu_custom_call.1} parent=1 // pred_region
      %87 = dma.done [#allocation7], 4096
    $region45: #{tpu_custom_call.1} parent=1 // pred_fallthru
      _
    // Predicated region
    $region46: #{tpu_custom_call.1} parent=1 // pred_check
      _
    $region47: #{tpu_custom_call.1} parent=1 // pred_check_branch
      %89 = sbr.rel (0) target = $region49
    $region48: #{tpu_custom_call.1} parent=1 // pred_region
      %90 = dma.done [#allocation10], 4096
    $region49: #{tpu_custom_call.1} parent=1 // pred_fallthru
      _
    // Predicated region
    $region50: #{tpu_custom_call.1} parent=1 // pred_check
      _
    $region51: #{tpu_custom_call.1} parent=1 // pred_check_branch
      %92 = sbr.rel (0) target = $region53
    $region52: #{tpu_custom_call.1} parent=1 // pred_region
      %93 = dma.done [#allocation10], 1024
    $region53: #{tpu_custom_call.1} parent=1 // pred_fallthru
      _
    %v95 = vld [vmem:[#allocation3] sm:$0xff]
    %v96 = vld [vmem:[#allocation6] sm:$0xff]
    %v97 = vld [vmem:[%s2] sm:$0x1]
    %v99 = vlaneseq
    %v100 = vshrl.u32 %v99, 7
    %v101 = vsub.s32 0, %v100
    %v102 = vrot.slane %v97, %v101
    %vm104 = vcmask 64512
    %v106 = vsel %vm104, %v95, 0
    %108 = vmatprep.subr.mxu0 0.0
    %109 = vmatpush1.msra.mxu0 0.0
    %110 = vmatprep.subr.mxu0 0.0
    %111 = vmatpush1.msra.mxu0 0.0
    %112 = vmatprep.subr.mxu0 0.0
    %113 = vmatpush1.msra.mxu0 0.0
    %114 = vmatprep.subr.mxu0 0.0
    %115 = vmatpush1.msra.mxu0 0.0
    %116 = vmatprep.subr.mxu0 0.0
    %117 = vmatpush1.msra.mxu0 0.0
    %118 = vmatprep.subr.mxu0 0.0
    %119 = vmatpush1.msra.mxu0 0.0
    %120 = vmatprep.subr.mxu0 0.0
    %121 = vmatpush1.msra.mxu0 0.0
    %122 = vmatprep.subr.mxu0 0.0
    %123 = vmatpush1.msra.mxu0 0.0
    %124 = vmatprep.subr.mxu0 0.0
    %125 = vmatpush1.msra.mxu0 0.0
    %126 = vmatprep.subr.mxu0 0.0
    %127 = vmatpush1.msra.mxu0 0.0
    %128 = vmatprep.subr.mxu0 0.0
    %129 = vmatpush1.msra.mxu0 0.0
    %130 = vmatprep.subr.mxu0 0.0
    %131 = vmatpush1.msra.mxu0 0.0
    %132 = vmatprep.subr.mxu0 0.0
    %133 = vmatpush1.msra.mxu0 0.0
    %134 = vmatprep.subr.mxu0 0.0
    %135 = vmatpush1.msra.mxu0 0.0
    %136 = vmatprep.subr.mxu0 0.0
    %137 = vmatpush1.msra.mxu0 0.0
    %138 = vmatprep.subr.mxu0 0.0
    %139 = vmatpush1.msra.mxu0 %v96
    %140 = vmatprep.subr.mxu0 0.0
    %141 = vmatpush2.msra.mxu0 0.0
    %142 = vmatprep.subr.mxu0 0.0
    %143 = vmatpush2.msra.mxu0 0.0
    %144 = vmatprep.subr.mxu0 0.0
    %145 = vmatpush2.msra.mxu0 0.0
    %146 = vmatprep.subr.mxu0 0.0
    %147 = vmatpush2.msra.mxu0 0.0
    %148 = vmatprep.subr.mxu0 0.0
    %149 = vmatpush2.msra.mxu0 0.0
    %150 = vmatprep.subr.mxu0 0.0
    %151 = vmatpush2.msra.mxu0 0.0
    %152 = vmatprep.subr.mxu0 0.0
    %153 = vmatpush2.msra.mxu0 0.0
    %154 = vmatprep.subr.mxu0 0.0
    %155 = vmatpush2.msra.mxu0 0.0
    %156 = vmatprep.subr.mxu0 0.0
    %157 = vmatpush2.msra.mxu0 0.0
    %158 = vmatprep.subr.mxu0 0.0
    %159 = vmatpush2.msra.mxu0 0.0
    %160 = vmatprep.subr.mxu0 0.0
    %161 = vmatpush2.msra.mxu0 0.0
    %162 = vmatprep.subr.mxu0 0.0
    %163 = vmatpush2.msra.mxu0 0.0
    %164 = vmatprep.subr.mxu0 0.0
    %165 = vmatpush2.msra.mxu0 0.0
    %166 = vmatprep.subr.mxu0 0.0
    %167 = vmatpush2.msra.mxu0 0.0
    %168 = vmatprep.subr.mxu0 0.0
    %169 = vmatpush2.msra.mxu0 0.0
    %170 = vmatprep.subr.mxu0 0.0
    %171 = vmatpush2.msra.mxu0 0.0
    %172 = vmatprep.mubr.f32.mxu0 0.0
    %173 = vmatmul.mubr.f32.gmra.mxu0 %v106
    %v174 = vpop.f32.mrf.mxu0
    %v175 = vadd.f32 %v102, %v174
    %v176 = vpop.f32.mrf.mxu0
    %177 = vdwg.mxu0
    %v178 = vmax.f32 %v175, 0.0
    %v179 = vpack.c.bf16 %v178, %v178
    %v180 = vld [vmem:[#allocation8] sm:$0xff]
    %v181 = vld [vmem:[#allocation8 + $0x8] sm:$0xff]
    %v182 = vld [vmem:[#allocation8 + $0x10] sm:$0xff]
    %v183 = vld [vmem:[#allocation8 + $0x18] sm:$0xff]
    %v184 = vld [vmem:[#allocation8 + $0x20] sm:$0xff]
    %v185 = vld [vmem:[#allocation8 + $0x28] sm:$0xff]
    %v186 = vld [vmem:[#allocation8 + $0x30] sm:$0xff]
    %v187 = vld [vmem:[#allocation8 + $0x38] sm:$0xff]
    %v188 = vld [vmem:[#allocation8 + $0x40] sm:$0xff]
    %v189 = vld [vmem:[#allocation8 + $0x48] sm:$0xff]
    %v190 = vld [vmem:[#allocation8 + $0x50] sm:$0xff]
    %v191 = vld [vmem:[#allocation8 + $0x58] sm:$0xff]
    %v192 = vld [vmem:[#allocation8 + $0x60] sm:$0xff]
    %v193 = vld [vmem:[#allocation8 + $0x68] sm:$0xff]
    %v194 = vld [vmem:[#allocation8 + $0x70] sm:$0xff]
    %v195 = vld [vmem:[#allocation8 + $0x78] sm:$0xff]
    %v196 = vld [vmem:[#allocation8 + $0x80] sm:$0xff]
    %v197 = vld [vmem:[#allocation8 + $0x88] sm:$0xff]
    %v198 = vld [vmem:[#allocation8 + $0x90] sm:$0xff]
    %v199 = vld [vmem:[#allocation8 + $0x98] sm:$0xff]
    %v200 = vld [vmem:[#allocation8 + $0xa0] sm:$0xff]
    %v201 = vld [vmem:[#allocation8 + $0xa8] sm:$0xff]
    %v202 = vld [vmem:[#allocation8 + $0xb0] sm:$0xff]
    %v203 = vld [vmem:[#allocation8 + $0xb8] sm:$0xff]
    %v204 = vld [vmem:[#allocation8 + $0xc0] sm:$0xff]
    %v205 = vld [vmem:[#allocation8 + $0xc8] sm:$0xff]
    %v206 = vld [vmem:[#allocation8 + $0xd0] sm:$0xff]
    %v207 = vld [vmem:[#allocation8 + $0xd8] sm:$0xff]
    %v208 = vld [vmem:[#allocation8 + $0xe0] sm:$0xff]
    %v209 = vld [vmem:[#allocation8 + $0xe8] sm:$0xff]
    %v210 = vld [vmem:[#allocation8 + $0xf0] sm:$0xff]
    %v211 = vld [vmem:[#allocation8 + $0xf8] sm:$0xff]
    %v212 = vld [vmem:[%s5] sm:$0xf]
    %v214 = vlaneseq
    %v215 = vshrl.u32 %v214, 7
    %v216 = vsub.s32 0, %v215
    %v217 = vrot.slane %v212, %v216
    %v218 = vlaneseq
    %v219 = vshrl.u32 %v218, 7
    %v220 = vsub.s32 1, %v219
    %v221 = vrot.slane %v212, %v220
    %v222 = vlaneseq
    %v223 = vshrl.u32 %v222, 7
    %v224 = vsub.s32 2, %v223
    %v225 = vrot.slane %v212, %v224
    %v226 = vlaneseq
    %v227 = vshrl.u32 %v226, 7
    %v228 = vsub.s32 3, %v227
    %v229 = vrot.slane %v212, %v228
    %v266 = vunpack.c.l.b16 %v180
    %v267 = vunpack.c.h.b16 %v180
    %v268 = vunpack.c.l.b16 %v181
    %v269 = vunpack.c.h.b16 %v181
    %v270 = vunpack.c.l.b16 %v182
    %v271 = vunpack.c.h.b16 %v182
    %v272 = vunpack.c.l.b16 %v183
    %v273 = vunpack.c.h.b16 %v183
    %v274 = vunpack.c.l.b16 %v184
    %v275 = vunpack.c.h.b16 %v184
    %v276 = vunpack.c.l.b16 %v185
    %v277 = vunpack.c.h.b16 %v185
    %v278 = vunpack.c.l.b16 %v186
    %v279 = vunpack.c.h.b16 %v186
    %v280 = vunpack.c.l.b16 %v187
    %v281 = vunpack.c.h.b16 %v187
    %v282 = vunpack.c.l.b16 %v188
    %v283 = vunpack.c.h.b16 %v188
    %v284 = vunpack.c.l.b16 %v189
    %v285 = vunpack.c.h.b16 %v189
    %v286 = vunpack.c.l.b16 %v190
    %v287 = vunpack.c.h.b16 %v190
    %v288 = vunpack.c.l.b16 %v191
    %v289 = vunpack.c.h.b16 %v191
    %v290 = vunpack.c.l.b16 %v192
    %v291 = vunpack.c.h.b16 %v192
    %v292 = vunpack.c.l.b16 %v193
    %v293 = vunpack.c.h.b16 %v193
    %v294 = vunpack.c.l.b16 %v194
    %v295 = vunpack.c.h.b16 %v194
    %v296 = vunpack.c.l.b16 %v195
    %v297 = vunpack.c.h.b16 %v195
    %v298 = vunpack.c.l.b16 %v196
    %v299 = vunpack.c.h.b16 %v196
    %v300 = vunpack.c.l.b16 %v197
    %v301 = vunpack.c.h.b16 %v197
    %v302 = vunpack.c.l.b16 %v198
    %v303 = vunpack.c.h.b16 %v198
    %v304 = vunpack.c.l.b16 %v199
    %v305 = vunpack.c.h.b16 %v199
    %v306 = vunpack.c.l.b16 %v200
    %v307 = vunpack.c.h.b16 %v200
    %v308 = vunpack.c.l.b16 %v201
    %v309 = vunpack.c.h.b16 %v201
    %v310 = vunpack.c.l.b16 %v202
    %v311 = vunpack.c.h.b16 %v202
    %v312 = vunpack.c.l.b16 %v203
    %v313 = vunpack.c.h.b16 %v203
    %v314 = vunpack.c.l.b16 %v204
    %v315 = vunpack.c.h.b16 %v204
    %v316 = vunpack.c.l.b16 %v205
    %v317 = vunpack.c.h.b16 %v205
    %v318 = vunpack.c.l.b16 %v206
    %v319 = vunpack.c.h.b16 %v206
    %v320 = vunpack.c.l.b16 %v207
    %v321 = vunpack.c.h.b16 %v207
    %v322 = vunpack.c.l.b16 %v208
    %v323 = vunpack.c.h.b16 %v208
    %v324 = vunpack.c.l.b16 %v209
    %v325 = vunpack.c.h.b16 %v209
    %v326 = vunpack.c.l.b16 %v210
    %v327 = vunpack.c.h.b16 %v210
    %v328 = vunpack.c.l.b16 %v211
    %v329 = vunpack.c.h.b16 %v211
    %v330 = vpack.c.b16 %v270, %v266
    %v331 = vpack.c.b16 %v271, %v267
    %v332 = vpack.c.b16 %v272, %v268
    %v333 = vpack.c.b16 %v273, %v269
    %v334 = vpack.c.b16 %v278, %v274
    %v335 = vpack.c.b16 %v279, %v275
    %v336 = vpack.c.b16 %v280, %v276
    %v337 = vpack.c.b16 %v281, %v277
    %v338 = vpack.c.b16 %v286, %v282
    %v339 = vpack.c.b16 %v287, %v283
    %v340 = vpack.c.b16 %v288, %v284
    %v341 = vpack.c.b16 %v289, %v285
    %v342 = vpack.c.b16 %v294, %v290
    %v343 = vpack.c.b16 %v295, %v291
    %v344 = vpack.c.b16 %v296, %v292
    %v345 = vpack.c.b16 %v297, %v293
    %v346 = vpack.c.b16 %v302, %v298
    %v347 = vpack.c.b16 %v303, %v299
    %v348 = vpack.c.b16 %v304, %v300
    %v349 = vpack.c.b16 %v305, %v301
    %v350 = vpack.c.b16 %v310, %v306
    %v351 = vpack.c.b16 %v311, %v307
    %v352 = vpack.c.b16 %v312, %v308
    %v353 = vpack.c.b16 %v313, %v309
    %v354 = vpack.c.b16 %v318, %v314
    %v355 = vpack.c.b16 %v319, %v315
    %v356 = vpack.c.b16 %v320, %v316
    %v357 = vpack.c.b16 %v321, %v317
    %v358 = vpack.c.b16 %v326, %v322
    %v359 = vpack.c.b16 %v327, %v323
    %v360 = vpack.c.b16 %v328, %v324
    %v361 = vpack.c.b16 %v329, %v325
    %394 = vmatprep.subr.bf16.mxu0 %v359
    %395 = vmatpush1.bf16.msra.mxu0 %v358
    %396 = vmatprep.subr.bf16.mxu0 %v355
    %397 = vmatpush1.bf16.msra.mxu0 %v354
    %398 = vmatprep.subr.bf16.mxu0 %v351
    %399 = vmatpush1.bf16.msra.mxu0 %v350
    %400 = vmatprep.subr.bf16.mxu0 %v347
    %401 = vmatpush1.bf16.msra.mxu0 %v346
    %402 = vmatprep.subr.bf16.mxu0 %v343
    %403 = vmatpush1.bf16.msra.mxu0 %v342
    %404 = vmatprep.subr.bf16.mxu0 %v339
    %405 = vmatpush1.bf16.msra.mxu0 %v338
    %406 = vmatprep.subr.bf16.mxu0 %v335
    %407 = vmatpush1.bf16.msra.mxu0 %v334
    %408 = vmatprep.subr.bf16.mxu0 %v331
    %409 = vmatpush1.bf16.msra.mxu0 %v330
    %410 = vmatprep.subr.bf16.mxu0 0
    %411 = vmatpush2.bf16.msra.mxu0 0
    %412 = vmatprep.subr.bf16.mxu0 0
    %413 = vmatpush2.bf16.msra.mxu0 0
    %414 = vmatprep.subr.bf16.mxu0 0
    %415 = vmatpush2.bf16.msra.mxu0 0
    %416 = vmatprep.subr.bf16.mxu0 0
    %417 = vmatpush2.bf16.msra.mxu0 0
    %418 = vmatprep.subr.bf16.mxu0 0
    %419 = vmatpush2.bf16.msra.mxu0 0
    %420 = vmatprep.subr.bf16.mxu0 0
    %421 = vmatpush2.bf16.msra.mxu0 0
    %422 = vmatprep.subr.bf16.mxu0 0
    %423 = vmatpush2.bf16.msra.mxu0 0
    %424 = vmatprep.subr.bf16.mxu0 0
    %425 = vmatpush2.bf16.msra.mxu0 0
    %426 = vmatprep.mubr.bf16.mxu0 0
    %427 = vmatmul.mubr.bf16.gmra.mxu0 %v179
    %v428 = vpop.f32.mrf.mxu0
    %v429 = vadd.f32 %v217, %v428
    %v430 = vpop.f32.mrf.mxu0
    %v431 = vadd.f32 %v221, %v430
    %v432 = vpop.f32.mrf.mxu0
    %v433 = vpop.f32.mrf.mxu0
    %434 = vdwg.mxu0
    %435 = vmatprep.subr.bf16.mxu0 %v361
    %436 = vmatpush1.bf16.msra.mxu0 %v360
    %437 = vmatprep.subr.bf16.mxu0 %v357
    %438 = vmatpush1.bf16.msra.mxu0 %v356
    %439 = vmatprep.subr.bf16.mxu0 %v353
    %440 = vmatpush1.bf16.msra.mxu0 %v352
    %441 = vmatprep.subr.bf16.mxu0 %v349
    %442 = vmatpush1.bf16.msra.mxu0 %v348
    %443 = vmatprep.subr.bf16.mxu0 %v345
    %444 = vmatpush1.bf16.msra.mxu0 %v344
    %445 = vmatprep.subr.bf16.mxu0 %v341
    %446 = vmatpush1.bf16.msra.mxu0 %v340
    %447 = vmatprep.subr.bf16.mxu0 %v337
    %448 = vmatpush1.bf16.msra.mxu0 %v336
    %449 = vmatprep.subr.bf16.mxu0 %v333
    %450 = vmatpush1.bf16.msra.mxu0 %v332
    %451 = vmatprep.subr.bf16.mxu0 0
    %452 = vmatpush2.bf16.msra.mxu0 0
    %453 = vmatprep.subr.bf16.mxu0 0
    %454 = vmatpush2.bf16.msra.mxu0 0
    %455 = vmatprep.subr.bf16.mxu0 0
    %456 = vmatpush2.bf16.msra.mxu0 0
    %457 = vmatprep.subr.bf16.mxu0 0
    %458 = vmatpush2.bf16.msra.mxu0 0
    %459 = vmatprep.subr.bf16.mxu0 0
    %460 = vmatpush2.bf16.msra.mxu0 0
    %461 = vmatprep.subr.bf16.mxu0 0
    %462 = vmatpush2.bf16.msra.mxu0 0
    %463 = vmatprep.subr.bf16.mxu0 0
    %464 = vmatpush2.bf16.msra.mxu0 0
    %465 = vmatprep.subr.bf16.mxu0 0
    %466 = vmatpush2.bf16.msra.mxu0 0
    %467 = vmatprep.mubr.bf16.mxu0 0
    %468 = vmatmul.mubr.bf16.gmra.mxu0 %v179
    %v469 = vpop.f32.mrf.mxu0
    %v470 = vadd.f32 %v225, %v469
    %v471 = vpop.f32.mrf.mxu0
    %v472 = vadd.f32 %v229, %v471
    %v473 = vpop.f32.mrf.mxu0
    %v474 = vpop.f32.mrf.mxu0
    %475 = vdwg.mxu0
    %v476 = vld [vmem:[#allocation9] sm:$0xff]
    %v477 = vld [vmem:[#allocation9 + $0x8] sm:$0xff]
    %v478 = vld [vmem:[#allocation9 + $0x10] sm:$0xff]
    %v479 = vld [vmem:[#allocation9 + $0x18] sm:$0xff]
    %v480 = vld [vmem:[#allocation9 + $0x20] sm:$0xff]
    %v481 = vld [vmem:[#allocation9 + $0x28] sm:$0xff]
    %v482 = vld [vmem:[#allocation9 + $0x30] sm:$0xff]
    %v483 = vld [vmem:[#allocation9 + $0x38] sm:$0xff]
    %v484 = vld [vmem:[#allocation9 + $0x40] sm:$0xff]
    %v485 = vld [vmem:[#allocation9 + $0x48] sm:$0xff]
    %v486 = vld [vmem:[#allocation9 + $0x50] sm:$0xff]
    %v487 = vld [vmem:[#allocation9 + $0x58] sm:$0xff]
    %v488 = vld [vmem:[#allocation9 + $0x60] sm:$0xff]
    %v489 = vld [vmem:[#allocation9 + $0x68] sm:$0xff]
    %v490 = vld [vmem:[#allocation9 + $0x70] sm:$0xff]
    %v491 = vld [vmem:[#allocation9 + $0x78] sm:$0xff]
    %v492 = vld [vmem:[#allocation9 + $0x80] sm:$0xff]
    %v493 = vld [vmem:[#allocation9 + $0x88] sm:$0xff]
    %v494 = vld [vmem:[#allocation9 + $0x90] sm:$0xff]
    %v495 = vld [vmem:[#allocation9 + $0x98] sm:$0xff]
    %v496 = vld [vmem:[#allocation9 + $0xa0] sm:$0xff]
    %v497 = vld [vmem:[#allocation9 + $0xa8] sm:$0xff]
    %v498 = vld [vmem:[#allocation9 + $0xb0] sm:$0xff]
    %v499 = vld [vmem:[#allocation9 + $0xb8] sm:$0xff]
    %v500 = vld [vmem:[#allocation9 + $0xc0] sm:$0xff]
    %v501 = vld [vmem:[#allocation9 + $0xc8] sm:$0xff]
    %v502 = vld [vmem:[#allocation9 + $0xd0] sm:$0xff]
    %v503 = vld [vmem:[#allocation9 + $0xd8] sm:$0xff]
    %v504 = vld [vmem:[#allocation9 + $0xe0] sm:$0xff]
    %v505 = vld [vmem:[#allocation9 + $0xe8] sm:$0xff]
    %v506 = vld [vmem:[#allocation9 + $0xf0] sm:$0xff]
    %v507 = vld [vmem:[#allocation9 + $0xf8] sm:$0xff]
    %v540 = vunpack.c.l.b16 %v476
    %v541 = vunpack.c.h.b16 %v476
    %v542 = vunpack.c.l.b16 %v477
    %v543 = vunpack.c.h.b16 %v477
    %v544 = vunpack.c.l.b16 %v478
    %v545 = vunpack.c.h.b16 %v478
    %v546 = vunpack.c.l.b16 %v479
    %v547 = vunpack.c.h.b16 %v479
    %v548 = vunpack.c.l.b16 %v480
    %v549 = vunpack.c.h.b16 %v480
    %v550 = vunpack.c.l.b16 %v481
    %v551 = vunpack.c.h.b16 %v481
    %v552 = vunpack.c.l.b16 %v482
    %v553 = vunpack.c.h.b16 %v482
    %v554 = vunpack.c.l.b16 %v483
    %v555 = vunpack.c.h.b16 %v483
    %v556 = vunpack.c.l.b16 %v484
    %v557 = vunpack.c.h.b16 %v484
    %v558 = vunpack.c.l.b16 %v485
    %v559 = vunpack.c.h.b16 %v485
    %v560 = vunpack.c.l.b16 %v486
    %v561 = vunpack.c.h.b16 %v486
    %v562 = vunpack.c.l.b16 %v487
    %v563 = vunpack.c.h.b16 %v487
    %v564 = vunpack.c.l.b16 %v488
    %v565 = vunpack.c.h.b16 %v488
    %v566 = vunpack.c.l.b16 %v489
    %v567 = vunpack.c.h.b16 %v489
    %v568 = vunpack.c.l.b16 %v490
    %v569 = vunpack.c.h.b16 %v490
    %v570 = vunpack.c.l.b16 %v491
    %v571 = vunpack.c.h.b16 %v491
    %v572 = vunpack.c.l.b16 %v492
    %v573 = vunpack.c.h.b16 %v492
    %v574 = vunpack.c.l.b16 %v493
    %v575 = vunpack.c.h.b16 %v493
    %v576 = vunpack.c.l.b16 %v494
    %v577 = vunpack.c.h.b16 %v494
    %v578 = vunpack.c.l.b16 %v495
    %v579 = vunpack.c.h.b16 %v495
    %v580 = vunpack.c.l.b16 %v496
    %v581 = vunpack.c.h.b16 %v496
    %v582 = vunpack.c.l.b16 %v497
    %v583 = vunpack.c.h.b16 %v497
    %v584 = vunpack.c.l.b16 %v498
    %v585 = vunpack.c.h.b16 %v498
    %v586 = vunpack.c.l.b16 %v499
    %v587 = vunpack.c.h.b16 %v499
    %v588 = vunpack.c.l.b16 %v500
    %v589 = vunpack.c.h.b16 %v500
    %v590 = vunpack.c.l.b16 %v501
    %v591 = vunpack.c.h.b16 %v501
    %v592 = vunpack.c.l.b16 %v502
    %v593 = vunpack.c.h.b16 %v502
    %v594 = vunpack.c.l.b16 %v503
    %v595 = vunpack.c.h.b16 %v503
    %v596 = vunpack.c.l.b16 %v504
    %v597 = vunpack.c.h.b16 %v504
    %v598 = vunpack.c.l.b16 %v505
    %v599 = vunpack.c.h.b16 %v505
    %v600 = vunpack.c.l.b16 %v506
    %v601 = vunpack.c.h.b16 %v506
    %v602 = vunpack.c.l.b16 %v507
    %v603 = vunpack.c.h.b16 %v507
    %v604 = vpack.c.b16 %v544, %v540
    %v605 = vpack.c.b16 %v545, %v541
    %v606 = vpack.c.b16 %v546, %v542
    %v607 = vpack.c.b16 %v547, %v543
    %v608 = vpack.c.b16 %v552, %v548
    %v609 = vpack.c.b16 %v553, %v549
    %v610 = vpack.c.b16 %v554, %v550
    %v611 = vpack.c.b16 %v555, %v551
    %v612 = vpack.c.b16 %v560, %v556
    %v613 = vpack.c.b16 %v561, %v557
    %v614 = vpack.c.b16 %v562, %v558
    %v615 = vpack.c.b16 %v563, %v559
    %v616 = vpack.c.b16 %v568, %v564
    %v617 = vpack.c.b16 %v569, %v565
    %v618 = vpack.c.b16 %v570, %v566
    %v619 = vpack.c.b16 %v571, %v567
    %v620 = vpack.c.b16 %v576, %v572
    %v621 = vpack.c.b16 %v577, %v573
    %v622 = vpack.c.b16 %v578, %v574
    %v623 = vpack.c.b16 %v579, %v575
    %v624 = vpack.c.b16 %v584, %v580
    %v625 = vpack.c.b16 %v585, %v581
    %v626 = vpack.c.b16 %v586, %v582
    %v627 = vpack.c.b16 %v587, %v583
    %v628 = vpack.c.b16 %v592, %v588
    %v629 = vpack.c.b16 %v593, %v589
    %v630 = vpack.c.b16 %v594, %v590
    %v631 = vpack.c.b16 %v595, %v591
    %v632 = vpack.c.b16 %v600, %v596
    %v633 = vpack.c.b16 %v601, %v597
    %v634 = vpack.c.b16 %v602, %v598
    %v635 = vpack.c.b16 %v603, %v599
    %668 = vmatprep.subr.bf16.mxu0 %v633
    %669 = vmatpush1.bf16.msra.mxu0 %v632
    %670 = vmatprep.subr.bf16.mxu0 %v629
    %671 = vmatpush1.bf16.msra.mxu0 %v628
    %672 = vmatprep.subr.bf16.mxu0 %v625
    %673 = vmatpush1.bf16.msra.mxu0 %v624
    %674 = vmatprep.subr.bf16.mxu0 %v621
    %675 = vmatpush1.bf16.msra.mxu0 %v620
    %676 = vmatprep.subr.bf16.mxu0 %v617
    %677 = vmatpush1.bf16.msra.mxu0 %v616
    %678 = vmatprep.subr.bf16.mxu0 %v613
    %679 = vmatpush1.bf16.msra.mxu0 %v612
    %680 = vmatprep.subr.bf16.mxu0 %v609
    %681 = vmatpush1.bf16.msra.mxu0 %v608
    %682 = vmatprep.subr.bf16.mxu0 %v605
    %683 = vmatpush1.bf16.msra.mxu0 %v604
    %684 = vmatprep.subr.bf16.mxu0 0
    %685 = vmatpush2.bf16.msra.mxu0 0
    %686 = vmatprep.subr.bf16.mxu0 0
    %687 = vmatpush2.bf16.msra.mxu0 0
    %688 = vmatprep.subr.bf16.mxu0 0
    %689 = vmatpush2.bf16.msra.mxu0 0
    %690 = vmatprep.subr.bf16.mxu0 0
    %691 = vmatpush2.bf16.msra.mxu0 0
    %692 = vmatprep.subr.bf16.mxu0 0
    %693 = vmatpush2.bf16.msra.mxu0 0
    %694 = vmatprep.subr.bf16.mxu0 0
    %695 = vmatpush2.bf16.msra.mxu0 0
    %696 = vmatprep.subr.bf16.mxu0 0
    %697 = vmatpush2.bf16.msra.mxu0 0
    %698 = vmatprep.subr.bf16.mxu0 0
    %699 = vmatpush2.bf16.msra.mxu0 0
    %700 = vmatprep.mubr.bf16.mxu0 0
    %701 = vmatmul.mubr.bf16.gmra.mxu0 0
    %v702 = vpop.f32.mrf.mxu0
    %v703 = vadd.f32 0.0, %v702
    %v704 = vpop.f32.mrf.mxu0
    %v705 = vadd.f32 0.0, %v704
    %v706 = vpop.f32.mrf.mxu0
    %v707 = vpop.f32.mrf.mxu0
    %708 = vdwg.mxu0
    %709 = vmatprep.subr.bf16.mxu0 %v635
    %710 = vmatpush1.bf16.msra.mxu0 %v634
    %711 = vmatprep.subr.bf16.mxu0 %v631
    %712 = vmatpush1.bf16.msra.mxu0 %v630
    %713 = vmatprep.subr.bf16.mxu0 %v627
    %714 = vmatpush1.bf16.msra.mxu0 %v626
    %715 = vmatprep.subr.bf16.mxu0 %v623
    %716 = vmatpush1.bf16.msra.mxu0 %v622
    %717 = vmatprep.subr.bf16.mxu0 %v619
    %718 = vmatpush1.bf16.msra.mxu0 %v618
    %719 = vmatprep.subr.bf16.mxu0 %v615
    %720 = vmatpush1.bf16.msra.mxu0 %v614
    %721 = vmatprep.subr.bf16.mxu0 %v611
    %722 = vmatpush1.bf16.msra.mxu0 %v610
    %723 = vmatprep.subr.bf16.mxu0 %v607
    %724 = vmatpush1.bf16.msra.mxu0 %v606
    %725 = vmatprep.subr.bf16.mxu0 0
    %726 = vmatpush2.bf16.msra.mxu0 0
    %727 = vmatprep.subr.bf16.mxu0 0
    %728 = vmatpush2.bf16.msra.mxu0 0
    %729 = vmatprep.subr.bf16.mxu0 0
    %730 = vmatpush2.bf16.msra.mxu0 0
    %731 = vmatprep.subr.bf16.mxu0 0
    %732 = vmatpush2.bf16.msra.mxu0 0
    %733 = vmatprep.subr.bf16.mxu0 0
    %734 = vmatpush2.bf16.msra.mxu0 0
    %735 = vmatprep.subr.bf16.mxu0 0
    %736 = vmatpush2.bf16.msra.mxu0 0
    %737 = vmatprep.subr.bf16.mxu0 0
    %738 = vmatpush2.bf16.msra.mxu0 0
    %739 = vmatprep.subr.bf16.mxu0 0
    %740 = vmatpush2.bf16.msra.mxu0 0
    %741 = vmatprep.mubr.bf16.mxu0 0
    %742 = vmatmul.mubr.bf16.gmra.mxu0 0
    %v743 = vpop.f32.mrf.mxu0
    %v744 = vadd.f32 0.0, %v743
    %v745 = vpop.f32.mrf.mxu0
    %v746 = vadd.f32 0.0, %v745
    %v747 = vpop.f32.mrf.mxu0
    %v748 = vpop.f32.mrf.mxu0
    %749 = vdwg.mxu0
    %v750 = vadd.f32 %v429, %v703
    %v751 = vadd.f32 %v431, %v705
    %v752 = vadd.f32 %v470, %v744
    %v753 = vadd.f32 %v472, %v746
    %v754 = vxor.u32 %v750, 2147483648
    %v755 = vxor.u32 %v751, 2147483648
    %v756 = vmul.f32 %v754, 1.442695
    %v757 = vpow.pop %v756
    %v758 = vmul.f32 %v755, 1.442695
    %v759 = vpow.pop %v758
    %v760 = vadd.f32 %v757, 1.0
    %v761 = vadd.f32 %v759, 1.0
    %v762 = vrcp.pop %v760
    %v763 = vmul.f32 1.0, %v762
    %v764 = vrcp.pop %v761
    %v765 = vmul.f32 1.0, %v764
    %v766 = vtanh.pop %v752
    %v767 = vxor.u32 %v753, 2147483648
    %v768 = vmul.f32 %v767, 1.442695
    %v769 = vpow.pop %v768
    %v770 = vadd.f32 %v769, 1.0
    %v771 = vrcp.pop %v770
    %v772 = vmul.f32 1.0, %v771
    %v773 = vmul.f32 %v765, 0.0
    %v774 = vmul.f32 %v763, %v766
    %v775 = vadd.f32 %v773, %v774
    %v776 = vtanh.pop %v775
    %v777 = vmul.f32 %v772, %v776
    %778 = vst [vmem:[#allocation2] sm:$0xff] %v777
    %v779 = vpack.c.bf16 %v777, %v777
    %v780 = vld [vmem:[#allocation9] sm:$0xff]
    %v781 = vld [vmem:[#allocation9 + $0x8] sm:$0xff]
    %v782 = vld [vmem:[#allocation9 + $0x10] sm:$0xff]
    %v783 = vld [vmem:[#allocation9 + $0x18] sm:$0xff]
    %v784 = vld [vmem:[#allocation9 + $0x20] sm:$0xff]
    %v785 = vld [vmem:[#allocation9 + $0x28] sm:$0xff]
    %v786 = vld [vmem:[#allocation9 + $0x30] sm:$0xff]
    %v787 = vld [vmem:[#allocation9 + $0x38] sm:$0xff]
    %v788 = vld [vmem:[#allocation9 + $0x40] sm:$0xff]
    %v789 = vld [vmem:[#allocation9 + $0x48] sm:$0xff]
    %v790 = vld [vmem:[#allocation9 + $0x50] sm:$0xff]
    %v791 = vld [vmem:[#allocation9 + $0x58] sm:$0xff]
    %v792 = vld [vmem:[#allocation9 + $0x60] sm:$0xff]
    %v793 = vld [vmem:[#allocation9 + $0x68] sm:$0xff]
    %v794 = vld [vmem:[#allocation9 + $0x70] sm:$0xff]
    %v795 = vld [vmem:[#allocation9 + $0x78] sm:$0xff]
    %v796 = vld [vmem:[#allocation9 + $0x80] sm:$0xff]
    %v797 = vld [vmem:[#allocation9 + $0x88] sm:$0xff]
    %v798 = vld [vmem:[#allocation9 + $0x90] sm:$0xff]
    %v799 = vld [vmem:[#allocation9 + $0x98] sm:$0xff]
    %v800 = vld [vmem:[#allocation9 + $0xa0] sm:$0xff]
    %v801 = vld [vmem:[#allocation9 + $0xa8] sm:$0xff]
    %v802 = vld [vmem:[#allocation9 + $0xb0] sm:$0xff]
    %v803 = vld [vmem:[#allocation9 + $0xb8] sm:$0xff]
    %v804 = vld [vmem:[#allocation9 + $0xc0] sm:$0xff]
    %v805 = vld [vmem:[#allocation9 + $0xc8] sm:$0xff]
    %v806 = vld [vmem:[#allocation9 + $0xd0] sm:$0xff]
    %v807 = vld [vmem:[#allocation9 + $0xd8] sm:$0xff]
    %v808 = vld [vmem:[#allocation9 + $0xe0] sm:$0xff]
    %v809 = vld [vmem:[#allocation9 + $0xe8] sm:$0xff]
    %v810 = vld [vmem:[#allocation9 + $0xf0] sm:$0xff]
    %v811 = vld [vmem:[#allocation9 + $0xf8] sm:$0xff]
    %v844 = vunpack.c.l.b16 %v780
    %v845 = vunpack.c.h.b16 %v780
    %v846 = vunpack.c.l.b16 %v781
    %v847 = vunpack.c.h.b16 %v781
    %v848 = vunpack.c.l.b16 %v782
    %v849 = vunpack.c.h.b16 %v782
    %v850 = vunpack.c.l.b16 %v783
    %v851 = vunpack.c.h.b16 %v783
    %v852 = vunpack.c.l.b16 %v784
    %v853 = vunpack.c.h.b16 %v784
    %v854 = vunpack.c.l.b16 %v785
    %v855 = vunpack.c.h.b16 %v785
    %v856 = vunpack.c.l.b16 %v786
    %v857 = vunpack.c.h.b16 %v786
    %v858 = vunpack.c.l.b16 %v787
    %v859 = vunpack.c.h.b16 %v787
    %v860 = vunpack.c.l.b16 %v788
    %v861 = vunpack.c.h.b16 %v788
    %v862 = vunpack.c.l.b16 %v789
    %v863 = vunpack.c.h.b16 %v789
    %v864 = vunpack.c.l.b16 %v790
    %v865 = vunpack.c.h.b16 %v790
    %v866 = vunpack.c.l.b16 %v791
    %v867 = vunpack.c.h.b16 %v791
    %v868 = vunpack.c.l.b16 %v792
    %v869 = vunpack.c.h.b16 %v792
    %v870 = vunpack.c.l.b16 %v793
    %v871 = vunpack.c.h.b16 %v793
    %v872 = vunpack.c.l.b16 %v794
    %v873 = vunpack.c.h.b16 %v794
    %v874 = vunpack.c.l.b16 %v795
    %v875 = vunpack.c.h.b16 %v795
    %v876 = vunpack.c.l.b16 %v796
    %v877 = vunpack.c.h.b16 %v796
    %v878 = vunpack.c.l.b16 %v797
    %v879 = vunpack.c.h.b16 %v797
    %v880 = vunpack.c.l.b16 %v798
    %v881 = vunpack.c.h.b16 %v798
    %v882 = vunpack.c.l.b16 %v799
    %v883 = vunpack.c.h.b16 %v799
    %v884 = vunpack.c.l.b16 %v800
    %v885 = vunpack.c.h.b16 %v800
    %v886 = vunpack.c.l.b16 %v801
    %v887 = vunpack.c.h.b16 %v801
    %v888 = vunpack.c.l.b16 %v802
    %v889 = vunpack.c.h.b16 %v802
    %v890 = vunpack.c.l.b16 %v803
    %v891 = vunpack.c.h.b16 %v803
    %v892 = vunpack.c.l.b16 %v804
    %v893 = vunpack.c.h.b16 %v804
    %v894 = vunpack.c.l.b16 %v805
    %v895 = vunpack.c.h.b16 %v805
    %v896 = vunpack.c.l.b16 %v806
    %v897 = vunpack.c.h.b16 %v806
    %v898 = vunpack.c.l.b16 %v807
    %v899 = vunpack.c.h.b16 %v807
    %v900 = vunpack.c.l.b16 %v808
    %v901 = vunpack.c.h.b16 %v808
    %v902 = vunpack.c.l.b16 %v809
    %v903 = vunpack.c.h.b16 %v809
    %v904 = vunpack.c.l.b16 %v810
    %v905 = vunpack.c.h.b16 %v810
    %v906 = vunpack.c.l.b16 %v811
    %v907 = vunpack.c.h.b16 %v811
    %v908 = vpack.c.b16 %v848, %v844
    %v909 = vpack.c.b16 %v849, %v845
    %v910 = vpack.c.b16 %v850, %v846
    %v911 = vpack.c.b16 %v851, %v847
    %v912 = vpack.c.b16 %v856, %v852
    %v913 = vpack.c.b16 %v857, %v853
    %v914 = vpack.c.b16 %v858, %v854
    %v915 = vpack.c.b16 %v859, %v855
    %v916 = vpack.c.b16 %v864, %v860
    %v917 = vpack.c.b16 %v865, %v861
    %v918 = vpack.c.b16 %v866, %v862
    %v919 = vpack.c.b16 %v867, %v863
    %v920 = vpack.c.b16 %v872, %v868
    %v921 = vpack.c.b16 %v873, %v869
    %v922 = vpack.c.b16 %v874, %v870
    %v923 = vpack.c.b16 %v875, %v871
    %v924 = vpack.c.b16 %v880, %v876
    %v925 = vpack.c.b16 %v881, %v877
    %v926 = vpack.c.b16 %v882, %v878
    %v927 = vpack.c.b16 %v883, %v879
    %v928 = vpack.c.b16 %v888, %v884
    %v929 = vpack.c.b16 %v889, %v885
    %v930 = vpack.c.b16 %v890, %v886
    %v931 = vpack.c.b16 %v891, %v887
    %v932 = vpack.c.b16 %v896, %v892
    %v933 = vpack.c.b16 %v897, %v893
    %v934 = vpack.c.b16 %v898, %v894
    %v935 = vpack.c.b16 %v899, %v895
    %v936 = vpack.c.b16 %v904, %v900
    %v937 = vpack.c.b16 %v905, %v901
    %v938 = vpack.c.b16 %v906, %v902
    %v939 = vpack.c.b16 %v907, %v903
    %972 = vmatprep.subr.bf16.mxu0 %v937
    %973 = vmatpush1.bf16.msra.mxu0 %v936
    %974 = vmatprep.subr.bf16.mxu0 %v933
    %975 = vmatpush1.bf16.msra.mxu0 %v932
    %976 = vmatprep.subr.bf16.mxu0 %v929
    %977 = vmatpush1.bf16.msra.mxu0 %v928
    %978 = vmatprep.subr.bf16.mxu0 %v925
    %979 = vmatpush1.bf16.msra.mxu0 %v924
    %980 = vmatprep.subr.bf16.mxu0 %v921
    %981 = vmatpush1.bf16.msra.mxu0 %v920
    %982 = vmatprep.subr.bf16.mxu0 %v917
    %983 = vmatpush1.bf16.msra.mxu0 %v916
    %984 = vmatprep.subr.bf16.mxu0 %v913
    %985 = vmatpush1.bf16.msra.mxu0 %v912
    %986 = vmatprep.subr.bf16.mxu0 %v909
    %987 = vmatpush1.bf16.msra.mxu0 %v908
    %988 = vmatprep.subr.bf16.mxu0 0
    %989 = vmatpush2.bf16.msra.mxu0 0
    %990 = vmatprep.subr.bf16.mxu0 0
    %991 = vmatpush2.bf16.msra.mxu0 0
    %992 = vmatprep.subr.bf16.mxu0 0
    %993 = vmatpush2.bf16.msra.mxu0 0
    %994 = vmatprep.subr.bf16.mxu0 0
    %995 = vmatpush2.bf16.msra.mxu0 0
    %996 = vmatprep.subr.bf16.mxu0 0
    %997 = vmatpush2.bf16.msra.mxu0 0
    %998 = vmatprep.subr.bf16.mxu0 0
    %999 = vmatpush2.bf16.msra.mxu0 0
    %1000 = vmatprep.subr.bf16.mxu0 0
    %1001 = vmatpush2.bf16.msra.mxu0 0
    %1002 = vmatprep.subr.bf16.mxu0 0
    %1003 = vmatpush2.bf16.msra.mxu0 0
    %1004 = vmatprep.mubr.bf16.mxu0 0
    %1005 = vmatmul.mubr.bf16.gmra.mxu0 %v779
    %v1006 = vpop.f32.mrf.mxu0
    %v1007 = vadd.f32 0.0, %v1006
    %v1008 = vpop.f32.mrf.mxu0
    %v1009 = vadd.f32 0.0, %v1008
    %v1010 = vpop.f32.mrf.mxu0
    %v1011 = vpop.f32.mrf.mxu0
    %1012 = vdwg.mxu0
    %1013 = vmatprep.subr.bf16.mxu0 %v939
    %1014 = vmatpush1.bf16.msra.mxu0 %v938
    %1015 = vmatprep.subr.bf16.mxu0 %v935
    %1016 = vmatpush1.bf16.msra.mxu0 %v934
    %1017 = vmatprep.subr.bf16.mxu0 %v931
    %1018 = vmatpush1.bf16.msra.mxu0 %v930
    %1019 = vmatprep.subr.bf16.mxu0 %v927
    %1020 = vmatpush1.bf16.msra.mxu0 %v926
    %1021 = vmatprep.subr.bf16.mxu0 %v923
    %1022 = vmatpush1.bf16.msra.mxu0 %v922
    %1023 = vmatprep.subr.bf16.mxu0 %v919
    %1024 = vmatpush1.bf16.msra.mxu0 %v918
    %1025 = vmatprep.subr.bf16.mxu0 %v915
    %1026 = vmatpush1.bf16.msra.mxu0 %v914
    %1027 = vmatprep.subr.bf16.mxu0 %v911
    %1028 = vmatpush1.bf16.msra.mxu0 %v910
    %1029 = vmatprep.subr.bf16.mxu0 0
    %1030 = vmatpush2.bf16.msra.mxu0 0
    %1031 = vmatprep.subr.bf16.mxu0 0
    %1032 = vmatpush2.bf16.msra.mxu0 0
    %1033 = vmatprep.subr.bf16.mxu0 0
    %1034 = vmatpush2.bf16.msra.mxu0 0
    %1035 = vmatprep.subr.bf16.mxu0 0
    %1036 = vmatpush2.bf16.msra.mxu0 0
    %1037 = vmatprep.subr.bf16.mxu0 0
    %1038 = vmatpush2.bf16.msra.mxu0 0
    %1039 = vmatprep.subr.bf16.mxu0 0
    %1040 = vmatpush2.bf16.msra.mxu0 0
    %1041 = vmatprep.subr.bf16.mxu0 0
    %1042 = vmatpush2.bf16.msra.mxu0 0
    %1043 = vmatprep.subr.bf16.mxu0 0
    %1044 = vmatpush2.bf16.msra.mxu0 0
    %1045 = vmatprep.mubr.bf16.mxu0 0
    %1046 = vmatmul.mubr.bf16.gmra.mxu0 %v779
    %v1047 = vpop.f32.mrf.mxu0
    %v1048 = vadd.f32 0.0, %v1047
    %v1049 = vpop.f32.mrf.mxu0
    %v1050 = vadd.f32 0.0, %v1049
    %v1051 = vpop.f32.mrf.mxu0
    %v1052 = vpop.f32.mrf.mxu0
    %1053 = vdwg.mxu0
    %v1054 = vadd.f32 %v429, %v1007
    %v1055 = vadd.f32 %v431, %v1009
    %v1056 = vadd.f32 %v470, %v1048
    %v1057 = vadd.f32 %v472, %v1050
    %v1058 = vxor.u32 %v1054, 2147483648
    %v1059 = vxor.u32 %v1055, 2147483648
    %v1060 = vmul.f32 %v1058, 1.442695
    %v1061 = vpow.pop %v1060
    %v1062 = vmul.f32 %v1059, 1.442695
    %v1063 = vpow.pop %v1062
    %v1064 = vadd.f32 %v1061, 1.0
    %v1065 = vadd.f32 %v1063, 1.0
    %v1066 = vrcp.pop %v1064
    %v1067 = vmul.f32 1.0, %v1066
    %v1068 = vrcp.pop %v1065
    %v1069 = vmul.f32 1.0, %v1068
    %v1070 = vtanh.pop %v1056
    %v1071 = vxor.u32 %v1057, 2147483648
    %v1072 = vmul.f32 %v1071, 1.442695
    %v1073 = vpow.pop %v1072
    %v1074 = vadd.f32 %v1073, 1.0
    %v1075 = vrcp.pop %v1074
    %v1076 = vmul.f32 1.0, %v1075
    %v1077 = vmul.f32 %v1069, %v775
    %v1078 = vmul.f32 %v1067, %v1070
    %v1079 = vadd.f32 %v1077, %v1078
    %v1080 = vtanh.pop %v1079
    %v1081 = vmul.f32 %v1076, %v1080
    %s1082 = scalar_lea.vmem [#allocation2], 8
    %1083 = vst [vmem:[%s1082] sm:$0xff] %v1081
    %v1084 = vpack.c.bf16 %v1081, %v1081
    %v1085 = vld [vmem:[#allocation9] sm:$0xff]
    %v1086 = vld [vmem:[#allocation9 + $0x8] sm:$0xff]
    %v1087 = vld [vmem:[#allocation9 + $0x10] sm:$0xff]
    %v1088 = vld [vmem:[#allocation9 + $0x18] sm:$0xff]
    %v1089 = vld [vmem:[#allocation9 + $0x20] sm:$0xff]
    %v1090 = vld [vmem:[#allocation9 + $0x28] sm:$0xff]
    %v1091 = vld [vmem:[#allocation9 + $0x30] sm:$0xff]
    %v1092 = vld [vmem:[#allocation9 + $0x38] sm:$0xff]
    %v1093 = vld [vmem:[#allocation9 + $0x40] sm:$0xff]
    %v1094 = vld [vmem:[#allocation9 + $0x48] sm:$0xff]
    %v1095 = vld [vmem:[#allocation9 + $0x50] sm:$0xff]
    %v1096 = vld [vmem:[#allocation9 + $0x58] sm:$0xff]
    %v1097 = vld [vmem:[#allocation9 + $0x60] sm:$0xff]
    %v1098 = vld [vmem:[#allocation9 + $0x68] sm:$0xff]
    %v1099 = vld [vmem:[#allocation9 + $0x70] sm:$0xff]
    %v1100 = vld [vmem:[#allocation9 + $0x78] sm:$0xff]
    %v1101 = vld [vmem:[#allocation9 + $0x80] sm:$0xff]
    %v1102 = vld [vmem:[#allocation9 + $0x88] sm:$0xff]
    %v1103 = vld [vmem:[#allocation9 + $0x90] sm:$0xff]
    %v1104 = vld [vmem:[#allocation9 + $0x98] sm:$0xff]
    %v1105 = vld [vmem:[#allocation9 + $0xa0] sm:$0xff]
    %v1106 = vld [vmem:[#allocation9 + $0xa8] sm:$0xff]
    %v1107 = vld [vmem:[#allocation9 + $0xb0] sm:$0xff]
    %v1108 = vld [vmem:[#allocation9 + $0xb8] sm:$0xff]
    %v1109 = vld [vmem:[#allocation9 + $0xc0] sm:$0xff]
    %v1110 = vld [vmem:[#allocation9 + $0xc8] sm:$0xff]
    %v1111 = vld [vmem:[#allocation9 + $0xd0] sm:$0xff]
    %v1112 = vld [vmem:[#allocation9 + $0xd8] sm:$0xff]
    %v1113 = vld [vmem:[#allocation9 + $0xe0] sm:$0xff]
    %v1114 = vld [vmem:[#allocation9 + $0xe8] sm:$0xff]
    %v1115 = vld [vmem:[#allocation9 + $0xf0] sm:$0xff]
    %v1116 = vld [vmem:[#allocation9 + $0xf8] sm:$0xff]
    %v1149 = vunpack.c.l.b16 %v1085
    %v1150 = vunpack.c.h.b16 %v1085
    %v1151 = vunpack.c.l.b16 %v1086
    %v1152 = vunpack.c.h.b16 %v1086
    %v1153 = vunpack.c.l.b16 %v1087
    %v1154 = vunpack.c.h.b16 %v1087
    %v1155 = vunpack.c.l.b16 %v1088
    %v1156 = vunpack.c.h.b16 %v1088
    %v1157 = vunpack.c.l.b16 %v1089
    %v1158 = vunpack.c.h.b16 %v1089
    %v1159 = vunpack.c.l.b16 %v1090
    %v1160 = vunpack.c.h.b16 %v1090
    %v1161 = vunpack.c.l.b16 %v1091
    %v1162 = vunpack.c.h.b16 %v1091
    %v1163 = vunpack.c.l.b16 %v1092
    %v1164 = vunpack.c.h.b16 %v1092
    %v1165 = vunpack.c.l.b16 %v1093
    %v1166 = vunpack.c.h.b16 %v1093
    %v1167 = vunpack.c.l.b16 %v1094
    %v1168 = vunpack.c.h.b16 %v1094
    %v1169 = vunpack.c.l.b16 %v1095
    %v1170 = vunpack.c.h.b16 %v1095
    %v1171 = vunpack.c.l.b16 %v1096
    %v1172 = vunpack.c.h.b16 %v1096
    %v1173 = vunpack.c.l.b16 %v1097
    %v1174 = vunpack.c.h.b16 %v1097
    %v1175 = vunpack.c.l.b16 %v1098
    %v1176 = vunpack.c.h.b16 %v1098
    %v1177 = vunpack.c.l.b16 %v1099
    %v1178 = vunpack.c.h.b16 %v1099
    %v1179 = vunpack.c.l.b16 %v1100
    %v1180 = vunpack.c.h.b16 %v1100
    %v1181 = vunpack.c.l.b16 %v1101
    %v1182 = vunpack.c.h.b16 %v1101
    %v1183 = vunpack.c.l.b16 %v1102
    %v1184 = vunpack.c.h.b16 %v1102
    %v1185 = vunpack.c.l.b16 %v1103
    %v1186 = vunpack.c.h.b16 %v1103
    %v1187 = vunpack.c.l.b16 %v1104
    %v1188 = vunpack.c.h.b16 %v1104
    %v1189 = vunpack.c.l.b16 %v1105
    %v1190 = vunpack.c.h.b16 %v1105
    %v1191 = vunpack.c.l.b16 %v1106
    %v1192 = vunpack.c.h.b16 %v1106
    %v1193 = vunpack.c.l.b16 %v1107
    %v1194 = vunpack.c.h.b16 %v1107
    %v1195 = vunpack.c.l.b16 %v1108
    %v1196 = vunpack.c.h.b16 %v1108
    %v1197 = vunpack.c.l.b16 %v1109
    %v1198 = vunpack.c.h.b16 %v1109
    %v1199 = vunpack.c.l.b16 %v1110
    %v1200 = vunpack.c.h.b16 %v1110
    %v1201 = vunpack.c.l.b16 %v1111
    %v1202 = vunpack.c.h.b16 %v1111
    %v1203 = vunpack.c.l.b16 %v1112
    %v1204 = vunpack.c.h.b16 %v1112
    %v1205 = vunpack.c.l.b16 %v1113
    %v1206 = vunpack.c.h.b16 %v1113
    %v1207 = vunpack.c.l.b16 %v1114
    %v1208 = vunpack.c.h.b16 %v1114
    %v1209 = vunpack.c.l.b16 %v1115
    %v1210 = vunpack.c.h.b16 %v1115
    %v1211 = vunpack.c.l.b16 %v1116
    %v1212 = vunpack.c.h.b16 %v1116
    %v1213 = vpack.c.b16 %v1153, %v1149
    %v1214 = vpack.c.b16 %v1154, %v1150
    %v1215 = vpack.c.b16 %v1155, %v1151
    %v1216 = vpack.c.b16 %v1156, %v1152
    %v1217 = vpack.c.b16 %v1161, %v1157
    %v1218 = vpack.c.b16 %v1162, %v1158
    %v1219 = vpack.c.b16 %v1163, %v1159
    %v1220 = vpack.c.b16 %v1164, %v1160
    %v1221 = vpack.c.b16 %v1169, %v1165
    %v1222 = vpack.c.b16 %v1170, %v1166
    %v1223 = vpack.c.b16 %v1171, %v1167
    %v1224 = vpack.c.b16 %v1172, %v1168
    %v1225 = vpack.c.b16 %v1177, %v1173
    %v1226 = vpack.c.b16 %v1178, %v1174
    %v1227 = vpack.c.b16 %v1179, %v1175
    %v1228 = vpack.c.b16 %v1180, %v1176
    %v1229 = vpack.c.b16 %v1185, %v1181
    %v1230 = vpack.c.b16 %v1186, %v1182
    %v1231 = vpack.c.b16 %v1187, %v1183
    %v1232 = vpack.c.b16 %v1188, %v1184
    %v1233 = vpack.c.b16 %v1193, %v1189
    %v1234 = vpack.c.b16 %v1194, %v1190
    %v1235 = vpack.c.b16 %v1195, %v1191
    %v1236 = vpack.c.b16 %v1196, %v1192
    %v1237 = vpack.c.b16 %v1201, %v1197
    %v1238 = vpack.c.b16 %v1202, %v1198
    %v1239 = vpack.c.b16 %v1203, %v1199
    %v1240 = vpack.c.b16 %v1204, %v1200
    %v1241 = vpack.c.b16 %v1209, %v1205
    %v1242 = vpack.c.b16 %v1210, %v1206
    %v1243 = vpack.c.b16 %v1211, %v1207
    %v1244 = vpack.c.b16 %v1212, %v1208
    %1277 = vmatprep.subr.bf16.mxu0 %v1242
    %1278 = vmatpush1.bf16.msra.mxu0 %v1241
    %1279 = vmatprep.subr.bf16.mxu0 %v1238
    %1280 = vmatpush1.bf16.msra.mxu0 %v1237
    %1281 = vmatprep.subr.bf16.mxu0 %v1234
    %1282 = vmatpush1.bf16.msra.mxu0 %v1233
    %1283 = vmatprep.subr.bf16.mxu0 %v1230
    %1284 = vmatpush1.bf16.msra.mxu0 %v1229
    %1285 = vmatprep.subr.bf16.mxu0 %v1226
    %1286 = vmatpush1.bf16.msra.mxu0 %v1225
    %1287 = vmatprep.subr.bf16.mxu0 %v1222
    %1288 = vmatpush1.bf16.msra.mxu0 %v1221
    %1289 = vmatprep.subr.bf16.mxu0 %v1218
    %1290 = vmatpush1.bf16.msra.mxu0 %v1217
    %1291 = vmatprep.subr.bf16.mxu0 %v1214
    %1292 = vmatpush1.bf16.msra.mxu0 %v1213
    %1293 = vmatprep.subr.bf16.mxu0 0
    %1294 = vmatpush2.bf16.msra.mxu0 0
    %1295 = vmatprep.subr.bf16.mxu0 0
    %1296 = vmatpush2.bf16.msra.mxu0 0
    %1297 = vmatprep.subr.bf16.mxu0 0
    %1298 = vmatpush2.bf16.msra.mxu0 0
    %1299 = vmatprep.subr.bf16.mxu0 0
    %1300 = vmatpush2.bf16.msra.mxu0 0
    %1301 = vmatprep.subr.bf16.mxu0 0
    %1302 = vmatpush2.bf16.msra.mxu0 0
    %1303 = vmatprep.subr.bf16.mxu0 0
    %1304 = vmatpush2.bf16.msra.mxu0 0
    %1305 = vmatprep.subr.bf16.mxu0 0
    %1306 = vmatpush2.bf16.msra.mxu0 0
    %1307 = vmatprep.subr.bf16.mxu0 0
    %1308 = vmatpush2.bf16.msra.mxu0 0
    %1309 = vmatprep.mubr.bf16.mxu0 0
    %1310 = vmatmul.mubr.bf16.gmra.mxu0 %v1084
    %v1311 = vpop.f32.mrf.mxu0
    %v1312 = vadd.f32 0.0, %v1311
    %v1313 = vpop.f32.mrf.mxu0
    %v1314 = vadd.f32 0.0, %v1313
    %v1315 = vpop.f32.mrf.mxu0
    %v1316 = vpop.f32.mrf.mxu0
    %1317 = vdwg.mxu0
    %1318 = vmatprep.subr.bf16.mxu0 %v1244
    %1319 = vmatpush1.bf16.msra.mxu0 %v1243
    %1320 = vmatprep.subr.bf16.mxu0 %v1240
    %1321 = vmatpush1.bf16.msra.mxu0 %v1239
    %1322 = vmatprep.subr.bf16.mxu0 %v1236
    %1323 = vmatpush1.bf16.msra.mxu0 %v1235
    %1324 = vmatprep.subr.bf16.mxu0 %v1232
    %1325 = vmatpush1.bf16.msra.mxu0 %v1231
    %1326 = vmatprep.subr.bf16.mxu0 %v1228
    %1327 = vmatpush1.bf16.msra.mxu0 %v1227
    %1328 = vmatprep.subr.bf16.mxu0 %v1224
    %1329 = vmatpush1.bf16.msra.mxu0 %v1223
    %1330 = vmatprep.subr.bf16.mxu0 %v1220
    %1331 = vmatpush1.bf16.msra.mxu0 %v1219
    %1332 = vmatprep.subr.bf16.mxu0 %v1216
    %1333 = vmatpush1.bf16.msra.mxu0 %v1215
    %1334 = vmatprep.subr.bf16.mxu0 0
    %1335 = vmatpush2.bf16.msra.mxu0 0
    %1336 = vmatprep.subr.bf16.mxu0 0
    %1337 = vmatpush2.bf16.msra.mxu0 0
    %1338 = vmatprep.subr.bf16.mxu0 0
    %1339 = vmatpush2.bf16.msra.mxu0 0
    %1340 = vmatprep.subr.bf16.mxu0 0
    %1341 = vmatpush2.bf16.msra.mxu0 0
    %1342 = vmatprep.subr.bf16.mxu0 0
    %1343 = vmatpush2.bf16.msra.mxu0 0
    %1344 = vmatprep.subr.bf16.mxu0 0
    %1345 = vmatpush2.bf16.msra.mxu0 0
    %1346 = vmatprep.subr.bf16.mxu0 0
    %1347 = vmatpush2.bf16.msra.mxu0 0
    %1348 = vmatprep.subr.bf16.mxu0 0
    %1349 = vmatpush2.bf16.msra.mxu0 0
    %1350 = vmatprep.mubr.bf16.mxu0 0
    %1351 = vmatmul.mubr.bf16.gmra.mxu0 %v1084
    %v1352 = vpop.f32.mrf.mxu0
    %v1353 = vadd.f32 0.0, %v1352
    %v1354 = vpop.f32.mrf.mxu0
    %v1355 = vadd.f32 0.0, %v1354
    %v1356 = vpop.f32.mrf.mxu0
    %v1357 = vpop.f32.mrf.mxu0
    %1358 = vdwg.mxu0
    %v1359 = vadd.f32 %v429, %v1312
    %v1360 = vadd.f32 %v431, %v1314
    %v1361 = vadd.f32 %v470, %v1353
    %v1362 = vadd.f32 %v472, %v1355
    %v1363 = vxor.u32 %v1359, 2147483648
    %v1364 = vxor.u32 %v1360, 2147483648
    %v1365 = vmul.f32 %v1363, 1.442695
    %v1366 = vpow.pop %v1365
    %v1367 = vmul.f32 %v1364, 1.442695
    %v1368 = vpow.pop %v1367
    %v1369 = vadd.f32 %v1366, 1.0
    %v1370 = vadd.f32 %v1368, 1.0
    %v1371 = vrcp.pop %v1369
    %v1372 = vmul.f32 1.0, %v1371
    %v1373 = vrcp.pop %v1370
    %v1374 = vmul.f32 1.0, %v1373
    %v1375 = vtanh.pop %v1361
    %v1376 = vxor.u32 %v1362, 2147483648
    %v1377 = vmul.f32 %v1376, 1.442695
    %v1378 = vpow.pop %v1377
    %v1379 = vadd.f32 %v1378, 1.0
    %v1380 = vrcp.pop %v1379
    %v1381 = vmul.f32 1.0, %v1380
    %v1382 = vmul.f32 %v1374, %v1079
    %v1383 = vmul.f32 %v1372, %v1375
    %v1384 = vadd.f32 %v1382, %v1383
    %v1385 = vtanh.pop %v1384
    %v1386 = vmul.f32 %v1381, %v1385
    %s1387 = scalar_lea.vmem [#allocation2], 16
    %1388 = vst [vmem:[%s1387] sm:$0xff] %v1386
    %v1389 = vpack.c.bf16 %v1386, %v1386
    %v1390 = vld [vmem:[#allocation9] sm:$0xff]
    %v1391 = vld [vmem:[#allocation9 + $0x8] sm:$0xff]
    %v1392 = vld [vmem:[#allocation9 + $0x10] sm:$0xff]
    %v1393 = vld [vmem:[#allocation9 + $0x18] sm:$0xff]
    %v1394 = vld [vmem:[#allocation9 + $0x20] sm:$0xff]
    %v1395 = vld [vmem:[#allocation9 + $0x28] sm:$0xff]
    %v1396 = vld [vmem:[#allocation9 + $0x30] sm:$0xff]
    %v1397 = vld [vmem:[#allocation9 + $0x38] sm:$0xff]
    %v1398 = vld [vmem:[#allocation9 + $0x40] sm:$0xff]
    %v1399 = vld [vmem:[#allocation9 + $0x48] sm:$0xff]
    %v1400 = vld [vmem:[#allocation9 + $0x50] sm:$0xff]
    %v1401 = vld [vmem:[#allocation9 + $0x58] sm:$0xff]
    %v1402 = vld [vmem:[#allocation9 + $0x60] sm:$0xff]
    %v1403 = vld [vmem:[#allocation9 + $0x68] sm:$0xff]
    %v1404 = vld [vmem:[#allocation9 + $0x70] sm:$0xff]
    %v1405 = vld [vmem:[#allocation9 + $0x78] sm:$0xff]
    %v1406 = vld [vmem:[#allocation9 + $0x80] sm:$0xff]
    %v1407 = vld [vmem:[#allocation9 + $0x88] sm:$0xff]
    %v1408 = vld [vmem:[#allocation9 + $0x90] sm:$0xff]
    %v1409 = vld [vmem:[#allocation9 + $0x98] sm:$0xff]
    %v1410 = vld [vmem:[#allocation9 + $0xa0] sm:$0xff]
    %v1411 = vld [vmem:[#allocation9 + $0xa8] sm:$0xff]
    %v1412 = vld [vmem:[#allocation9 + $0xb0] sm:$0xff]
    %v1413 = vld [vmem:[#allocation9 + $0xb8] sm:$0xff]
    %v1414 = vld [vmem:[#allocation9 + $0xc0] sm:$0xff]
    %v1415 = vld [vmem:[#allocation9 + $0xc8] sm:$0xff]
    %v1416 = vld [vmem:[#allocation9 + $0xd0] sm:$0xff]
    %v1417 = vld [vmem:[#allocation9 + $0xd8] sm:$0xff]
    %v1418 = vld [vmem:[#allocation9 + $0xe0] sm:$0xff]
    %v1419 = vld [vmem:[#allocation9 + $0xe8] sm:$0xff]
    %v1420 = vld [vmem:[#allocation9 + $0xf0] sm:$0xff]
    %v1421 = vld [vmem:[#allocation9 + $0xf8] sm:$0xff]
    %v1454 = vunpack.c.l.b16 %v1390
    %v1455 = vunpack.c.h.b16 %v1390
    %v1456 = vunpack.c.l.b16 %v1391
    %v1457 = vunpack.c.h.b16 %v1391
    %v1458 = vunpack.c.l.b16 %v1392
    %v1459 = vunpack.c.h.b16 %v1392
    %v1460 = vunpack.c.l.b16 %v1393
    %v1461 = vunpack.c.h.b16 %v1393
    %v1462 = vunpack.c.l.b16 %v1394
    %v1463 = vunpack.c.h.b16 %v1394
    %v1464 = vunpack.c.l.b16 %v1395
    %v1465 = vunpack.c.h.b16 %v1395
    %v1466 = vunpack.c.l.b16 %v1396
    %v1467 = vunpack.c.h.b16 %v1396
    %v1468 = vunpack.c.l.b16 %v1397
    %v1469 = vunpack.c.h.b16 %v1397
    %v1470 = vunpack.c.l.b16 %v1398
    %v1471 = vunpack.c.h.b16 %v1398
    %v1472 = vunpack.c.l.b16 %v1399
    %v1473 = vunpack.c.h.b16 %v1399
    %v1474 = vunpack.c.l.b16 %v1400
    %v1475 = vunpack.c.h.b16 %v1400
    %v1476 = vunpack.c.l.b16 %v1401
    %v1477 = vunpack.c.h.b16 %v1401
    %v1478 = vunpack.c.l.b16 %v1402
    %v1479 = vunpack.c.h.b16 %v1402
    %v1480 = vunpack.c.l.b16 %v1403
    %v1481 = vunpack.c.h.b16 %v1403
    %v1482 = vunpack.c.l.b16 %v1404
    %v1483 = vunpack.c.h.b16 %v1404
    %v1484 = vunpack.c.l.b16 %v1405
    %v1485 = vunpack.c.h.b16 %v1405
    %v1486 = vunpack.c.l.b16 %v1406
    %v1487 = vunpack.c.h.b16 %v1406
    %v1488 = vunpack.c.l.b16 %v1407
    %v1489 = vunpack.c.h.b16 %v1407
    %v1490 = vunpack.c.l.b16 %v1408
    %v1491 = vunpack.c.h.b16 %v1408
    %v1492 = vunpack.c.l.b16 %v1409
    %v1493 = vunpack.c.h.b16 %v1409
    %v1494 = vunpack.c.l.b16 %v1410
    %v1495 = vunpack.c.h.b16 %v1410
    %v1496 = vunpack.c.l.b16 %v1411
    %v1497 = vunpack.c.h.b16 %v1411
    %v1498 = vunpack.c.l.b16 %v1412
    %v1499 = vunpack.c.h.b16 %v1412
    %v1500 = vunpack.c.l.b16 %v1413
    %v1501 = vunpack.c.h.b16 %v1413
    %v1502 = vunpack.c.l.b16 %v1414
    %v1503 = vunpack.c.h.b16 %v1414
    %v1504 = vunpack.c.l.b16 %v1415
    %v1505 = vunpack.c.h.b16 %v1415
    %v1506 = vunpack.c.l.b16 %v1416
    %v1507 = vunpack.c.h.b16 %v1416
    %v1508 = vunpack.c.l.b16 %v1417
    %v1509 = vunpack.c.h.b16 %v1417
    %v1510 = vunpack.c.l.b16 %v1418
    %v1511 = vunpack.c.h.b16 %v1418
    %v1512 = vunpack.c.l.b16 %v1419
    %v1513 = vunpack.c.h.b16 %v1419
    %v1514 = vunpack.c.l.b16 %v1420
    %v1515 = vunpack.c.h.b16 %v1420
    %v1516 = vunpack.c.l.b16 %v1421
    %v1517 = vunpack.c.h.b16 %v1421
    %v1518 = vpack.c.b16 %v1458, %v1454
    %v1519 = vpack.c.b16 %v1459, %v1455
    %v1520 = vpack.c.b16 %v1460, %v1456
    %v1521 = vpack.c.b16 %v1461, %v1457
    %v1522 = vpack.c.b16 %v1466, %v1462
    %v1523 = vpack.c.b16 %v1467, %v1463
    %v1524 = vpack.c.b16 %v1468, %v1464
    %v1525 = vpack.c.b16 %v1469, %v1465
    %v1526 = vpack.c.b16 %v1474, %v1470
    %v1527 = vpack.c.b16 %v1475, %v1471
    %v1528 = vpack.c.b16 %v1476, %v1472
    %v1529 = vpack.c.b16 %v1477, %v1473
    %v1530 = vpack.c.b16 %v1482, %v1478
    %v1531 = vpack.c.b16 %v1483, %v1479
    %v1532 = vpack.c.b16 %v1484, %v1480
    %v1533 = vpack.c.b16 %v1485, %v1481
    %v1534 = vpack.c.b16 %v1490, %v1486
    %v1535 = vpack.c.b16 %v1491, %v1487
    %v1536 = vpack.c.b16 %v1492, %v1488
    %v1537 = vpack.c.b16 %v1493, %v1489
    %v1538 = vpack.c.b16 %v1498, %v1494
    %v1539 = vpack.c.b16 %v1499, %v1495
    %v1540 = vpack.c.b16 %v1500, %v1496
    %v1541 = vpack.c.b16 %v1501, %v1497
    %v1542 = vpack.c.b16 %v1506, %v1502
    %v1543 = vpack.c.b16 %v1507, %v1503
    %v1544 = vpack.c.b16 %v1508, %v1504
    %v1545 = vpack.c.b16 %v1509, %v1505
    %v1546 = vpack.c.b16 %v1514, %v1510
    %v1547 = vpack.c.b16 %v1515, %v1511
    %v1548 = vpack.c.b16 %v1516, %v1512
    %v1549 = vpack.c.b16 %v1517, %v1513
    %1582 = vmatprep.subr.bf16.mxu0 %v1547
    %1583 = vmatpush1.bf16.msra.mxu0 %v1546
    %1584 = vmatprep.subr.bf16.mxu0 %v1543
    %1585 = vmatpush1.bf16.msra.mxu0 %v1542
    %1586 = vmatprep.subr.bf16.mxu0 %v1539
    %1587 = vmatpush1.bf16.msra.mxu0 %v1538
    %1588 = vmatprep.subr.bf16.mxu0 %v1535
    %1589 = vmatpush1.bf16.msra.mxu0 %v1534
    %1590 = vmatprep.subr.bf16.mxu0 %v1531
    %1591 = vmatpush1.bf16.msra.mxu0 %v1530
    %1592 = vmatprep.subr.bf16.mxu0 %v1527
    %1593 = vmatpush1.bf16.msra.mxu0 %v1526
    %1594 = vmatprep.subr.bf16.mxu0 %v1523
    %1595 = vmatpush1.bf16.msra.mxu0 %v1522
    %1596 = vmatprep.subr.bf16.mxu0 %v1519
    %1597 = vmatpush1.bf16.msra.mxu0 %v1518
    %1598 = vmatprep.subr.bf16.mxu0 0
    %1599 = vmatpush2.bf16.msra.mxu0 0
    %1600 = vmatprep.subr.bf16.mxu0 0
    %1601 = vmatpush2.bf16.msra.mxu0 0
    %1602 = vmatprep.subr.bf16.mxu0 0
    %1603 = vmatpush2.bf16.msra.mxu0 0
    %1604 = vmatprep.subr.bf16.mxu0 0
    %1605 = vmatpush2.bf16.msra.mxu0 0
    %1606 = vmatprep.subr.bf16.mxu0 0
    %1607 = vmatpush2.bf16.msra.mxu0 0
    %1608 = vmatprep.subr.bf16.mxu0 0
    %1609 = vmatpush2.bf16.msra.mxu0 0
    %1610 = vmatprep.subr.bf16.mxu0 0
    %1611 = vmatpush2.bf16.msra.mxu0 0
    %1612 = vmatprep.subr.bf16.mxu0 0
    %1613 = vmatpush2.bf16.msra.mxu0 0
    %1614 = vmatprep.mubr.bf16.mxu0 0
    %1615 = vmatmul.mubr.bf16.gmra.mxu0 %v1389
    %v1616 = vpop.f32.mrf.mxu0
    %v1617 = vadd.f32 0.0, %v1616
    %v1618 = vpop.f32.mrf.mxu0
    %v1619 = vadd.f32 0.0, %v1618
    %v1620 = vpop.f32.mrf.mxu0
    %v1621 = vpop.f32.mrf.mxu0
    %1622 = vdwg.mxu0
    %1623 = vmatprep.subr.bf16.mxu0 %v1549
    %1624 = vmatpush1.bf16.msra.mxu0 %v1548
    %1625 = vmatprep.subr.bf16.mxu0 %v1545
    %1626 = vmatpush1.bf16.msra.mxu0 %v1544
    %1627 = vmatprep.subr.bf16.mxu0 %v1541
    %1628 = vmatpush1.bf16.msra.mxu0 %v1540
    %1629 = vmatprep.subr.bf16.mxu0 %v1537
    %1630 = vmatpush1.bf16.msra.mxu0 %v1536
    %1631 = vmatprep.subr.bf16.mxu0 %v1533
    %1632 = vmatpush1.bf16.msra.mxu0 %v1532
    %1633 = vmatprep.subr.bf16.mxu0 %v1529
    %1634 = vmatpush1.bf16.msra.mxu0 %v1528
    %1635 = vmatprep.subr.bf16.mxu0 %v1525
    %1636 = vmatpush1.bf16.msra.mxu0 %v1524
    %1637 = vmatprep.subr.bf16.mxu0 %v1521
    %1638 = vmatpush1.bf16.msra.mxu0 %v1520
    %1639 = vmatprep.subr.bf16.mxu0 0
    %1640 = vmatpush2.bf16.msra.mxu0 0
    %1641 = vmatprep.subr.bf16.mxu0 0
    %1642 = vmatpush2.bf16.msra.mxu0 0
    %1643 = vmatprep.subr.bf16.mxu0 0
    %1644 = vmatpush2.bf16.msra.mxu0 0
    %1645 = vmatprep.subr.bf16.mxu0 0
    %1646 = vmatpush2.bf16.msra.mxu0 0
    %1647 = vmatprep.subr.bf16.mxu0 0
    %1648 = vmatpush2.bf16.msra.mxu0 0
    %1649 = vmatprep.subr.bf16.mxu0 0
    %1650 = vmatpush2.bf16.msra.mxu0 0
    %1651 = vmatprep.subr.bf16.mxu0 0
    %1652 = vmatpush2.bf16.msra.mxu0 0
    %1653 = vmatprep.subr.bf16.mxu0 0
    %1654 = vmatpush2.bf16.msra.mxu0 0
    %1655 = vmatprep.mubr.bf16.mxu0 0
    %1656 = vmatmul.mubr.bf16.gmra.mxu0 %v1389
    %v1657 = vpop.f32.mrf.mxu0
    %v1658 = vadd.f32 0.0, %v1657
    %v1659 = vpop.f32.mrf.mxu0
    %v1660 = vadd.f32 0.0, %v1659
    %v1661 = vpop.f32.mrf.mxu0
    %v1662 = vpop.f32.mrf.mxu0
    %1663 = vdwg.mxu0
    %v1664 = vadd.f32 %v429, %v1617
    %v1665 = vadd.f32 %v431, %v1619
    %v1666 = vadd.f32 %v470, %v1658
    %v1667 = vadd.f32 %v472, %v1660
    %v1668 = vxor.u32 %v1664, 2147483648
    %v1669 = vxor.u32 %v1665, 2147483648
    %v1670 = vmul.f32 %v1668, 1.442695
    %v1671 = vpow.pop %v1670
    %v1672 = vmul.f32 %v1669, 1.442695
    %v1673 = vpow.pop %v1672
    %v1674 = vadd.f32 %v1671, 1.0
    %v1675 = vadd.f32 %v1673, 1.0
    %v1676 = vrcp.pop %v1674
    %v1677 = vmul.f32 1.0, %v1676
    %v1678 = vrcp.pop %v1675
    %v1679 = vmul.f32 1.0, %v1678
    %v1680 = vtanh.pop %v1666
    %v1681 = vxor.u32 %v1667, 2147483648
    %v1682 = vmul.f32 %v1681, 1.442695
    %v1683 = vpow.pop %v1682
    %v1684 = vadd.f32 %v1683, 1.0
    %v1685 = vrcp.pop %v1684
    %v1686 = vmul.f32 1.0, %v1685
    %v1687 = vmul.f32 %v1679, %v1384
    %v1688 = vmul.f32 %v1677, %v1680
    %v1689 = vadd.f32 %v1687, %v1688
    %v1690 = vtanh.pop %v1689
    %v1691 = vmul.f32 %v1686, %v1690
    %s1692 = scalar_lea.vmem [#allocation2], 24
    %1693 = vst [vmem:[%s1692] sm:$0xff] %v1691
    %v1694 = vpack.c.bf16 %v1691, %v1691
    %v1695 = vld [vmem:[#allocation9] sm:$0xff]
    %v1696 = vld [vmem:[#allocation9 + $0x8] sm:$0xff]
    %v1697 = vld [vmem:[#allocation9 + $0x10] sm:$0xff]
    %v1698 = vld [vmem:[#allocation9 + $0x18] sm:$0xff]
    %v1699 = vld [vmem:[#allocation9 + $0x20] sm:$0xff]
    %v1700 = vld [vmem:[#allocation9 + $0x28] sm:$0xff]
    %v1701 = vld [vmem:[#allocation9 + $0x30] sm:$0xff]
    %v1702 = vld [vmem:[#allocation9 + $0x38] sm:$0xff]
    %v1703 = vld [vmem:[#allocation9 + $0x40] sm:$0xff]
    %v1704 = vld [vmem:[#allocation9 + $0x48] sm:$0xff]
    %v1705 = vld [vmem:[#allocation9 + $0x50] sm:$0xff]
    %v1706 = vld [vmem:[#allocation9 + $0x58] sm:$0xff]
    %v1707 = vld [vmem:[#allocation9 + $0x60] sm:$0xff]
    %v1708 = vld [vmem:[#allocation9 + $0x68] sm:$0xff]
    %v1709 = vld [vmem:[#allocation9 + $0x70] sm:$0xff]
    %v1710 = vld [vmem:[#allocation9 + $0x78] sm:$0xff]
    %v1711 = vld [vmem:[#allocation9 + $0x80] sm:$0xff]
    %v1712 = vld [vmem:[#allocation9 + $0x88] sm:$0xff]
    %v1713 = vld [vmem:[#allocation9 + $0x90] sm:$0xff]
    %v1714 = vld [vmem:[#allocation9 + $0x98] sm:$0xff]
    %v1715 = vld [vmem:[#allocation9 + $0xa0] sm:$0xff]
    %v1716 = vld [vmem:[#allocation9 + $0xa8] sm:$0xff]
    %v1717 = vld [vmem:[#allocation9 + $0xb0] sm:$0xff]
    %v1718 = vld [vmem:[#allocation9 + $0xb8] sm:$0xff]
    %v1719 = vld [vmem:[#allocation9 + $0xc0] sm:$0xff]
    %v1720 = vld [vmem:[#allocation9 + $0xc8] sm:$0xff]
    %v1721 = vld [vmem:[#allocation9 + $0xd0] sm:$0xff]
    %v1722 = vld [vmem:[#allocation9 + $0xd8] sm:$0xff]
    %v1723 = vld [vmem:[#allocation9 + $0xe0] sm:$0xff]
    %v1724 = vld [vmem:[#allocation9 + $0xe8] sm:$0xff]
    %v1725 = vld [vmem:[#allocation9 + $0xf0] sm:$0xff]
    %v1726 = vld [vmem:[#allocation9 + $0xf8] sm:$0xff]
    %v1759 = vunpack.c.l.b16 %v1695
    %v1760 = vunpack.c.h.b16 %v1695
    %v1761 = vunpack.c.l.b16 %v1696
    %v1762 = vunpack.c.h.b16 %v1696
    %v1763 = vunpack.c.l.b16 %v1697
    %v1764 = vunpack.c.h.b16 %v1697
    %v1765 = vunpack.c.l.b16 %v1698
    %v1766 = vunpack.c.h.b16 %v1698
    %v1767 = vunpack.c.l.b16 %v1699
    %v1768 = vunpack.c.h.b16 %v1699
    %v1769 = vunpack.c.l.b16 %v1700
    %v1770 = vunpack.c.h.b16 %v1700
    %v1771 = vunpack.c.l.b16 %v1701
    %v1772 = vunpack.c.h.b16 %v1701
    %v1773 = vunpack.c.l.b16 %v1702
    %v1774 = vunpack.c.h.b16 %v1702
    %v1775 = vunpack.c.l.b16 %v1703
    %v1776 = vunpack.c.h.b16 %v1703
    %v1777 = vunpack.c.l.b16 %v1704
    %v1778 = vunpack.c.h.b16 %v1704
    %v1779 = vunpack.c.l.b16 %v1705
    %v1780 = vunpack.c.h.b16 %v1705
    %v1781 = vunpack.c.l.b16 %v1706
    %v1782 = vunpack.c.h.b16 %v1706
    %v1783 = vunpack.c.l.b16 %v1707
    %v1784 = vunpack.c.h.b16 %v1707
    %v1785 = vunpack.c.l.b16 %v1708
    %v1786 = vunpack.c.h.b16 %v1708
    %v1787 = vunpack.c.l.b16 %v1709
    %v1788 = vunpack.c.h.b16 %v1709
    %v1789 = vunpack.c.l.b16 %v1710
    %v1790 = vunpack.c.h.b16 %v1710
    %v1791 = vunpack.c.l.b16 %v1711
    %v1792 = vunpack.c.h.b16 %v1711
    %v1793 = vunpack.c.l.b16 %v1712
    %v1794 = vunpack.c.h.b16 %v1712
    %v1795 = vunpack.c.l.b16 %v1713
    %v1796 = vunpack.c.h.b16 %v1713
    %v1797 = vunpack.c.l.b16 %v1714
    %v1798 = vunpack.c.h.b16 %v1714
    %v1799 = vunpack.c.l.b16 %v1715
    %v1800 = vunpack.c.h.b16 %v1715
    %v1801 = vunpack.c.l.b16 %v1716
    %v1802 = vunpack.c.h.b16 %v1716
    %v1803 = vunpack.c.l.b16 %v1717
    %v1804 = vunpack.c.h.b16 %v1717
    %v1805 = vunpack.c.l.b16 %v1718
    %v1806 = vunpack.c.h.b16 %v1718
    %v1807 = vunpack.c.l.b16 %v1719
    %v1808 = vunpack.c.h.b16 %v1719
    %v1809 = vunpack.c.l.b16 %v1720
    %v1810 = vunpack.c.h.b16 %v1720
    %v1811 = vunpack.c.l.b16 %v1721
    %v1812 = vunpack.c.h.b16 %v1721
    %v1813 = vunpack.c.l.b16 %v1722
    %v1814 = vunpack.c.h.b16 %v1722
    %v1815 = vunpack.c.l.b16 %v1723
    %v1816 = vunpack.c.h.b16 %v1723
    %v1817 = vunpack.c.l.b16 %v1724
    %v1818 = vunpack.c.h.b16 %v1724
    %v1819 = vunpack.c.l.b16 %v1725
    %v1820 = vunpack.c.h.b16 %v1725
    %v1821 = vunpack.c.l.b16 %v1726
    %v1822 = vunpack.c.h.b16 %v1726
    %v1823 = vpack.c.b16 %v1763, %v1759
    %v1824 = vpack.c.b16 %v1764, %v1760
    %v1825 = vpack.c.b16 %v1765, %v1761
    %v1826 = vpack.c.b16 %v1766, %v1762
    %v1827 = vpack.c.b16 %v1771, %v1767
    %v1828 = vpack.c.b16 %v1772, %v1768
    %v1829 = vpack.c.b16 %v1773, %v1769
    %v1830 = vpack.c.b16 %v1774, %v1770
    %v1831 = vpack.c.b16 %v1779, %v1775
    %v1832 = vpack.c.b16 %v1780, %v1776
    %v1833 = vpack.c.b16 %v1781, %v1777
    %v1834 = vpack.c.b16 %v1782, %v1778
    %v1835 = vpack.c.b16 %v1787, %v1783
    %v1836 = vpack.c.b16 %v1788, %v1784
    %v1837 = vpack.c.b16 %v1789, %v1785
    %v1838 = vpack.c.b16 %v1790, %v1786
    %v1839 = vpack.c.b16 %v1795, %v1791
    %v1840 = vpack.c.b16 %v1796, %v1792
    %v1841 = vpack.c.b16 %v1797, %v1793
    %v1842 = vpack.c.b16 %v1798, %v1794
    %v1843 = vpack.c.b16 %v1803, %v1799
    %v1844 = vpack.c.b16 %v1804, %v1800
    %v1845 = vpack.c.b16 %v1805, %v1801
    %v1846 = vpack.c.b16 %v1806, %v1802
    %v1847 = vpack.c.b16 %v1811, %v1807
    %v1848 = vpack.c.b16 %v1812, %v1808
    %v1849 = vpack.c.b16 %v1813, %v1809
    %v1850 = vpack.c.b16 %v1814, %v1810
    %v1851 = vpack.c.b16 %v1819, %v1815
    %v1852 = vpack.c.b16 %v1820, %v1816
    %v1853 = vpack.c.b16 %v1821, %v1817
    %v1854 = vpack.c.b16 %v1822, %v1818
    %1887 = vmatprep.subr.bf16.mxu0 %v1852
    %1888 = vmatpush1.bf16.msra.mxu0 %v1851
    %1889 = vmatprep.subr.bf16.mxu0 %v1848
    %1890 = vmatpush1.bf16.msra.mxu0 %v1847
    %1891 = vmatprep.subr.bf16.mxu0 %v1844
    %1892 = vmatpush1.bf16.msra.mxu0 %v1843
    %1893 = vmatprep.subr.bf16.mxu0 %v1840
    %1894 = vmatpush1.bf16.msra.mxu0 %v1839
    %1895 = vmatprep.subr.bf16.mxu0 %v1836
    %1896 = vmatpush1.bf16.msra.mxu0 %v1835
    %1897 = vmatprep.subr.bf16.mxu0 %v1832
    %1898 = vmatpush1.bf16.msra.mxu0 %v1831
    %1899 = vmatprep.subr.bf16.mxu0 %v1828
    %1900 = vmatpush1.bf16.msra.mxu0 %v1827
    %1901 = vmatprep.subr.bf16.mxu0 %v1824
    %1902 = vmatpush1.bf16.msra.mxu0 %v1823
    %1903 = vmatprep.subr.bf16.mxu0 0
    %1904 = vmatpush2.bf16.msra.mxu0 0
    %1905 = vmatprep.subr.bf16.mxu0 0
    %1906 = vmatpush2.bf16.msra.mxu0 0
    %1907 = vmatprep.subr.bf16.mxu0 0
    %1908 = vmatpush2.bf16.msra.mxu0 0
    %1909 = vmatprep.subr.bf16.mxu0 0
    %1910 = vmatpush2.bf16.msra.mxu0 0
    %1911 = vmatprep.subr.bf16.mxu0 0
    %1912 = vmatpush2.bf16.msra.mxu0 0
    %1913 = vmatprep.subr.bf16.mxu0 0
    %1914 = vmatpush2.bf16.msra.mxu0 0
    %1915 = vmatprep.subr.bf16.mxu0 0
    %1916 = vmatpush2.bf16.msra.mxu0 0
    %1917 = vmatprep.subr.bf16.mxu0 0
    %1918 = vmatpush2.bf16.msra.mxu0 0
    %1919 = vmatprep.mubr.bf16.mxu0 0
    %1920 = vmatmul.mubr.bf16.gmra.mxu0 %v1694
    %v1921 = vpop.f32.mrf.mxu0
    %v1922 = vadd.f32 0.0, %v1921
    %v1923 = vpop.f32.mrf.mxu0
    %v1924 = vadd.f32 0.0, %v1923
    %v1925 = vpop.f32.mrf.mxu0
    %v1926 = vpop.f32.mrf.mxu0
    %1927 = vdwg.mxu0
    %1928 = vmatprep.subr.bf16.mxu0 %v1854
    %1929 = vmatpush1.bf16.msra.mxu0 %v1853
    %1930 = vmatprep.subr.bf16.mxu0 %v1850
    %1931 = vmatpush1.bf16.msra.mxu0 %v1849
    %1932 = vmatprep.subr.bf16.mxu0 %v1846
    %1933 = vmatpush1.bf16.msra.mxu0 %v1845
    %1934 = vmatprep.subr.bf16.mxu0 %v1842
    %1935 = vmatpush1.bf16.msra.mxu0 %v1841
    %1936 = vmatprep.subr.bf16.mxu0 %v1838
    %1937 = vmatpush1.bf16.msra.mxu0 %v1837
    %1938 = vmatprep.subr.bf16.mxu0 %v1834
    %1939 = vmatpush1.bf16.msra.mxu0 %v1833
    %1940 = vmatprep.subr.bf16.mxu0 %v1830
    %1941 = vmatpush1.bf16.msra.mxu0 %v1829
    %1942 = vmatprep.subr.bf16.mxu0 %v1826
    %1943 = vmatpush1.bf16.msra.mxu0 %v1825
    %1944 = vmatprep.subr.bf16.mxu0 0
    %1945 = vmatpush2.bf16.msra.mxu0 0
    %1946 = vmatprep.subr.bf16.mxu0 0
    %1947 = vmatpush2.bf16.msra.mxu0 0
    %1948 = vmatprep.subr.bf16.mxu0 0
    %1949 = vmatpush2.bf16.msra.mxu0 0
    %1950 = vmatprep.subr.bf16.mxu0 0
    %1951 = vmatpush2.bf16.msra.mxu0 0
    %1952 = vmatprep.subr.bf16.mxu0 0
    %1953 = vmatpush2.bf16.msra.mxu0 0
    %1954 = vmatprep.subr.bf16.mxu0 0
    %1955 = vmatpush2.bf16.msra.mxu0 0
    %1956 = vmatprep.subr.bf16.mxu0 0
    %1957 = vmatpush2.bf16.msra.mxu0 0
    %1958 = vmatprep.subr.bf16.mxu0 0
    %1959 = vmatpush2.bf16.msra.mxu0 0
    %1960 = vmatprep.mubr.bf16.mxu0 0
    %1961 = vmatmul.mubr.bf16.gmra.mxu0 %v1694
    %v1962 = vpop.f32.mrf.mxu0
    %v1963 = vadd.f32 0.0, %v1962
    %v1964 = vpop.f32.mrf.mxu0
    %v1965 = vadd.f32 0.0, %v1964
    %v1966 = vpop.f32.mrf.mxu0
    %v1967 = vpop.f32.mrf.mxu0
    %1968 = vdwg.mxu0
    %v1969 = vadd.f32 %v429, %v1922
    %v1970 = vadd.f32 %v431, %v1924
    %v1971 = vadd.f32 %v470, %v1963
    %v1972 = vadd.f32 %v472, %v1965
    %v1973 = vxor.u32 %v1969, 2147483648
    %v1974 = vxor.u32 %v1970, 2147483648
    %v1975 = vmul.f32 %v1973, 1.442695
    %v1976 = vpow.pop %v1975
    %v1977 = vmul.f32 %v1974, 1.442695
    %v1978 = vpow.pop %v1977
    %v1979 = vadd.f32 %v1976, 1.0
    %v1980 = vadd.f32 %v1978, 1.0
    %v1981 = vrcp.pop %v1979
    %v1982 = vmul.f32 1.0, %v1981
    %v1983 = vrcp.pop %v1980
    %v1984 = vmul.f32 1.0, %v1983
    %v1985 = vtanh.pop %v1971
    %v1986 = vxor.u32 %v1972, 2147483648
    %v1987 = vmul.f32 %v1986, 1.442695
    %v1988 = vpow.pop %v1987
    %v1989 = vadd.f32 %v1988, 1.0
    %v1990 = vrcp.pop %v1989
    %v1991 = vmul.f32 1.0, %v1990
    %v1992 = vmul.f32 %v1984, %v1689
    %v1993 = vmul.f32 %v1982, %v1985
    %v1994 = vadd.f32 %v1992, %v1993
    %v1995 = vtanh.pop %v1994
    %v1996 = vmul.f32 %v1991, %v1995
    %s1997 = scalar_lea.vmem [#allocation2], 32
    %1998 = vst [vmem:[%s1997] sm:$0xff] %v1996
    %v1999 = vpack.c.bf16 %v1996, %v1996
    %v2000 = vld [vmem:[#allocation9] sm:$0xff]
    %v2001 = vld [vmem:[#allocation9 + $0x8] sm:$0xff]
    %v2002 = vld [vmem:[#allocation9 + $0x10] sm:$0xff]
    %v2003 = vld [vmem:[#allocation9 + $0x18] sm:$0xff]
    %v2004 = vld [vmem:[#allocation9 + $0x20] sm:$0xff]
    %v2005 = vld [vmem:[#allocation9 + $0x28] sm:$0xff]
    %v2006 = vld [vmem:[#allocation9 + $0x30] sm:$0xff]
    %v2007 = vld [vmem:[#allocation9 + $0x38] sm:$0xff]
    %v2008 = vld [vmem:[#allocation9 + $0x40] sm:$0xff]
    %v2009 = vld [vmem:[#allocation9 + $0x48] sm:$0xff]
    %v2010 = vld [vmem:[#allocation9 + $0x50] sm:$0xff]
    %v2011 = vld [vmem:[#allocation9 + $0x58] sm:$0xff]
    %v2012 = vld [vmem:[#allocation9 + $0x60] sm:$0xff]
    %v2013 = vld [vmem:[#allocation9 + $0x68] sm:$0xff]
    %v2014 = vld [vmem:[#allocation9 + $0x70] sm:$0xff]
    %v2015 = vld [vmem:[#allocation9 + $0x78] sm:$0xff]
    %v2016 = vld [vmem:[#allocation9 + $0x80] sm:$0xff]
    %v2017 = vld [vmem:[#allocation9 + $0x88] sm:$0xff]
    %v2018 = vld [vmem:[#allocation9 + $0x90] sm:$0xff]
    %v2019 = vld [vmem:[#allocation9 + $0x98] sm:$0xff]
    %v2020 = vld [vmem:[#allocation9 + $0xa0] sm:$0xff]
    %v2021 = vld [vmem:[#allocation9 + $0xa8] sm:$0xff]
    %v2022 = vld [vmem:[#allocation9 + $0xb0] sm:$0xff]
    %v2023 = vld [vmem:[#allocation9 + $0xb8] sm:$0xff]
    %v2024 = vld [vmem:[#allocation9 + $0xc0] sm:$0xff]
    %v2025 = vld [vmem:[#allocation9 + $0xc8] sm:$0xff]
    %v2026 = vld [vmem:[#allocation9 + $0xd0] sm:$0xff]
    %v2027 = vld [vmem:[#allocation9 + $0xd8] sm:$0xff]
    %v2028 = vld [vmem:[#allocation9 + $0xe0] sm:$0xff]
    %v2029 = vld [vmem:[#allocation9 + $0xe8] sm:$0xff]
    %v2030 = vld [vmem:[#allocation9 + $0xf0] sm:$0xff]
    %v2031 = vld [vmem:[#allocation9 + $0xf8] sm:$0xff]
    %v2064 = vunpack.c.l.b16 %v2000
    %v2065 = vunpack.c.h.b16 %v2000
    %v2066 = vunpack.c.l.b16 %v2001
    %v2067 = vunpack.c.h.b16 %v2001
    %v2068 = vunpack.c.l.b16 %v2002
    %v2069 = vunpack.c.h.b16 %v2002
    %v2070 = vunpack.c.l.b16 %v2003
    %v2071 = vunpack.c.h.b16 %v2003
    %v2072 = vunpack.c.l.b16 %v2004
    %v2073 = vunpack.c.h.b16 %v2004
    %v2074 = vunpack.c.l.b16 %v2005
    %v2075 = vunpack.c.h.b16 %v2005
    %v2076 = vunpack.c.l.b16 %v2006
    %v2077 = vunpack.c.h.b16 %v2006
    %v2078 = vunpack.c.l.b16 %v2007
    %v2079 = vunpack.c.h.b16 %v2007
    %v2080 = vunpack.c.l.b16 %v2008
    %v2081 = vunpack.c.h.b16 %v2008
    %v2082 = vunpack.c.l.b16 %v2009
    %v2083 = vunpack.c.h.b16 %v2009
    %v2084 = vunpack.c.l.b16 %v2010
    %v2085 = vunpack.c.h.b16 %v2010
    %v2086 = vunpack.c.l.b16 %v2011
    %v2087 = vunpack.c.h.b16 %v2011
    %v2088 = vunpack.c.l.b16 %v2012
    %v2089 = vunpack.c.h.b16 %v2012
    %v2090 = vunpack.c.l.b16 %v2013
    %v2091 = vunpack.c.h.b16 %v2013
    %v2092 = vunpack.c.l.b16 %v2014
    %v2093 = vunpack.c.h.b16 %v2014
    %v2094 = vunpack.c.l.b16 %v2015
    %v2095 = vunpack.c.h.b16 %v2015
    %v2096 = vunpack.c.l.b16 %v2016
    %v2097 = vunpack.c.h.b16 %v2016
    %v2098 = vunpack.c.l.b16 %v2017
    %v2099 = vunpack.c.h.b16 %v2017
    %v2100 = vunpack.c.l.b16 %v2018
    %v2101 = vunpack.c.h.b16 %v2018
    %v2102 = vunpack.c.l.b16 %v2019
    %v2103 = vunpack.c.h.b16 %v2019
    %v2104 = vunpack.c.l.b16 %v2020
    %v2105 = vunpack.c.h.b16 %v2020
    %v2106 = vunpack.c.l.b16 %v2021
    %v2107 = vunpack.c.h.b16 %v2021
    %v2108 = vunpack.c.l.b16 %v2022
    %v2109 = vunpack.c.h.b16 %v2022
    %v2110 = vunpack.c.l.b16 %v2023
    %v2111 = vunpack.c.h.b16 %v2023
    %v2112 = vunpack.c.l.b16 %v2024
    %v2113 = vunpack.c.h.b16 %v2024
    %v2114 = vunpack.c.l.b16 %v2025
    %v2115 = vunpack.c.h.b16 %v2025
    %v2116 = vunpack.c.l.b16 %v2026
    %v2117 = vunpack.c.h.b16 %v2026
    %v2118 = vunpack.c.l.b16 %v2027
    %v2119 = vunpack.c.h.b16 %v2027
    %v2120 = vunpack.c.l.b16 %v2028
    %v2121 = vunpack.c.h.b16 %v2028
    %v2122 = vunpack.c.l.b16 %v2029
    %v2123 = vunpack.c.h.b16 %v2029
    %v2124 = vunpack.c.l.b16 %v2030
    %v2125 = vunpack.c.h.b16 %v2030
    %v2126 = vunpack.c.l.b16 %v2031
    %v2127 = vunpack.c.h.b16 %v2031
    %v2128 = vpack.c.b16 %v2068, %v2064
    %v2129 = vpack.c.b16 %v2069, %v2065
    %v2130 = vpack.c.b16 %v2070, %v2066
    %v2131 = vpack.c.b16 %v2071, %v2067
    %v2132 = vpack.c.b16 %v2076, %v2072
    %v2133 = vpack.c.b16 %v2077, %v2073
    %v2134 = vpack.c.b16 %v2078, %v2074
    %v2135 = vpack.c.b16 %v2079, %v2075
    %v2136 = vpack.c.b16 %v2084, %v2080
    %v2137 = vpack.c.b16 %v2085, %v2081
    %v2138 = vpack.c.b16 %v2086, %v2082
    %v2139 = vpack.c.b16 %v2087, %v2083
    %v2140 = vpack.c.b16 %v2092, %v2088
    %v2141 = vpack.c.b16 %v2093, %v2089
    %v2142 = vpack.c.b16 %v2094, %v2090
    %v2143 = vpack.c.b16 %v2095, %v2091
    %v2144 = vpack.c.b16 %v2100, %v2096
    %v2145 = vpack.c.b16 %v2101, %v2097
    %v2146 = vpack.c.b16 %v2102, %v2098
    %v2147 = vpack.c.b16 %v2103, %v2099
    %v2148 = vpack.c.b16 %v2108, %v2104
    %v2149 = vpack.c.b16 %v2109, %v2105
    %v2150 = vpack.c.b16 %v2110, %v2106
    %v2151 = vpack.c.b16 %v2111, %v2107
    %v2152 = vpack.c.b16 %v2116, %v2112
    %v2153 = vpack.c.b16 %v2117, %v2113
    %v2154 = vpack.c.b16 %v2118, %v2114
    %v2155 = vpack.c.b16 %v2119, %v2115
    %v2156 = vpack.c.b16 %v2124, %v2120
    %v2157 = vpack.c.b16 %v2125, %v2121
    %v2158 = vpack.c.b16 %v2126, %v2122
    %v2159 = vpack.c.b16 %v2127, %v2123
    %2192 = vmatprep.subr.bf16.mxu0 %v2157
    %2193 = vmatpush1.bf16.msra.mxu0 %v2156
    %2194 = vmatprep.subr.bf16.mxu0 %v2153
    %2195 = vmatpush1.bf16.msra.mxu0 %v2152
    %2196 = vmatprep.subr.bf16.mxu0 %v2149
    %2197 = vmatpush1.bf16.msra.mxu0 %v2148
    %2198 = vmatprep.subr.bf16.mxu0 %v2145
    %2199 = vmatpush1.bf16.msra.mxu0 %v2144
    %2200 = vmatprep.subr.bf16.mxu0 %v2141
    %2201 = vmatpush1.bf16.msra.mxu0 %v2140
    %2202 = vmatprep.subr.bf16.mxu0 %v2137
    %2203 = vmatpush1.bf16.msra.mxu0 %v2136
    %2204 = vmatprep.subr.bf16.mxu0 %v2133
    %2205 = vmatpush1.bf16.msra.mxu0 %v2132
    %2206 = vmatprep.subr.bf16.mxu0 %v2129
    %2207 = vmatpush1.bf16.msra.mxu0 %v2128
    %2208 = vmatprep.subr.bf16.mxu0 0
    %2209 = vmatpush2.bf16.msra.mxu0 0
    %2210 = vmatprep.subr.bf16.mxu0 0
    %2211 = vmatpush2.bf16.msra.mxu0 0
    %2212 = vmatprep.subr.bf16.mxu0 0
    %2213 = vmatpush2.bf16.msra.mxu0 0
    %2214 = vmatprep.subr.bf16.mxu0 0
    %2215 = vmatpush2.bf16.msra.mxu0 0
    %2216 = vmatprep.subr.bf16.mxu0 0
    %2217 = vmatpush2.bf16.msra.mxu0 0
    %2218 = vmatprep.subr.bf16.mxu0 0
    %2219 = vmatpush2.bf16.msra.mxu0 0
    %2220 = vmatprep.subr.bf16.mxu0 0
    %2221 = vmatpush2.bf16.msra.mxu0 0
    %2222 = vmatprep.subr.bf16.mxu0 0
    %2223 = vmatpush2.bf16.msra.mxu0 0
    %2224 = vmatprep.mubr.bf16.mxu0 0
    %2225 = vmatmul.mubr.bf16.gmra.mxu0 %v1999
    %v2226 = vpop.f32.mrf.mxu0
    %v2227 = vadd.f32 0.0, %v2226
    %v2228 = vpop.f32.mrf.mxu0
    %v2229 = vadd.f32 0.0, %v2228
    %v2230 = vpop.f32.mrf.mxu0
    %v2231 = vpop.f32.mrf.mxu0
    %2232 = vdwg.mxu0
    %2233 = vmatprep.subr.bf16.mxu0 %v2159
    %2234 = vmatpush1.bf16.msra.mxu0 %v2158
    %2235 = vmatprep.subr.bf16.mxu0 %v2155
    %2236 = vmatpush1.bf16.msra.mxu0 %v2154
    %2237 = vmatprep.subr.bf16.mxu0 %v2151
    %2238 = vmatpush1.bf16.msra.mxu0 %v2150
    %2239 = vmatprep.subr.bf16.mxu0 %v2147
    %2240 = vmatpush1.bf16.msra.mxu0 %v2146
    %2241 = vmatprep.subr.bf16.mxu0 %v2143
    %2242 = vmatpush1.bf16.msra.mxu0 %v2142
    %2243 = vmatprep.subr.bf16.mxu0 %v2139
    %2244 = vmatpush1.bf16.msra.mxu0 %v2138
    %2245 = vmatprep.subr.bf16.mxu0 %v2135
    %2246 = vmatpush1.bf16.msra.mxu0 %v2134
    %2247 = vmatprep.subr.bf16.mxu0 %v2131
    %2248 = vmatpush1.bf16.msra.mxu0 %v2130
    %2249 = vmatprep.subr.bf16.mxu0 0
    %2250 = vmatpush2.bf16.msra.mxu0 0
    %2251 = vmatprep.subr.bf16.mxu0 0
    %2252 = vmatpush2.bf16.msra.mxu0 0
    %2253 = vmatprep.subr.bf16.mxu0 0
    %2254 = vmatpush2.bf16.msra.mxu0 0
    %2255 = vmatprep.subr.bf16.mxu0 0
    %2256 = vmatpush2.bf16.msra.mxu0 0
    %2257 = vmatprep.subr.bf16.mxu0 0
    %2258 = vmatpush2.bf16.msra.mxu0 0
    %2259 = vmatprep.subr.bf16.mxu0 0
    %2260 = vmatpush2.bf16.msra.mxu0 0
    %2261 = vmatprep.subr.bf16.mxu0 0
    %2262 = vmatpush2.bf16.msra.mxu0 0
    %2263 = vmatprep.subr.bf16.mxu0 0
    %2264 = vmatpush2.bf16.msra.mxu0 0
    %2265 = vmatprep.mubr.bf16.mxu0 0
    %2266 = vmatmul.mubr.bf16.gmra.mxu0 %v1999
    %v2267 = vpop.f32.mrf.mxu0
    %v2268 = vadd.f32 0.0, %v2267
    %v2269 = vpop.f32.mrf.mxu0
    %v2270 = vadd.f32 0.0, %v2269
    %v2271 = vpop.f32.mrf.mxu0
    %v2272 = vpop.f32.mrf.mxu0
    %2273 = vdwg.mxu0
    %v2274 = vadd.f32 %v429, %v2227
    %v2275 = vadd.f32 %v431, %v2229
    %v2276 = vadd.f32 %v470, %v2268
    %v2277 = vadd.f32 %v472, %v2270
    %v2278 = vxor.u32 %v2274, 2147483648
    %v2279 = vxor.u32 %v2275, 2147483648
    %v2280 = vmul.f32 %v2278, 1.442695
    %v2281 = vpow.pop %v2280
    %v2282 = vmul.f32 %v2279, 1.442695
    %v2283 = vpow.pop %v2282
    %v2284 = vadd.f32 %v2281, 1.0
    %v2285 = vadd.f32 %v2283, 1.0
    %v2286 = vrcp.pop %v2284
    %v2287 = vmul.f32 1.0, %v2286
    %v2288 = vrcp.pop %v2285
    %v2289 = vmul.f32 1.0, %v2288
    %v2290 = vtanh.pop %v2276
    %v2291 = vxor.u32 %v2277, 2147483648
    %v2292 = vmul.f32 %v2291, 1.442695
    %v2293 = vpow.pop %v2292
    %v2294 = vadd.f32 %v2293, 1.0
    %v2295 = vrcp.pop %v2294
    %v2296 = vmul.f32 1.0, %v2295
    %v2297 = vmul.f32 %v2289, %v1994
    %v2298 = vmul.f32 %v2287, %v2290
    %v2299 = vadd.f32 %v2297, %v2298
    %v2300 = vtanh.pop %v2299
    %v2301 = vmul.f32 %v2296, %v2300
    %s2302 = scalar_lea.vmem [#allocation2], 40
    %2303 = vst [vmem:[%s2302] sm:$0xff] %v2301
    %v2304 = vpack.c.bf16 %v2301, %v2301
    %v2305 = vld [vmem:[#allocation9] sm:$0xff]
    %v2306 = vld [vmem:[#allocation9 + $0x8] sm:$0xff]
    %v2307 = vld [vmem:[#allocation9 + $0x10] sm:$0xff]
    %v2308 = vld [vmem:[#allocation9 + $0x18] sm:$0xff]
    %v2309 = vld [vmem:[#allocation9 + $0x20] sm:$0xff]
    %v2310 = vld [vmem:[#allocation9 + $0x28] sm:$0xff]
    %v2311 = vld [vmem:[#allocation9 + $0x30] sm:$0xff]
    %v2312 = vld [vmem:[#allocation9 + $0x38] sm:$0xff]
    %v2313 = vld [vmem:[#allocation9 + $0x40] sm:$0xff]
    %v2314 = vld [vmem:[#allocation9 + $0x48] sm:$0xff]
    %v2315 = vld [vmem:[#allocation9 + $0x50] sm:$0xff]
    %v2316 = vld [vmem:[#allocation9 + $0x58] sm:$0xff]
    %v2317 = vld [vmem:[#allocation9 + $0x60] sm:$0xff]
    %v2318 = vld [vmem:[#allocation9 + $0x68] sm:$0xff]
    %v2319 = vld [vmem:[#allocation9 + $0x70] sm:$0xff]
    %v2320 = vld [vmem:[#allocation9 + $0x78] sm:$0xff]
    %v2321 = vld [vmem:[#allocation9 + $0x80] sm:$0xff]
    %v2322 = vld [vmem:[#allocation9 + $0x88] sm:$0xff]
    %v2323 = vld [vmem:[#allocation9 + $0x90] sm:$0xff]
    %v2324 = vld [vmem:[#allocation9 + $0x98] sm:$0xff]
    %v2325 = vld [vmem:[#allocation9 + $0xa0] sm:$0xff]
    %v2326 = vld [vmem:[#allocation9 + $0xa8] sm:$0xff]
    %v2327 = vld [vmem:[#allocation9 + $0xb0] sm:$0xff]
    %v2328 = vld [vmem:[#allocation9 + $0xb8] sm:$0xff]
    %v2329 = vld [vmem:[#allocation9 + $0xc0] sm:$0xff]
    %v2330 = vld [vmem:[#allocation9 + $0xc8] sm:$0xff]
    %v2331 = vld [vmem:[#allocation9 + $0xd0] sm:$0xff]
    %v2332 = vld [vmem:[#allocation9 + $0xd8] sm:$0xff]
    %v2333 = vld [vmem:[#allocation9 + $0xe0] sm:$0xff]
    %v2334 = vld [vmem:[#allocation9 + $0xe8] sm:$0xff]
    %v2335 = vld [vmem:[#allocation9 + $0xf0] sm:$0xff]
    %v2336 = vld [vmem:[#allocation9 + $0xf8] sm:$0xff]
    %v2369 = vunpack.c.l.b16 %v2305
    %v2370 = vunpack.c.h.b16 %v2305
    %v2371 = vunpack.c.l.b16 %v2306
    %v2372 = vunpack.c.h.b16 %v2306
    %v2373 = vunpack.c.l.b16 %v2307
    %v2374 = vunpack.c.h.b16 %v2307
    %v2375 = vunpack.c.l.b16 %v2308
    %v2376 = vunpack.c.h.b16 %v2308
    %v2377 = vunpack.c.l.b16 %v2309
    %v2378 = vunpack.c.h.b16 %v2309
    %v2379 = vunpack.c.l.b16 %v2310
    %v2380 = vunpack.c.h.b16 %v2310
    %v2381 = vunpack.c.l.b16 %v2311
    %v2382 = vunpack.c.h.b16 %v2311
    %v2383 = vunpack.c.l.b16 %v2312
    %v2384 = vunpack.c.h.b16 %v2312
    %v2385 = vunpack.c.l.b16 %v2313
    %v2386 = vunpack.c.h.b16 %v2313
    %v2387 = vunpack.c.l.b16 %v2314
    %v2388 = vunpack.c.h.b16 %v2314
    %v2389 = vunpack.c.l.b16 %v2315
    %v2390 = vunpack.c.h.b16 %v2315
    %v2391 = vunpack.c.l.b16 %v2316
    %v2392 = vunpack.c.h.b16 %v2316
    %v2393 = vunpack.c.l.b16 %v2317
    %v2394 = vunpack.c.h.b16 %v2317
    %v2395 = vunpack.c.l.b16 %v2318
    %v2396 = vunpack.c.h.b16 %v2318
    %v2397 = vunpack.c.l.b16 %v2319
    %v2398 = vunpack.c.h.b16 %v2319
    %v2399 = vunpack.c.l.b16 %v2320
    %v2400 = vunpack.c.h.b16 %v2320
    %v2401 = vunpack.c.l.b16 %v2321
    %v2402 = vunpack.c.h.b16 %v2321
    %v2403 = vunpack.c.l.b16 %v2322
    %v2404 = vunpack.c.h.b16 %v2322
    %v2405 = vunpack.c.l.b16 %v2323
    %v2406 = vunpack.c.h.b16 %v2323
    %v2407 = vunpack.c.l.b16 %v2324
    %v2408 = vunpack.c.h.b16 %v2324
    %v2409 = vunpack.c.l.b16 %v2325
    %v2410 = vunpack.c.h.b16 %v2325
    %v2411 = vunpack.c.l.b16 %v2326
    %v2412 = vunpack.c.h.b16 %v2326
    %v2413 = vunpack.c.l.b16 %v2327
    %v2414 = vunpack.c.h.b16 %v2327
    %v2415 = vunpack.c.l.b16 %v2328
    %v2416 = vunpack.c.h.b16 %v2328
    %v2417 = vunpack.c.l.b16 %v2329
    %v2418 = vunpack.c.h.b16 %v2329
    %v2419 = vunpack.c.l.b16 %v2330
    %v2420 = vunpack.c.h.b16 %v2330
    %v2421 = vunpack.c.l.b16 %v2331
    %v2422 = vunpack.c.h.b16 %v2331
    %v2423 = vunpack.c.l.b16 %v2332
    %v2424 = vunpack.c.h.b16 %v2332
    %v2425 = vunpack.c.l.b16 %v2333
    %v2426 = vunpack.c.h.b16 %v2333
    %v2427 = vunpack.c.l.b16 %v2334
    %v2428 = vunpack.c.h.b16 %v2334
    %v2429 = vunpack.c.l.b16 %v2335
    %v2430 = vunpack.c.h.b16 %v2335
    %v2431 = vunpack.c.l.b16 %v2336
    %v2432 = vunpack.c.h.b16 %v2336
    %v2433 = vpack.c.b16 %v2373, %v2369
    %v2434 = vpack.c.b16 %v2374, %v2370
    %v2435 = vpack.c.b16 %v2375, %v2371
    %v2436 = vpack.c.b16 %v2376, %v2372
    %v2437 = vpack.c.b16 %v2381, %v2377
    %v2438 = vpack.c.b16 %v2382, %v2378
    %v2439 = vpack.c.b16 %v2383, %v2379
    %v2440 = vpack.c.b16 %v2384, %v2380
    %v2441 = vpack.c.b16 %v2389, %v2385
    %v2442 = vpack.c.b16 %v2390, %v2386
    %v2443 = vpack.c.b16 %v2391, %v2387
    %v2444 = vpack.c.b16 %v2392, %v2388
    %v2445 = vpack.c.b16 %v2397, %v2393
    %v2446 = vpack.c.b16 %v2398, %v2394
    %v2447 = vpack.c.b16 %v2399, %v2395
    %v2448 = vpack.c.b16 %v2400, %v2396
    %v2449 = vpack.c.b16 %v2405, %v2401
    %v2450 = vpack.c.b16 %v2406, %v2402
    %v2451 = vpack.c.b16 %v2407, %v2403
    %v2452 = vpack.c.b16 %v2408, %v2404
    %v2453 = vpack.c.b16 %v2413, %v2409
    %v2454 = vpack.c.b16 %v2414, %v2410
    %v2455 = vpack.c.b16 %v2415, %v2411
    %v2456 = vpack.c.b16 %v2416, %v2412
    %v2457 = vpack.c.b16 %v2421, %v2417
    %v2458 = vpack.c.b16 %v2422, %v2418
    %v2459 = vpack.c.b16 %v2423, %v2419
    %v2460 = vpack.c.b16 %v2424, %v2420
    %v2461 = vpack.c.b16 %v2429, %v2425
    %v2462 = vpack.c.b16 %v2430, %v2426
    %v2463 = vpack.c.b16 %v2431, %v2427
    %v2464 = vpack.c.b16 %v2432, %v2428
    %2497 = vmatprep.subr.bf16.mxu0 %v2462
    %2498 = vmatpush1.bf16.msra.mxu0 %v2461
    %2499 = vmatprep.subr.bf16.mxu0 %v2458
    %2500 = vmatpush1.bf16.msra.mxu0 %v2457
    %2501 = vmatprep.subr.bf16.mxu0 %v2454
    %2502 = vmatpush1.bf16.msra.mxu0 %v2453
    %2503 = vmatprep.subr.bf16.mxu0 %v2450
    %2504 = vmatpush1.bf16.msra.mxu0 %v2449
    %2505 = vmatprep.subr.bf16.mxu0 %v2446
    %2506 = vmatpush1.bf16.msra.mxu0 %v2445
    %2507 = vmatprep.subr.bf16.mxu0 %v2442
    %2508 = vmatpush1.bf16.msra.mxu0 %v2441
    %2509 = vmatprep.subr.bf16.mxu0 %v2438
    %2510 = vmatpush1.bf16.msra.mxu0 %v2437
    %2511 = vmatprep.subr.bf16.mxu0 %v2434
    %2512 = vmatpush1.bf16.msra.mxu0 %v2433
    %2513 = vmatprep.subr.bf16.mxu0 0
    %2514 = vmatpush2.bf16.msra.mxu0 0
    %2515 = vmatprep.subr.bf16.mxu0 0
    %2516 = vmatpush2.bf16.msra.mxu0 0
    %2517 = vmatprep.subr.bf16.mxu0 0
    %2518 = vmatpush2.bf16.msra.mxu0 0
    %2519 = vmatprep.subr.bf16.mxu0 0
    %2520 = vmatpush2.bf16.msra.mxu0 0
    %2521 = vmatprep.subr.bf16.mxu0 0
    %2522 = vmatpush2.bf16.msra.mxu0 0
    %2523 = vmatprep.subr.bf16.mxu0 0
    %2524 = vmatpush2.bf16.msra.mxu0 0
    %2525 = vmatprep.subr.bf16.mxu0 0
    %2526 = vmatpush2.bf16.msra.mxu0 0
    %2527 = vmatprep.subr.bf16.mxu0 0
    %2528 = vmatpush2.bf16.msra.mxu0 0
    %2529 = vmatprep.mubr.bf16.mxu0 0
    %2530 = vmatmul.mubr.bf16.gmra.mxu0 %v2304
    %v2531 = vpop.f32.mrf.mxu0
    %v2532 = vadd.f32 0.0, %v2531
    %v2533 = vpop.f32.mrf.mxu0
    %v2534 = vadd.f32 0.0, %v2533
    %v2535 = vpop.f32.mrf.mxu0
    %v2536 = vpop.f32.mrf.mxu0
    %2537 = vdwg.mxu0
    %2538 = vmatprep.subr.bf16.mxu0 %v2464
    %2539 = vmatpush1.bf16.msra.mxu0 %v2463
    %2540 = vmatprep.subr.bf16.mxu0 %v2460
    %2541 = vmatpush1.bf16.msra.mxu0 %v2459
    %2542 = vmatprep.subr.bf16.mxu0 %v2456
    %2543 = vmatpush1.bf16.msra.mxu0 %v2455
    %2544 = vmatprep.subr.bf16.mxu0 %v2452
    %2545 = vmatpush1.bf16.msra.mxu0 %v2451
    %2546 = vmatprep.subr.bf16.mxu0 %v2448
    %2547 = vmatpush1.bf16.msra.mxu0 %v2447
    %2548 = vmatprep.subr.bf16.mxu0 %v2444
    %2549 = vmatpush1.bf16.msra.mxu0 %v2443
    %2550 = vmatprep.subr.bf16.mxu0 %v2440
    %2551 = vmatpush1.bf16.msra.mxu0 %v2439
    %2552 = vmatprep.subr.bf16.mxu0 %v2436
    %2553 = vmatpush1.bf16.msra.mxu0 %v2435
    %2554 = vmatprep.subr.bf16.mxu0 0
    %2555 = vmatpush2.bf16.msra.mxu0 0
    %2556 = vmatprep.subr.bf16.mxu0 0
    %2557 = vmatpush2.bf16.msra.mxu0 0
    %2558 = vmatprep.subr.bf16.mxu0 0
    %2559 = vmatpush2.bf16.msra.mxu0 0
    %2560 = vmatprep.subr.bf16.mxu0 0
    %2561 = vmatpush2.bf16.msra.mxu0 0
    %2562 = vmatprep.subr.bf16.mxu0 0
    %2563 = vmatpush2.bf16.msra.mxu0 0
    %2564 = vmatprep.subr.bf16.mxu0 0
    %2565 = vmatpush2.bf16.msra.mxu0 0
    %2566 = vmatprep.subr.bf16.mxu0 0
    %2567 = vmatpush2.bf16.msra.mxu0 0
    %2568 = vmatprep.subr.bf16.mxu0 0
    %2569 = vmatpush2.bf16.msra.mxu0 0
    %2570 = vmatprep.mubr.bf16.mxu0 0
    %2571 = vmatmul.mubr.bf16.gmra.mxu0 %v2304
    %v2572 = vpop.f32.mrf.mxu0
    %v2573 = vadd.f32 0.0, %v2572
    %v2574 = vpop.f32.mrf.mxu0
    %v2575 = vadd.f32 0.0, %v2574
    %v2576 = vpop.f32.mrf.mxu0
    %v2577 = vpop.f32.mrf.mxu0
    %2578 = vdwg.mxu0
    %v2579 = vadd.f32 %v429, %v2532
    %v2580 = vadd.f32 %v431, %v2534
    %v2581 = vadd.f32 %v470, %v2573
    %v2582 = vadd.f32 %v472, %v2575
    %v2583 = vxor.u32 %v2579, 2147483648
    %v2584 = vxor.u32 %v2580, 2147483648
    %v2585 = vmul.f32 %v2583, 1.442695
    %v2586 = vpow.pop %v2585
    %v2587 = vmul.f32 %v2584, 1.442695
    %v2588 = vpow.pop %v2587
    %v2589 = vadd.f32 %v2586, 1.0
    %v2590 = vadd.f32 %v2588, 1.0
    %v2591 = vrcp.pop %v2589
    %v2592 = vmul.f32 1.0, %v2591
    %v2593 = vrcp.pop %v2590
    %v2594 = vmul.f32 1.0, %v2593
    %v2595 = vtanh.pop %v2581
    %v2596 = vxor.u32 %v2582, 2147483648
    %v2597 = vmul.f32 %v2596, 1.442695
    %v2598 = vpow.pop %v2597
    %v2599 = vadd.f32 %v2598, 1.0
    %v2600 = vrcp.pop %v2599
    %v2601 = vmul.f32 1.0, %v2600
    %v2602 = vmul.f32 %v2594, %v2299
    %v2603 = vmul.f32 %v2592, %v2595
    %v2604 = vadd.f32 %v2602, %v2603
    %v2605 = vtanh.pop %v2604
    %v2606 = vmul.f32 %v2601, %v2605
    %s2607 = scalar_lea.vmem [#allocation2], 48
    %2608 = vst [vmem:[%s2607] sm:$0xff] %v2606
    %v2609 = vpack.c.bf16 %v2606, %v2606
    %v2610 = vld [vmem:[#allocation9] sm:$0xff]
    %v2611 = vld [vmem:[#allocation9 + $0x8] sm:$0xff]
    %v2612 = vld [vmem:[#allocation9 + $0x10] sm:$0xff]
    %v2613 = vld [vmem:[#allocation9 + $0x18] sm:$0xff]
    %v2614 = vld [vmem:[#allocation9 + $0x20] sm:$0xff]
    %v2615 = vld [vmem:[#allocation9 + $0x28] sm:$0xff]
    %v2616 = vld [vmem:[#allocation9 + $0x30] sm:$0xff]
    %v2617 = vld [vmem:[#allocation9 + $0x38] sm:$0xff]
    %v2618 = vld [vmem:[#allocation9 + $0x40] sm:$0xff]
    %v2619 = vld [vmem:[#allocation9 + $0x48] sm:$0xff]
    %v2620 = vld [vmem:[#allocation9 + $0x50] sm:$0xff]
    %v2621 = vld [vmem:[#allocation9 + $0x58] sm:$0xff]
    %v2622 = vld [vmem:[#allocation9 + $0x60] sm:$0xff]
    %v2623 = vld [vmem:[#allocation9 + $0x68] sm:$0xff]
    %v2624 = vld [vmem:[#allocation9 + $0x70] sm:$0xff]
    %v2625 = vld [vmem:[#allocation9 + $0x78] sm:$0xff]
    %v2626 = vld [vmem:[#allocation9 + $0x80] sm:$0xff]
    %v2627 = vld [vmem:[#allocation9 + $0x88] sm:$0xff]
    %v2628 = vld [vmem:[#allocation9 + $0x90] sm:$0xff]
    %v2629 = vld [vmem:[#allocation9 + $0x98] sm:$0xff]
    %v2630 = vld [vmem:[#allocation9 + $0xa0] sm:$0xff]
    %v2631 = vld [vmem:[#allocation9 + $0xa8] sm:$0xff]
    %v2632 = vld [vmem:[#allocation9 + $0xb0] sm:$0xff]
    %v2633 = vld [vmem:[#allocation9 + $0xb8] sm:$0xff]
    %v2634 = vld [vmem:[#allocation9 + $0xc0] sm:$0xff]
    %v2635 = vld [vmem:[#allocation9 + $0xc8] sm:$0xff]
    %v2636 = vld [vmem:[#allocation9 + $0xd0] sm:$0xff]
    %v2637 = vld [vmem:[#allocation9 + $0xd8] sm:$0xff]
    %v2638 = vld [vmem:[#allocation9 + $0xe0] sm:$0xff]
    %v2639 = vld [vmem:[#allocation9 + $0xe8] sm:$0xff]
    %v2640 = vld [vmem:[#allocation9 + $0xf0] sm:$0xff]
    %v2641 = vld [vmem:[#allocation9 + $0xf8] sm:$0xff]
    %v2674 = vunpack.c.l.b16 %v2610
    %v2675 = vunpack.c.h.b16 %v2610
    %v2676 = vunpack.c.l.b16 %v2611
    %v2677 = vunpack.c.h.b16 %v2611
    %v2678 = vunpack.c.l.b16 %v2612
    %v2679 = vunpack.c.h.b16 %v2612
    %v2680 = vunpack.c.l.b16 %v2613
    %v2681 = vunpack.c.h.b16 %v2613
    %v2682 = vunpack.c.l.b16 %v2614
    %v2683 = vunpack.c.h.b16 %v2614
    %v2684 = vunpack.c.l.b16 %v2615
    %v2685 = vunpack.c.h.b16 %v2615
    %v2686 = vunpack.c.l.b16 %v2616
    %v2687 = vunpack.c.h.b16 %v2616
    %v2688 = vunpack.c.l.b16 %v2617
    %v2689 = vunpack.c.h.b16 %v2617
    %v2690 = vunpack.c.l.b16 %v2618
    %v2691 = vunpack.c.h.b16 %v2618
    %v2692 = vunpack.c.l.b16 %v2619
    %v2693 = vunpack.c.h.b16 %v2619
    %v2694 = vunpack.c.l.b16 %v2620
    %v2695 = vunpack.c.h.b16 %v2620
    %v2696 = vunpack.c.l.b16 %v2621
    %v2697 = vunpack.c.h.b16 %v2621
    %v2698 = vunpack.c.l.b16 %v2622
    %v2699 = vunpack.c.h.b16 %v2622
    %v2700 = vunpack.c.l.b16 %v2623
    %v2701 = vunpack.c.h.b16 %v2623
    %v2702 = vunpack.c.l.b16 %v2624
    %v2703 = vunpack.c.h.b16 %v2624
    %v2704 = vunpack.c.l.b16 %v2625
    %v2705 = vunpack.c.h.b16 %v2625
    %v2706 = vunpack.c.l.b16 %v2626
    %v2707 = vunpack.c.h.b16 %v2626
    %v2708 = vunpack.c.l.b16 %v2627
    %v2709 = vunpack.c.h.b16 %v2627
    %v2710 = vunpack.c.l.b16 %v2628
    %v2711 = vunpack.c.h.b16 %v2628
    %v2712 = vunpack.c.l.b16 %v2629
    %v2713 = vunpack.c.h.b16 %v2629
    %v2714 = vunpack.c.l.b16 %v2630
    %v2715 = vunpack.c.h.b16 %v2630
    %v2716 = vunpack.c.l.b16 %v2631
    %v2717 = vunpack.c.h.b16 %v2631
    %v2718 = vunpack.c.l.b16 %v2632
    %v2719 = vunpack.c.h.b16 %v2632
    %v2720 = vunpack.c.l.b16 %v2633
    %v2721 = vunpack.c.h.b16 %v2633
    %v2722 = vunpack.c.l.b16 %v2634
    %v2723 = vunpack.c.h.b16 %v2634
    %v2724 = vunpack.c.l.b16 %v2635
    %v2725 = vunpack.c.h.b16 %v2635
    %v2726 = vunpack.c.l.b16 %v2636
    %v2727 = vunpack.c.h.b16 %v2636
    %v2728 = vunpack.c.l.b16 %v2637
    %v2729 = vunpack.c.h.b16 %v2637
    %v2730 = vunpack.c.l.b16 %v2638
    %v2731 = vunpack.c.h.b16 %v2638
    %v2732 = vunpack.c.l.b16 %v2639
    %v2733 = vunpack.c.h.b16 %v2639
    %v2734 = vunpack.c.l.b16 %v2640
    %v2735 = vunpack.c.h.b16 %v2640
    %v2736 = vunpack.c.l.b16 %v2641
    %v2737 = vunpack.c.h.b16 %v2641
    %v2738 = vpack.c.b16 %v2678, %v2674
    %v2739 = vpack.c.b16 %v2679, %v2675
    %v2740 = vpack.c.b16 %v2680, %v2676
    %v2741 = vpack.c.b16 %v2681, %v2677
    %v2742 = vpack.c.b16 %v2686, %v2682
    %v2743 = vpack.c.b16 %v2687, %v2683
    %v2744 = vpack.c.b16 %v2688, %v2684
    %v2745 = vpack.c.b16 %v2689, %v2685
    %v2746 = vpack.c.b16 %v2694, %v2690
    %v2747 = vpack.c.b16 %v2695, %v2691
    %v2748 = vpack.c.b16 %v2696, %v2692
    %v2749 = vpack.c.b16 %v2697, %v2693
    %v2750 = vpack.c.b16 %v2702, %v2698
    %v2751 = vpack.c.b16 %v2703, %v2699
    %v2752 = vpack.c.b16 %v2704, %v2700
    %v2753 = vpack.c.b16 %v2705, %v2701
    %v2754 = vpack.c.b16 %v2710, %v2706
    %v2755 = vpack.c.b16 %v2711, %v2707
    %v2756 = vpack.c.b16 %v2712, %v2708
    %v2757 = vpack.c.b16 %v2713, %v2709
    %v2758 = vpack.c.b16 %v2718, %v2714
    %v2759 = vpack.c.b16 %v2719, %v2715
    %v2760 = vpack.c.b16 %v2720, %v2716
    %v2761 = vpack.c.b16 %v2721, %v2717
    %v2762 = vpack.c.b16 %v2726, %v2722
    %v2763 = vpack.c.b16 %v2727, %v2723
    %v2764 = vpack.c.b16 %v2728, %v2724
    %v2765 = vpack.c.b16 %v2729, %v2725
    %v2766 = vpack.c.b16 %v2734, %v2730
    %v2767 = vpack.c.b16 %v2735, %v2731
    %v2768 = vpack.c.b16 %v2736, %v2732
    %v2769 = vpack.c.b16 %v2737, %v2733
    %2802 = vmatprep.subr.bf16.mxu0 %v2767
    %2803 = vmatpush1.bf16.msra.mxu0 %v2766
    %2804 = vmatprep.subr.bf16.mxu0 %v2763
    %2805 = vmatpush1.bf16.msra.mxu0 %v2762
    %2806 = vmatprep.subr.bf16.mxu0 %v2759
    %2807 = vmatpush1.bf16.msra.mxu0 %v2758
    %2808 = vmatprep.subr.bf16.mxu0 %v2755
    %2809 = vmatpush1.bf16.msra.mxu0 %v2754
    %2810 = vmatprep.subr.bf16.mxu0 %v2751
    %2811 = vmatpush1.bf16.msra.mxu0 %v2750
    %2812 = vmatprep.subr.bf16.mxu0 %v2747
    %2813 = vmatpush1.bf16.msra.mxu0 %v2746
    %2814 = vmatprep.subr.bf16.mxu0 %v2743
    %2815 = vmatpush1.bf16.msra.mxu0 %v2742
    %2816 = vmatprep.subr.bf16.mxu0 %v2739
    %2817 = vmatpush1.bf16.msra.mxu0 %v2738
    %2818 = vmatprep.subr.bf16.mxu0 0
    %2819 = vmatpush2.bf16.msra.mxu0 0
    %2820 = vmatprep.subr.bf16.mxu0 0
    %2821 = vmatpush2.bf16.msra.mxu0 0
    %2822 = vmatprep.subr.bf16.mxu0 0
    %2823 = vmatpush2.bf16.msra.mxu0 0
    %2824 = vmatprep.subr.bf16.mxu0 0
    %2825 = vmatpush2.bf16.msra.mxu0 0
    %2826 = vmatprep.subr.bf16.mxu0 0
    %2827 = vmatpush2.bf16.msra.mxu0 0
    %2828 = vmatprep.subr.bf16.mxu0 0
    %2829 = vmatpush2.bf16.msra.mxu0 0
    %2830 = vmatprep.subr.bf16.mxu0 0
    %2831 = vmatpush2.bf16.msra.mxu0 0
    %2832 = vmatprep.subr.bf16.mxu0 0
    %2833 = vmatpush2.bf16.msra.mxu0 0
    %2834 = vmatprep.mubr.bf16.mxu0 0
    %2835 = vmatmul.mubr.bf16.gmra.mxu0 %v2609
    %v2836 = vpop.f32.mrf.mxu0
    %v2837 = vadd.f32 0.0, %v2836
    %v2838 = vpop.f32.mrf.mxu0
    %v2839 = vadd.f32 0.0, %v2838
    %v2840 = vpop.f32.mrf.mxu0
    %v2841 = vpop.f32.mrf.mxu0
    %2842 = vdwg.mxu0
    %2843 = vmatprep.subr.bf16.mxu0 %v2769
    %2844 = vmatpush1.bf16.msra.mxu0 %v2768
    %2845 = vmatprep.subr.bf16.mxu0 %v2765
    %2846 = vmatpush1.bf16.msra.mxu0 %v2764
    %2847 = vmatprep.subr.bf16.mxu0 %v2761
    %2848 = vmatpush1.bf16.msra.mxu0 %v2760
    %2849 = vmatprep.subr.bf16.mxu0 %v2757
    %2850 = vmatpush1.bf16.msra.mxu0 %v2756
    %2851 = vmatprep.subr.bf16.mxu0 %v2753
    %2852 = vmatpush1.bf16.msra.mxu0 %v2752
    %2853 = vmatprep.subr.bf16.mxu0 %v2749
    %2854 = vmatpush1.bf16.msra.mxu0 %v2748
    %2855 = vmatprep.subr.bf16.mxu0 %v2745
    %2856 = vmatpush1.bf16.msra.mxu0 %v2744
    %2857 = vmatprep.subr.bf16.mxu0 %v2741
    %2858 = vmatpush1.bf16.msra.mxu0 %v2740
    %2859 = vmatprep.subr.bf16.mxu0 0
    %2860 = vmatpush2.bf16.msra.mxu0 0
    %2861 = vmatprep.subr.bf16.mxu0 0
    %2862 = vmatpush2.bf16.msra.mxu0 0
    %2863 = vmatprep.subr.bf16.mxu0 0
    %2864 = vmatpush2.bf16.msra.mxu0 0
    %2865 = vmatprep.subr.bf16.mxu0 0
    %2866 = vmatpush2.bf16.msra.mxu0 0
    %2867 = vmatprep.subr.bf16.mxu0 0
    %2868 = vmatpush2.bf16.msra.mxu0 0
    %2869 = vmatprep.subr.bf16.mxu0 0
    %2870 = vmatpush2.bf16.msra.mxu0 0
    %2871 = vmatprep.subr.bf16.mxu0 0
    %2872 = vmatpush2.bf16.msra.mxu0 0
    %2873 = vmatprep.subr.bf16.mxu0 0
    %2874 = vmatpush2.bf16.msra.mxu0 0
    %2875 = vmatprep.mubr.bf16.mxu0 0
    %2876 = vmatmul.mubr.bf16.gmra.mxu0 %v2609
    %v2877 = vpop.f32.mrf.mxu0
    %v2878 = vadd.f32 0.0, %v2877
    %v2879 = vpop.f32.mrf.mxu0
    %v2880 = vadd.f32 0.0, %v2879
    %v2881 = vpop.f32.mrf.mxu0
    %v2882 = vpop.f32.mrf.mxu0
    %2883 = vdwg.mxu0
    %v2884 = vadd.f32 %v429, %v2837
    %v2885 = vadd.f32 %v431, %v2839
    %v2886 = vadd.f32 %v470, %v2878
    %v2887 = vadd.f32 %v472, %v2880
    %v2888 = vxor.u32 %v2884, 2147483648
    %v2889 = vxor.u32 %v2885, 2147483648
    %v2890 = vmul.f32 %v2888, 1.442695
    %v2891 = vpow.pop %v2890
    %v2892 = vmul.f32 %v2889, 1.442695
    %v2893 = vpow.pop %v2892
    %v2894 = vadd.f32 %v2891, 1.0
    %v2895 = vadd.f32 %v2893, 1.0
    %v2896 = vrcp.pop %v2894
    %v2897 = vmul.f32 1.0, %v2896
    %v2898 = vrcp.pop %v2895
    %v2899 = vmul.f32 1.0, %v2898
    %v2900 = vtanh.pop %v2886
    %v2901 = vxor.u32 %v2887, 2147483648
    %v2902 = vmul.f32 %v2901, 1.442695
    %v2903 = vpow.pop %v2902
    %v2904 = vadd.f32 %v2903, 1.0
    %v2905 = vrcp.pop %v2904
    %v2906 = vmul.f32 1.0, %v2905
    %v2907 = vmul.f32 %v2899, %v2604
    %v2908 = vmul.f32 %v2897, %v2900
    %v2909 = vadd.f32 %v2907, %v2908
    %v2910 = vtanh.pop %v2909
    %v2911 = vmul.f32 %v2906, %v2910
    %s2912 = scalar_lea.vmem [#allocation2], 56
    %2913 = vst [vmem:[%s2912] sm:$0xff] %v2911
    %v2914 = vld [vmem:[#allocation2] sm:$0xff]
    %v2915 = vld [vmem:[#allocation2 + $0x8] sm:$0xff]
    %v2916 = vld [vmem:[#allocation2 + $0x10] sm:$0xff]
    %v2917 = vld [vmem:[#allocation2 + $0x18] sm:$0xff]
    %v2918 = vld [vmem:[#allocation2 + $0x20] sm:$0xff]
    %v2919 = vld [vmem:[#allocation2 + $0x28] sm:$0xff]
    %v2920 = vld [vmem:[#allocation2 + $0x30] sm:$0xff]
    %v2921 = vld [vmem:[#allocation2 + $0x38] sm:$0xff]
    %v2922 = vpack.c.bf16 %v2915, %v2914
    %v2923 = vpack.c.bf16 %v2917, %v2916
    %v2924 = vpack.c.bf16 %v2919, %v2918
    %v2925 = vpack.c.bf16 %v2921, %v2920
    %v2926 = vld [vmem:[#allocation11] sm:$0xf]
    %v2927 = vld [vmem:[#allocation11 + $0x4] sm:$0xf]
    %v2928 = vld [vmem:[#allocation11 + $0x8] sm:$0xf]
    %v2929 = vld [vmem:[#allocation11 + $0xc] sm:$0xf]
    %v2930 = vld [vmem:[#allocation11 + $0x10] sm:$0xf]
    %v2931 = vld [vmem:[#allocation11 + $0x14] sm:$0xf]
    %v2932 = vld [vmem:[#allocation11 + $0x18] sm:$0xf]
    %v2933 = vld [vmem:[#allocation11 + $0x1c] sm:$0xf]
    %v2934 = vld [vmem:[#allocation11 + $0x20] sm:$0xf]
    %v2935 = vld [vmem:[#allocation11 + $0x24] sm:$0xf]
    %v2936 = vld [vmem:[#allocation11 + $0x28] sm:$0xf]
    %v2937 = vld [vmem:[#allocation11 + $0x2c] sm:$0xf]
    %v2938 = vld [vmem:[#allocation11 + $0x30] sm:$0xf]
    %v2939 = vld [vmem:[#allocation11 + $0x34] sm:$0xf]
    %v2940 = vld [vmem:[#allocation11 + $0x38] sm:$0xf]
    %v2941 = vld [vmem:[#allocation11 + $0x3c] sm:$0xf]
    %v2942 = vld [vmem:[%s7] sm:$0x1]
    %v2944 = vlaneseq
    %v2945 = vshrl.u32 %v2944, 7
    %v2946 = vsub.s32 0, %v2945
    %v2947 = vrot.slane %v2942, %v2946
    %v2965 = vunpack.c.l.b16 %v2926
    %v2966 = vunpack.c.l.b16 %v2927
    %v2967 = vunpack.c.l.b16 %v2928
    %v2968 = vunpack.c.l.b16 %v2929
    %v2969 = vunpack.c.l.b16 %v2930
    %v2970 = vunpack.c.l.b16 %v2931
    %v2971 = vunpack.c.l.b16 %v2932
    %v2972 = vunpack.c.l.b16 %v2933
    %v2973 = vunpack.c.l.b16 %v2934
    %v2974 = vunpack.c.l.b16 %v2935
    %v2975 = vunpack.c.l.b16 %v2936
    %v2976 = vunpack.c.l.b16 %v2937
    %v2977 = vunpack.c.l.b16 %v2938
    %v2978 = vunpack.c.l.b16 %v2939
    %v2979 = vunpack.c.l.b16 %v2940
    %v2980 = vunpack.c.l.b16 %v2941
    %v2981 = vpack.c.b16 %v2966, %v2965
    %v2982 = vpack.c.b16 %v2968, %v2967
    %v2983 = vpack.c.b16 %v2970, %v2969
    %v2984 = vpack.c.b16 %v2972, %v2971
    %v2985 = vpack.c.b16 %v2974, %v2973
    %v2986 = vpack.c.b16 %v2976, %v2975
    %v2987 = vpack.c.b16 %v2978, %v2977
    %v2988 = vpack.c.b16 %v2980, %v2979
    %2997 = vmatprep.subr.bf16.mxu0 0
    %2998 = vmatpush1.bf16.msra.mxu0 %v2988
    %2999 = vmatprep.subr.bf16.mxu0 0
    %3000 = vmatpush1.bf16.msra.mxu0 %v2987
    %3001 = vmatprep.subr.bf16.mxu0 0
    %3002 = vmatpush1.bf16.msra.mxu0 %v2986
    %3003 = vmatprep.subr.bf16.mxu0 0
    %3004 = vmatpush1.bf16.msra.mxu0 %v2985
    %3005 = vmatprep.subr.bf16.mxu0 0
    %3006 = vmatpush1.bf16.msra.mxu0 %v2984
    %3007 = vmatprep.subr.bf16.mxu0 0
    %3008 = vmatpush1.bf16.msra.mxu0 %v2983
    %3009 = vmatprep.subr.bf16.mxu0 0
    %3010 = vmatpush1.bf16.msra.mxu0 %v2982
    %3011 = vmatprep.subr.bf16.mxu0 0
    %3012 = vmatpush1.bf16.msra.mxu0 %v2981
    %3013 = vmatprep.subr.bf16.mxu0 0
    %3014 = vmatpush2.bf16.msra.mxu0 0
    %3015 = vmatprep.subr.bf16.mxu0 0
    %3016 = vmatpush2.bf16.msra.mxu0 0
    %3017 = vmatprep.subr.bf16.mxu0 0
    %3018 = vmatpush2.bf16.msra.mxu0 0
    %3019 = vmatprep.subr.bf16.mxu0 0
    %3020 = vmatpush2.bf16.msra.mxu0 0
    %3021 = vmatprep.subr.bf16.mxu0 0
    %3022 = vmatpush2.bf16.msra.mxu0 0
    %3023 = vmatprep.subr.bf16.mxu0 0
    %3024 = vmatpush2.bf16.msra.mxu0 0
    %3025 = vmatprep.subr.bf16.mxu0 0
    %3026 = vmatpush2.bf16.msra.mxu0 0
    %3027 = vmatprep.subr.bf16.mxu0 0
    %3028 = vmatpush2.bf16.msra.mxu0 0
    %3029 = vmatprep.mubr.bf16.mxu0 0
    %3030 = vmatmul.mubr.bf16.gmra.mxu0 %v2922
    %v3031 = vpop.f32.mrf.mxu0
    %v3032 = vadd.f32 %v2947, %v3031
    %v3033 = vpop.f32.mrf.mxu0
    %v3034 = vpop.f32.mrf.mxu0
    %v3035 = vadd.f32 %v2947, %v3034
    %v3036 = vpop.f32.mrf.mxu0
    %3037 = vmatprep.mubr.bf16.mxu0 0
    %3038 = vmatmul.mubr.bf16.gmra.mxu0 %v2923
    %v3039 = vpop.f32.mrf.mxu0
    %v3040 = vadd.f32 %v2947, %v3039
    %v3041 = vpop.f32.mrf.mxu0
    %v3042 = vpop.f32.mrf.mxu0
    %v3043 = vadd.f32 %v2947, %v3042
    %v3044 = vpop.f32.mrf.mxu0
    %3045 = vmatprep.mubr.bf16.mxu0 0
    %3046 = vmatmul.mubr.bf16.gmra.mxu0 %v2924
    %v3047 = vpop.f32.mrf.mxu0
    %v3048 = vadd.f32 %v2947, %v3047
    %v3049 = vpop.f32.mrf.mxu0
    %v3050 = vpop.f32.mrf.mxu0
    %v3051 = vadd.f32 %v2947, %v3050
    %v3052 = vpop.f32.mrf.mxu0
    %3053 = vmatprep.mubr.bf16.mxu0 0
    %3054 = vmatmul.mubr.bf16.gmra.mxu0 %v2925
    %v3055 = vpop.f32.mrf.mxu0
    %v3056 = vadd.f32 %v2947, %v3055
    %v3057 = vpop.f32.mrf.mxu0
    %v3058 = vpop.f32.mrf.mxu0
    %v3059 = vadd.f32 %v2947, %v3058
    %v3060 = vpop.f32.mrf.mxu0
    %3061 = vdwg.mxu0
    %3062 = vst [vmem:[#allocation12] sm:$0xff] %v3032
    %3063 = vst [vmem:[#allocation12 + $0x8] sm:$0xff] %v3035
    %3064 = vst [vmem:[#allocation12 + $0x10] sm:$0xff] %v3040
    %3065 = vst [vmem:[#allocation12 + $0x18] sm:$0xff] %v3043
    %3066 = vst [vmem:[#allocation12 + $0x20] sm:$0xff] %v3048
    %3067 = vst [vmem:[#allocation12 + $0x28] sm:$0xff] %v3051
    %3068 = vst [vmem:[#allocation12 + $0x30] sm:$0xff] %v3056
    %3069 = vst [vmem:[#allocation12 + $0x38] sm:$0xff] %v3059
    // Predicated region
    $region54: #{tpu_custom_call.1} parent=1 // pred_check
      _
    $region55: #{tpu_custom_call.1} parent=1 // pred_check_branch
      %3071 = sbr.rel (0) target = $region57
    $region56: #{tpu_custom_call.1} parent=1 // pred_region
      %s3073 = ssub.s32 1024, 1024
      %3074 = vsyncadd [#allocation5], %s3073
      %s3075 = sshll.u32 [#allocation12], 4
      %s3076 = int_to_ptr.vmem [resolvable:$true] %s3075
      %3081 = dma.vmem_to_hbm [thread:$0]  %s3076, 1024, %s8, [#allocation5], 128, 128, 8
    $region57: #{tpu_custom_call.1} parent=1 // pred_fallthru
      _
    // Predicated region
    $region58: #{tpu_custom_call.1} parent=1 // pred_check
      _
    $region59: #{tpu_custom_call.1} parent=1 // pred_check_branch
      %3083 = sbr.rel (0) target = $region61
    $region60: #{tpu_custom_call.1} parent=1 // pred_region
      %3084 = dma.done [#allocation5], 1024
    $region61: #{tpu_custom_call.1} parent=1 // pred_fallthru
      _
    %3085 = vsyncpa [#allocation4], 1
    %3086 = vsyncpa [#allocation7], 1
    %3087 = vsyncpa [#allocation10], 1
    %3088 = vsyncpa [#allocation5], 1

</llo_original>
